<compile_context>
chip_gen: v6e
topology: v6e:2x2x1
jax: 0.10.0
libtpu: 0.0.40
codegen_flags: <defaults>
</compile_context>

<pallas_src>
import functools

import jax
import jax.numpy as jnp
from jax import lax
from jax.experimental import pallas as pl
from jax.experimental.pallas import tpu as pltpu

_EPS = 1e-7
_MXU_DTYPE = jnp.bfloat16

_VMEM = pl.BlockSpec(memory_space=pltpu.MemorySpace.VMEM)
_SMEM = pl.BlockSpec(memory_space=pltpu.MemorySpace.SMEM)


def _default_vmem_limit():
    """~100 MiB on 128-MiB parts (v5e/v6e), ~51 MiB on v7x, 48 MiB fallback."""
    try:
        cap = pltpu.get_tpu_info().vmem_capacity_bytes
        return min(int(cap * 0.8), 100 << 20)
    except Exception:
        return 48 << 20


_VMEM_LIMIT = _default_vmem_limit()
_COMPILER_PARAMS = pltpu.CompilerParams(vmem_limit_bytes=_VMEM_LIMIT)


# ---------------------- in-kernel building blocks -------------------------- #
def _mxu(a, b):
    """a @ b on the MXU, bf16 operands, f32 accumulation."""
    return jnp.dot(a.astype(_MXU_DTYPE), b.astype(_MXU_DTYPE),
                   preferred_element_type=jnp.float32)


def _mxu_ta(a, b):
    """a^T @ b (contract rows of both operands), bf16 operands, f32 acc."""
    return lax.dot_general(a.astype(_MXU_DTYPE), b.astype(_MXU_DTYPE),
                           (((0,), (0,)), ((), ())),
                           preferred_element_type=jnp.float32)


def _mxu_tb(a, b):
    """a @ b^T (contract cols of both operands), bf16 operands, f32 acc."""
    return lax.dot_general(a.astype(_MXU_DTYPE), b.astype(_MXU_DTYPE),
                           (((1,), (1,)), ((), ())),
                           preferred_element_type=jnp.float32)


def _colsum_f32(A):
    """Column sums of A as an (n, 1) column vector (exact f32 matmul)."""
    ones = jnp.ones((A.shape[0], 1), jnp.float32)
    return lax.dot_general(A, ones, (((0,), (0,)), ((), ())),
                           preferred_element_type=jnp.float32)


def _row_softmax_ent(x):
    """Row softmax plus mean row-entropy computed from the logits.

    H_row = log(sum_exp) - sum_j p_j*(x_j - max): one log per row instead of a
    full-matrix log(p + eps) (eps-free form; difference vs. the torch
    reference is O(eps)). Exact division (no approx reciprocal) so rows sum
    to 1 for downstream S^T A S / losses.
    """
    m = jnp.max(x, axis=1, keepdims=True)
    e = jnp.exp(x - m)
    s = jnp.sum(e, axis=1, keepdims=True)
    p = e / s
    h_rows = jnp.log(s) - jnp.sum(p * (x - m), axis=1, keepdims=True)
    return p, jnp.mean(h_rows)


def _gcn_core(x_ref, a_ref, w_ref, b_ref, transpose_adj):
    """GCNConv (sym. degree-normalised aggregation) + bias + ReLU, in VMEM.

    a_ref holds the aggregation matrix A[dst, src]; if transpose_adj the
    stored matrix is A[src, dst] and the transposed contraction is done
    directly on the MXU (contract dim 0) -- A.T is never materialised.
    D^-1/2 A D^-1/2 is applied as row scalings, so A_norm never exists.
    """
    A = a_ref[...]
    h = _mxu(x_ref[...], w_ref[...])
    if transpose_adj:
        # Agg = A^T; deg = row sum of Agg = column sum of stored A
        # (matches PyG gcn_norm: deg scattered over the dst index).
        deg = _colsum_f32(A)
        dinv = jnp.where(deg > 0.0, lax.rsqrt(deg), 0.0)
        agg = _mxu_ta(A, dinv * h)
    else:
        deg = jnp.sum(A, axis=1, keepdims=True)
        dinv = jnp.where(deg > 0.0, lax.rsqrt(deg), 0.0)
        agg = _mxu(A, dinv * h)
    out = dinv * agg + b_ref[...]
    return jnp.maximum(out, 0.0)          # act = F.relu


def _prox_link_loss(s_ref, ac_ref, eps):
    """Proximity loss without materialising the full P = S S^T.

    Unified form of the torch sparse/dense branches:
      loss = (-sum(W*log(P+e)) - sum(log(1-P+e)) + sum(W*log(1-P+e))) / n^2
    Row-blocked: only a (blk, n) slab of P (and its logs) is live at a time.
    """
    n = s_ref.shape[0]
    S_full = s_ref[...].astype(_MXU_DTYPE)

    blk = n
    for cand in (512, 256, 128):
        if n > cand and n % cand == 0:
            blk = cand
            break

    def block_term(r, rows):
        Sb = s_ref[pl.ds(r, rows), :].astype(_MXU_DTYPE)
        Ab = ac_ref[pl.ds(r, rows), :]
        P = jnp.minimum(
            lax.dot_general(Sb, S_full, (((1,), (1,)), ((), ())),
                            preferred_element_type=jnp.float32), 1.0)
        pos = jnp.log(P + eps)
        neg = jnp.log(1.0 - P + eps)
        return -jnp.sum(Ab * pos) - jnp.sum(neg) + jnp.sum(Ab * neg)

    if blk == n:
        total = block_term(0, n)
    else:
        total = lax.fori_loop(
            0, n // blk,
            lambda b, acc: acc + block_term(pl.multiple_of(b * blk, blk), blk),
            jnp.float32(0.0))
    return total / jnp.float32(n * n)


# --------------------------- Pallas kernels -------------------------------- #
def _gcn_emb_kernel(x_ref, a_ref, w_ref, b_ref, z_ref, *, transpose_adj):
    z_ref[...] = _gcn_core(x_ref, a_ref, w_ref, b_ref, transpose_adj)


def _gcn_emb_cls_kernel(x_ref, a_ref, w_ref, b_ref, cw_ref, cb_ref,
                        z_ref, pred_ref, *, transpose_adj):
    z = _gcn_core(x_ref, a_ref, w_ref, b_ref, transpose_adj)
    z_ref[...] = z
    # classifier head fused as an epilogue (only needed for layer-0 embeddings)
    pred_ref[...] = _mxu(z, cw_ref[...]) + cb_ref[...]


def _pool_body(x_ref, ag_ref, ac_ref, w_ref, b_ref, z_ref, y_ref,
               s_ref, xnew_ref, anew_ref, yprob_ref,
               ent_s_ref, ent_y_ref, prox_ref,
               sparse_branch, transpose_adj):
    eps = jnp.float32(_EPS)

    # S = softmax(relu(GCNConv(X_old))); entropy from pre-softmax logits.
    S, ent_s = _row_softmax_ent(
        _gcn_core(x_ref, ag_ref, w_ref, b_ref, transpose_adj))
    s_ref[...] = S
    ent_s_ref[0, 0] = ent_s

    # X_new = S^T Z
    xnew_ref[...] = _mxu_ta(S, z_ref[...])

    # Y_new_prob = softmax(S^T Y_old)
    YP, ent_y = _row_softmax_ent(_mxu_ta(S, y_ref[...]))
    yprob_ref[...] = YP
    ent_y_ref[0, 0] = ent_y

    # coarsened adjacency
    Ac = ac_ref[...]
    if sparse_branch:
        # matches torch: tmp = spmm(edge_index, w, S); A_new = tmp.T @ S
        anew_ref[...] = _mxu_ta(_mxu(Ac, S), S)
    else:
        # A_new = S^T A_old S
        anew_ref[...] = _mxu(_mxu_ta(S, Ac), S)

    # proximity (link) loss; P = S S^T is produced in row-blocks, never whole.
    prox_ref[0, 0] = _prox_link_loss(s_ref, ac_ref, eps)


def _pool_kernel(x_ref, ag_ref, w_ref, b_ref, z_ref, y_ref, ac_ref,
                 s_ref, xnew_ref, anew_ref, yprob_ref,
                 ent_s_ref, ent_y_ref, prox_ref,
                 *, sparse_branch, transpose_adj):
    _pool_body(x_ref, ag_ref, ac_ref, w_ref, b_ref, z_ref, y_ref,
               s_ref, xnew_ref, anew_ref, yprob_ref,
               ent_s_ref, ent_y_ref, prox_ref,
               sparse_branch, transpose_adj)


def _pool_kernel_shared_adj(x_ref, a_ref, w_ref, b_ref, z_ref, y_ref,
                            s_ref, xnew_ref, anew_ref, yprob_ref,
                            ent_s_ref, ent_y_ref, prox_ref,
                            *, sparse_branch, transpose_adj):
    # layers > 0: GCN aggregation and A_new/prox terms share one adjacency ref,
    # so the (n_pool, n_pool) matrix is DMA'd and buffered only once.
    _pool_body(x_ref, a_ref, a_ref, w_ref, b_ref, z_ref, y_ref,
               s_ref, xnew_ref, anew_ref, yprob_ref,
               ent_s_ref, ent_y_ref, prox_ref,
               sparse_branch, transpose_adj)


# --------------------------- kernel wrappers ------------------------------- #
def gcn_emb(x, A, W, b, transpose_adj=False):
    n, hid = x.shape[0], W.shape[1]
    return pl.pallas_call(
        functools.partial(_gcn_emb_kernel, transpose_adj=transpose_adj),
        out_shape=jax.ShapeDtypeStruct((n, hid), jnp.float32),
        compiler_params=_COMPILER_PARAMS,
    )(x, A, W, b.reshape(1, -1))


def gcn_emb_cls(x, A, W, b, cls_W, cls_b, transpose_adj=False):
    n, hid = x.shape[0], W.shape[1]
    n_cls = cls_W.shape[1]
    return pl.pallas_call(
        functools.partial(_gcn_emb_cls_kernel, transpose_adj=transpose_adj),
        out_shape=(jax.ShapeDtypeStruct((n, hid), jnp.float32),
                   jax.ShapeDtypeStruct((n, n_cls), jnp.float32)),
        compiler_params=_COMPILER_PARAMS,
    )(x, A, W, b.reshape(1, -1), cls_W, cls_b.reshape(1, -1))


def _check_pool_vmem(n, n_pool, in_dim, hid, n_cls, shared_adj):
    """Single-block live-set estimate (f32 words); fail loudly before Mosaic does."""
    adj = (1 if shared_adj else 2) * n * n
    live = (adj
            + n * (in_dim + hid + n_cls + 4 * n_pool)          # inputs + S/exp temps
            + n_pool * (in_dim + hid + n_pool + n_cls)          # weights + outputs
            + min(n, 512) * n)                                  # prox P row-block
    need = 4 * live + (1 << 20)
    if need > _VMEM_LIMIT:
        raise ValueError(
            f"fused pool kernel needs ~{need >> 20} MiB VMEM but the limit is "
            f"{_VMEM_LIMIT >> 20} MiB; graph too large for the single-block "
            "design. TODO(synk): switch to the row-tiled grid path.")


def gcn_pooling_fused(X_old, A_gcn, W, b, Z, Y_old, A_coarse,
                      sparse_branch, transpose_adj=False, shared_adj=False):
    n, in_dim = X_old.shape
    n_pool = W.shape[1]
    hid = Z.shape[1]
    n_cls = Y_old.shape[1]
    _check_pool_vmem(n, n_pool, in_dim, hid, n_cls, shared_adj)

    out_shape = (
        jax.ShapeDtypeStruct((n, n_pool), jnp.float32),        # S
        jax.ShapeDtypeStruct((n_pool, hid), jnp.float32),      # X_new
        jax.ShapeDtypeStruct((n_pool, n_pool), jnp.float32),   # A_new
        jax.ShapeDtypeStruct((n_pool, n_cls), jnp.float32),    # Y_new_prob
        jax.ShapeDtypeStruct((1, 1), jnp.float32),             # entropy(S)
        jax.ShapeDtypeStruct((1, 1), jnp.float32),             # entropy(Y_new_prob)
        jax.ShapeDtypeStruct((1, 1), jnp.float32),             # proximity loss
    )
    out_specs = (_VMEM, _VMEM, _VMEM, _VMEM, _SMEM, _SMEM, _SMEM)

    if shared_adj:
        kern = functools.partial(_pool_kernel_shared_adj,
                                 sparse_branch=sparse_branch,
                                 transpose_adj=transpose_adj)
        operands = (X_old, A_gcn, W, b.reshape(1, -1), Z, Y_old)
    else:
        kern = functools.partial(_pool_kernel,
                                 sparse_branch=sparse_branch,
                                 transpose_adj=transpose_adj)
        operands = (X_old, A_gcn, W, b.reshape(1, -1), Z, Y_old, A_coarse)

    S, X_new, A_new, YP, ent_s, ent_y, prox = pl.pallas_call(
        kern, out_shape=out_shape, out_specs=out_specs,
        compiler_params=_COMPILER_PARAMS,
    )(*operands)
    return S, X_new, A_new, YP, ent_s[0, 0], ent_y[0, 0], prox[0, 0]


# --------------------------- plain JAX glue --------------------------------- #
def onehot_argmax(x, num_classes):
    return jax.nn.one_hot(jnp.argmax(x, axis=1), num_classes, dtype=jnp.float32)


def dense_gcn_adj_from_edges(edge_index, edge_weight, n):
    """Aggregation matrix A_d[dst, src] with add_remaining_self_loops semantics.

    Existing self-loop edges are dropped and every node gets exactly one unit
    self loop (the module always passes unit edge weights, for which this
    matches PyG's add_remaining_self_loops + to_dense exactly).
    """
    src, dst = edge_index[0], edge_index[1]
    off_w = jnp.where(src == dst, 0.0, edge_weight)
    A = jnp.zeros((n, n), jnp.float32).at[dst, src].add(off_w)
    return A + jnp.eye(n, dtype=jnp.float32)


def dense_from_edges(edge_index, edge_weight, n):
    """Plain sparse-matrix-as-dense A[src, dst] (no self-loops added)."""
    src, dst = edge_index[0], edge_index[1]
    return jnp.zeros((n, n), jnp.float32).at[src, dst].add(edge_weight)


def label_matching(S, Y_old, Y_new):
    # tiny matmuls -> XLA (pallas_call launch overhead >> MXU work here)
    n_old, n_new = S.shape
    lm_oh = onehot_argmax(Y_old @ Y_new.T, n_new)
    S_oh = onehot_argmax(S, n_new)
    return 1.0 - jnp.sum(lm_oh * S_oh) / n_old


def label_stable(S, Y_old, Y_new):
    m = Y_old.T @ S @ Y_new
    sm = jax.nn.softmax(m, axis=1)
    return 1.0 - jnp.mean(jnp.diag(sm))


# ----------------------------- parameters ---------------------------------- #
def _glorot(key, shape):
    limit = (6.0 / (shape[0] + shape[1])) ** 0.5
    return jax.random.uniform(key, shape, jnp.float32, -limit, limit)


def init_params(key, in_dim, hid_dim, num_classes, num_s, num_t,
                pool_ratio, num_layers):
    keys = iter(jax.random.split(key, 3 * num_layers + 1))
    emb_W, emb_b = [], []
    d = in_dim
    for _ in range(num_layers):
        emb_W.append(_glorot(next(keys), (d, hid_dim)))
        emb_b.append(jnp.zeros((hid_dim,), jnp.float32))
        d = hid_dim

    def make_pool(n0):
        Ws, bs = [], []
        d = in_dim
        n_pool = int(n0 * pool_ratio)
        for _ in range(num_layers):
            Ws.append(_glorot(next(keys), (d, n_pool)))
            bs.append(jnp.zeros((n_pool,), jnp.float32))
            d = hid_dim
            n_pool = int(n_pool * pool_ratio)
        return Ws, bs

    pool_src_W, pool_src_b = make_pool(num_s)
    pool_tgt_W, pool_tgt_b = make_pool(num_t)
    cls_W = _glorot(next(keys), (hid_dim, num_classes))
    cls_b = jnp.zeros((num_classes,), jnp.float32)
    return dict(emb_W=emb_W, emb_b=emb_b,
                pool_src_W=pool_src_W, pool_src_b=pool_src_b,
                pool_tgt_W=pool_tgt_W, pool_tgt_b=pool_tgt_b,
                cls_W=cls_W, cls_b=cls_b)


# ----------------------------- forward pass -------------------------------- #
def jhgda_forward(params, x_s, ei_s, y_s, x_t, ei_t, y_t, num_layers=3):
    n_s0, n_t0 = x_s.shape[0], x_t.shape[0]
    ew_s = jnp.ones((ei_s.shape[1],), jnp.float32)
    ew_t = jnp.ones((ei_t.shape[1],), jnp.float32)

    A_gcn_s0 = dense_gcn_adj_from_edges(ei_s, ew_s, n_s0)
    A_gcn_t0 = dense_gcn_adj_from_edges(ei_t, ew_t, n_t0)
    A_sp_s = dense_from_edges(ei_s, ew_s, n_s0)   # [src, dst]
    A_sp_t = dense_from_edges(ei_t, ew_t, n_t0)

    y_prob_s = y_s.astype(jnp.float32)
    y_prob_t = y_t.astype(jnp.float32)
    cur_x_s = x_s.astype(jnp.float32)
    cur_x_t = x_t.astype(jnp.float32)
    A_s_dense = None
    A_t_dense = None
    embeddings, pooling_loss, ys = [], [], []
    pred_s = pred_t = None

    for i in range(num_layers):
        if i == 0:
            # layer-0 aggregation matrix already in [dst, src] form
            Ag_s, Ag_t, tr = A_gcn_s0, A_gcn_t0, False
        else:
            # adj2coo(A) feeding GCNConv == dense GCN on A^T; every (i,i) slot
            # exists as an edge so add_remaining_self_loops adds nothing.
            # The transposed contraction happens on the MXU (dim-0 contract),
            # never as a materialised A.T.
            Ag_s, Ag_t, tr = A_s_dense, A_t_dense, True

        if i == 0:
            z_s, pred_s = gcn_emb_cls(cur_x_s, Ag_s, params['emb_W'][i],
                                      params['emb_b'][i], params['cls_W'],
                                      params['cls_b'], transpose_adj=tr)
            z_t, pred_t = gcn_emb_cls(cur_x_t, Ag_t, params['emb_W'][i],
                                      params['emb_b'][i], params['cls_W'],
                                      params['cls_b'], transpose_adj=tr)
        else:
            z_s = gcn_emb(cur_x_s, Ag_s, params['emb_W'][i],
                          params['emb_b'][i], transpose_adj=tr)
            z_t = gcn_emb(cur_x_t, Ag_t, params['emb_W'][i],
                          params['emb_b'][i], transpose_adj=tr)
        embeddings.append([z_s, z_t])

        sparse_branch = (i == 0)
        # layer 0: GCN adjacency (with self loops) != spmm adjacency -> 2 refs
        # layer >0: same coarsened adjacency for both -> shared-adj variant
        Ac_s = A_sp_s if sparse_branch else None
        Ac_t = A_sp_t if sparse_branch else None
        shared = not sparse_branch

        (S_s, x_new_s, A_s_new, yps_new, entS_s, entY_s, prox_s) = \
            gcn_pooling_fused(cur_x_s, Ag_s, params['pool_src_W'][i],
                              params['pool_src_b'][i], z_s, y_prob_s, Ac_s,
                              sparse_branch, transpose_adj=tr, shared_adj=shared)
        (S_t, x_new_t, A_t_new, ypt_new, entS_t, entY_t, prox_t) = \
            gcn_pooling_fused(cur_x_t, Ag_t, params['pool_tgt_W'][i],
                              params['pool_tgt_b'][i], z_t, y_prob_t, Ac_t,
                              sparse_branch, transpose_adj=tr, shared_adj=shared)

        n_class = y_prob_s.shape[1]
        y_new_s = onehot_argmax(yps_new, n_class)
        y_new_t = onehot_argmax(ypt_new, n_class)
        ys.append([y_new_s, y_new_t])

        pooling_loss.append({
            'ce': (entS_s + entS_t) / 2,
            'prox': (prox_s + prox_t) / 2,
            'cce': (entY_s + entY_t) / 2,
            'lm': (label_matching(S_s, y_prob_s, yps_new)
                   + label_matching(S_t, y_prob_t, ypt_new)) / 2,
            'ls': (label_stable(S_s, y_prob_s, yps_new)
                   + label_stable(S_t, y_prob_t, ypt_new)) / 2,
        })

        cur_x_s, cur_x_t = x_new_s, x_new_t
        A_s_dense, A_t_dense = A_s_new, A_t_new
        y_prob_s, y_prob_t = yps_new, ypt_new

    return embeddings, [pred_s, pred_t], pooling_loss, ys


# --------------------------------- main ------------------------------------ #
if __name__ == "__main__":
    key = jax.random.PRNGKey(0)
    (k_xs, k_xt, k_src_s, k_off_s, k_src_t, k_off_t,
     k_ys, k_yt, k_par) = jax.random.split(key, 9)

    in_dim, hid_dim, num_classes = 16, 32, 8
    num_s, num_t = 64, 64
    E_s, E_t = 192, 160
    pool_ratio = 0.5
    num_layers = 3

    x_s = jax.random.normal(k_xs, (num_s, in_dim), jnp.float32)
    x_t = jax.random.normal(k_xt, (num_t, in_dim), jnp.float32)

    src_s = jax.random.randint(k_src_s, (E_s,), 0, num_s)
    dst_s = (src_s + jax.random.randint(k_off_s, (E_s,), 1, num_s)) % num_s
    ei_s = jnp.stack([src_s, dst_s]).astype(jnp.int32)

    src_t = jax.random.randint(k_src_t, (E_t,), 0, num_t)
    dst_t = (src_t + jax.random.randint(k_off_t, (E_t,), 1, num_t)) % num_t
    ei_t = jnp.stack([src_t, dst_t]).astype(jnp.int32)

    y_s = jax.nn.one_hot(jax.random.randint(k_ys, (num_s,), 0, num_classes),
                         num_classes, dtype=jnp.float32)
    y_t = jax.nn.one_hot(jax.random.randint(k_yt, (num_t,), 0, num_classes),
                         num_classes, dtype=jnp.float32)

    params = init_params(k_par, in_dim, hid_dim, num_classes,
                         num_s, num_t, pool_ratio, num_layers)

    fwd = jax.jit(functools.partial(jhgda_forward, num_layers=num_layers))
    out = fwd(params, x_s, ei_s, y_s, x_t, ei_t, y_t)

    for leaf in jax.tree_util.tree_leaves(out):
        jax.block_until_ready(leaf)
    print("KERNEL_OK")
</pallas_src>

<mosaic_0001>
module attributes {stable_mosaic.version = 11 : i64} {
  func.func private @main(%arg0: i32) attributes {dimension_semantics = [#tpu.dimension_semantics<core_parallel>], iteration_bounds = array<i64: 2>, tpu.core_type = #tpu.core_type<sc_scalar_subcore>, window_params = []} {
    return
  }
}

module attributes {stable_mosaic.version = 11 : i64} {
  func.func private @main(%arg0: i32) attributes {dimension_semantics = [#tpu.dimension_semantics<core_parallel>], iteration_bounds = array<i64: 2>, tpu.core_type = #tpu.core_type<sc_scalar_subcore>, window_params = []} {
    return
  }
}

module attributes {stable_mosaic.version = 11 : i64} {
  func.func @_gcn_emb_cls_kernel(%arg0: memref<64x16xf32, #tpu.memory_space<vmem>>, %arg1: memref<64x64xf32, #tpu.memory_space<vmem>>, %arg2: memref<16x32xf32, #tpu.memory_space<vmem>>, %arg3: memref<1x32xf32, #tpu.memory_space<vmem>>, %arg4: memref<32x8xf32, #tpu.memory_space<vmem>>, %arg5: memref<1x8xf32, #tpu.memory_space<vmem>>, %arg6: memref<64x32xf32, #tpu.memory_space<vmem>>, %arg7: memref<64x8xf32, #tpu.memory_space<vmem>>) attributes {dimension_semantics = [], scalar_prefetch = 0 : i64, scratch_operands = 0 : i64, tpu.core_type = #tpu.core_type<tc>} {
    %c0 = arith.constant 0 : index
    %c0_0 = arith.constant 0 : index
    %0 = vector.load %arg1[%c0, %c0_0] : memref<64x64xf32, #tpu.memory_space<vmem>>, vector<64x64xf32>
    %c0_1 = arith.constant 0 : index
    %c0_2 = arith.constant 0 : index
    %1 = vector.load %arg0[%c0_1, %c0_2] : memref<64x16xf32, #tpu.memory_space<vmem>>, vector<64x16xf32>
    %c0_3 = arith.constant 0 : index
    %c0_4 = arith.constant 0 : index
    %2 = vector.load %arg2[%c0_3, %c0_4] : memref<16x32xf32, #tpu.memory_space<vmem>>, vector<16x32xf32>
    %3 = arith.truncf %1 : vector<64x16xf32> to vector<64x16xbf16>
    %4 = arith.truncf %2 : vector<16x32xf32> to vector<16x32xbf16>
    %cst = arith.constant dense<0.000000e+00> : vector<64x32xf32>
    %5 = tpu.matmul %3, %4, %cst {dimension_numbers = #tpu.dot_dimension_numbers<[1], [0], [0], [1], [0, 0, 1, 1], [], []>} : vector<64x16xbf16>, vector<16x32xbf16>, vector<64x32xf32> -> vector<64x32xf32>
    %cst_5 = arith.constant dense<0.000000e+00> : vector<64xf32>
    %6 = vector.multi_reduction <add>, %0, %cst_5 [1] : vector<64x64xf32> to vector<64xf32>
    %7 = vector.shape_cast %6 : vector<64xf32> to vector<64x1xf32>
    %cst_6 = arith.constant 0.000000e+00 : f32
    %8 = vector.broadcast %cst_6 : f32 to vector<64x1xf32>
    %9 = arith.cmpf ogt, %7, %8 : vector<64x1xf32>
    %10 = math.rsqrt %7 : vector<64x1xf32>
    %cst_7 = arith.constant 0.000000e+00 : f32
    %11 = vector.broadcast %cst_7 : f32 to vector<64x1xf32>
    %12 = arith.select %9, %10, %11 : vector<64x1xi1>, vector<64x1xf32>
    %13 = vector.broadcast %12 : vector<64x1xf32> to vector<64x32xf32>
    %14 = arith.mulf %13, %5 : vector<64x32xf32>
    %15 = arith.truncf %0 : vector<64x64xf32> to vector<64x64xbf16>
    %16 = arith.truncf %14 : vector<64x32xf32> to vector<64x32xbf16>
    %cst_8 = arith.constant dense<0.000000e+00> : vector<64x32xf32>
    %17 = tpu.matmul %15, %16, %cst_8 {dimension_numbers = #tpu.dot_dimension_numbers<[1], [0], [0], [1], [0, 0, 1, 1], [], []>} : vector<64x64xbf16>, vector<64x32xbf16>, vector<64x32xf32> -> vector<64x32xf32>
    %18 = vector.broadcast %12 : vector<64x1xf32> to vector<64x32xf32>
    %19 = arith.mulf %18, %17 : vector<64x32xf32>
    %c0_9 = arith.constant 0 : index
    %c0_10 = arith.constant 0 : index
    %20 = vector.load %arg3[%c0_9, %c0_10] : memref<1x32xf32, #tpu.memory_space<vmem>>, vector<1x32xf32>
    %21 = vector.broadcast %20 : vector<1x32xf32> to vector<64x32xf32>
    %22 = arith.addf %19, %21 : vector<64x32xf32>
    %cst_11 = arith.constant 0.000000e+00 : f32
    %23 = vector.broadcast %cst_11 : f32 to vector<64x32xf32>
    %24 = arith.maximumf %22, %23 : vector<64x32xf32>
    %c0_12 = arith.constant 0 : index
    %c0_13 = arith.constant 0 : index
    %25 = vector.load %arg6[%c0_12, %c0_13] : memref<64x32xf32, #tpu.memory_space<vmem>>, vector<64x32xf32>
    tpu.vector_store %arg6[%c0_12, %c0_13], %24 {strides = array<i32>} : memref<64x32xf32, #tpu.memory_space<vmem>>, vector<64x32xf32>,
    %c0_14 = arith.constant 0 : index
    %c0_15 = arith.constant 0 : index
    %26 = vector.load %arg4[%c0_14, %c0_15] : memref<32x8xf32, #tpu.memory_space<vmem>>, vector<32x8xf32>
    %27 = arith.truncf %24 : vector<64x32xf32> to vector<64x32xbf16>
    %28 = arith.truncf %26 : vector<32x8xf32> to vector<32x8xbf16>
    %cst_16 = arith.constant dense<0.000000e+00> : vector<64x8xf32>
    %29 = tpu.matmul %27, %28, %cst_16 {dimension_numbers = #tpu.dot_dimension_numbers<[1], [0], [0], [1], [0, 0, 1, 1], [], []>} : vector<64x32xbf16>, vector<32x8xbf16>, vector<64x8xf32> -> vector<64x8xf32>
    %c0_17 = arith.constant 0 : index
    %c0_18 = arith.constant 0 : index
    %30 = vector.load %arg5[%c0_17, %c0_18] : memref<1x8xf32, #tpu.memory_space<vmem>>, vector<1x8xf32>
    %31 = vector.broadcast %30 : vector<1x8xf32> to vector<64x8xf32>
    %32 = arith.addf %29, %31 : vector<64x8xf32>
    %c0_19 = arith.constant 0 : index
    %c0_20 = arith.constant 0 : index
    %33 = vector.load %arg7[%c0_19, %c0_20] : memref<64x8xf32, #tpu.memory_space<vmem>>, vector<64x8xf32>
    tpu.vector_store %arg7[%c0_19, %c0_20], %32 {strides = array<i32>} : memref<64x8xf32, #tpu.memory_space<vmem>>, vector<64x8xf32>,
    return
  }
}

module attributes {stable_mosaic.version = 11 : i64} {
  func.func @_pool_kernel(%arg0: memref<64x16xf32, #tpu.memory_space<vmem>>, %arg1: memref<64x64xf32, #tpu.memory_space<vmem>>, %arg2: memref<16x32xf32, #tpu.memory_space<vmem>>, %arg3: memref<1x32xf32, #tpu.memory_space<vmem>>, %arg4: memref<64x32xf32, #tpu.memory_space<vmem>>, %arg5: memref<64x8xf32, #tpu.memory_space<vmem>>, %arg6: memref<64x64xf32, #tpu.memory_space<vmem>>, %arg7: memref<64x32xf32, #tpu.memory_space<vmem>>, %arg8: memref<32x32xf32, #tpu.memory_space<vmem>>, %arg9: memref<32x32xf32, #tpu.memory_space<vmem>>, %arg10: memref<32x8xf32, #tpu.memory_space<vmem>>, %arg11: memref<1x1xf32, #tpu.memory_space<smem>>, %arg12: memref<1x1xf32, #tpu.memory_space<smem>>, %arg13: memref<1x1xf32, #tpu.memory_space<smem>>) attributes {dimension_semantics = [], scalar_prefetch = 0 : i64, scratch_operands = 0 : i64, tpu.core_type = #tpu.core_type<tc>} {
    %c0 = arith.constant 0 : index
    %c0_0 = arith.constant 0 : index
    %0 = vector.load %arg1[%c0, %c0_0] : memref<64x64xf32, #tpu.memory_space<vmem>>, vector<64x64xf32>
    %c0_1 = arith.constant 0 : index
    %c0_2 = arith.constant 0 : index
    %1 = vector.load %arg0[%c0_1, %c0_2] : memref<64x16xf32, #tpu.memory_space<vmem>>, vector<64x16xf32>
    %c0_3 = arith.constant 0 : index
    %c0_4 = arith.constant 0 : index
    %2 = vector.load %arg2[%c0_3, %c0_4] : memref<16x32xf32, #tpu.memory_space<vmem>>, vector<16x32xf32>
    %3 = arith.truncf %1 : vector<64x16xf32> to vector<64x16xbf16>
    %4 = arith.truncf %2 : vector<16x32xf32> to vector<16x32xbf16>
    %cst = arith.constant dense<0.000000e+00> : vector<64x32xf32>
    %5 = tpu.matmul %3, %4, %cst {dimension_numbers = #tpu.dot_dimension_numbers<[1], [0], [0], [1], [0, 0, 1, 1], [], []>} : vector<64x16xbf16>, vector<16x32xbf16>, vector<64x32xf32> -> vector<64x32xf32>
    %cst_5 = arith.constant dense<0.000000e+00> : vector<64xf32>
    %6 = vector.multi_reduction <add>, %0, %cst_5 [1] : vector<64x64xf32> to vector<64xf32>
    %7 = vector.shape_cast %6 : vector<64xf32> to vector<64x1xf32>
    %cst_6 = arith.constant 0.000000e+00 : f32
    %8 = vector.broadcast %cst_6 : f32 to vector<64x1xf32>
    %9 = arith.cmpf ogt, %7, %8 : vector<64x1xf32>
    %10 = math.rsqrt %7 : vector<64x1xf32>
    %cst_7 = arith.constant 0.000000e+00 : f32
    %11 = vector.broadcast %cst_7 : f32 to vector<64x1xf32>
    %12 = arith.select %9, %10, %11 : vector<64x1xi1>, vector<64x1xf32>
    %13 = vector.broadcast %12 : vector<64x1xf32> to vector<64x32xf32>
    %14 = arith.mulf %13, %5 : vector<64x32xf32>
    %15 = arith.truncf %0 : vector<64x64xf32> to vector<64x64xbf16>
    %16 = arith.truncf %14 : vector<64x32xf32> to vector<64x32xbf16>
    %cst_8 = arith.constant dense<0.000000e+00> : vector<64x32xf32>
    %17 = tpu.matmul %15, %16, %cst_8 {dimension_numbers = #tpu.dot_dimension_numbers<[1], [0], [0], [1], [0, 0, 1, 1], [], []>} : vector<64x64xbf16>, vector<64x32xbf16>, vector<64x32xf32> -> vector<64x32xf32>
    %18 = vector.broadcast %12 : vector<64x1xf32> to vector<64x32xf32>
    %19 = arith.mulf %18, %17 : vector<64x32xf32>
    %c0_9 = arith.constant 0 : index
    %c0_10 = arith.constant 0 : index
    %20 = vector.load %arg3[%c0_9, %c0_10] : memref<1x32xf32, #tpu.memory_space<vmem>>, vector<1x32xf32>
    %21 = vector.broadcast %20 : vector<1x32xf32> to vector<64x32xf32>
    %22 = arith.addf %19, %21 : vector<64x32xf32>
    %cst_11 = arith.constant 0.000000e+00 : f32
    %23 = vector.broadcast %cst_11 : f32 to vector<64x32xf32>
    %24 = arith.maximumf %22, %23 : vector<64x32xf32>
    %cst_12 = arith.constant dense<0xFF800000> : vector<64xf32>
    %25 = vector.multi_reduction <maximumf>, %24, %cst_12 [1] : vector<64x32xf32> to vector<64xf32>
    %26 = vector.shape_cast %25 : vector<64xf32> to vector<64x1xf32>
    %27 = vector.broadcast %26 : vector<64x1xf32> to vector<64x32xf32>
    %28 = arith.subf %24, %27 : vector<64x32xf32>
    %29 = math.exp %28 : vector<64x32xf32>
    %cst_13 = arith.constant dense<0.000000e+00> : vector<64xf32>
    %30 = vector.multi_reduction <add>, %29, %cst_13 [1] : vector<64x32xf32> to vector<64xf32>
    %31 = vector.shape_cast %30 : vector<64xf32> to vector<64x1xf32>
    %32 = vector.broadcast %31 : vector<64x1xf32> to vector<64x32xf32>
    %33 = arith.divf %29, %32 : vector<64x32xf32>
    %34 = math.log %31 : vector<64x1xf32>
    %35 = vector.broadcast %26 : vector<64x1xf32> to vector<64x32xf32>
    %36 = arith.subf %24, %35 : vector<64x32xf32>
    %37 = arith.mulf %33, %36 : vector<64x32xf32>
    %cst_14 = arith.constant dense<0.000000e+00> : vector<64xf32>
    %38 = vector.multi_reduction <add>, %37, %cst_14 [1] : vector<64x32xf32> to vector<64xf32>
    %39 = vector.shape_cast %38 : vector<64xf32> to vector<64x1xf32>
    %40 = arith.subf %34, %39 : vector<64x1xf32>
    %41 = vector.shape_cast %40 : vector<64x1xf32> to vector<1x64x1xf32>
    %cst_15 = arith.constant dense<0.000000e+00> : vector<1xf32>
    %42 = vector.multi_reduction <add>, %41, %cst_15 [1, 2] : vector<1x64x1xf32> to vector<1xf32>
    %43 = vector.shape_cast %42 : vector<1xf32> to vector<1x1x1xf32>
    %44 = vector.extract %43[0, 0, 0] : f32 from vector<1x1x1xf32>
    %cst_16 = arith.constant 6.400000e+01 : f32
    %45 = arith.divf %44, %cst_16 : f32
    %c0_17 = arith.constant 0 : index
    %c0_18 = arith.constant 0 : index
    %46 = vector.load %arg7[%c0_17, %c0_18] : memref<64x32xf32, #tpu.memory_space<vmem>>, vector<64x32xf32>
    tpu.vector_store %arg7[%c0_17, %c0_18], %33 {strides = array<i32>} : memref<64x32xf32, #tpu.memory_space<vmem>>, vector<64x32xf32>,
    %c0_19 = arith.constant 0 : index
    %c0_20 = arith.constant 0 : index
    %47 = memref.load %arg11[%c0_19, %c0_20] : memref<1x1xf32, #tpu.memory_space<smem>>
    memref.store %45, %arg11[%c0_19, %c0_20] : memref<1x1xf32, #tpu.memory_space<smem>>
    %c0_21 = arith.constant 0 : index
    %c0_22 = arith.constant 0 : index
    %48 = vector.load %arg4[%c0_21, %c0_22] : memref<64x32xf32, #tpu.memory_space<vmem>>, vector<64x32xf32>
    %49 = arith.truncf %33 : vector<64x32xf32> to vector<64x32xbf16>
    %50 = arith.truncf %48 : vector<64x32xf32> to vector<64x32xbf16>
    %cst_23 = arith.constant dense<0.000000e+00> : vector<32x32xf32>
    %51 = tpu.matmul %49, %50, %cst_23 {dimension_numbers = #tpu.dot_dimension_numbers<[0], [0], [1], [1], [0, 1, 1, 1], [], []>} : vector<64x32xbf16>, vector<64x32xbf16>, vector<32x32xf32> -> vector<32x32xf32>
    %c0_24 = arith.constant 0 : index
    %c0_25 = arith.constant 0 : index
    %52 = vector.load %arg8[%c0_24, %c0_25] : memref<32x32xf32, #tpu.memory_space<vmem>>, vector<32x32xf32>
    tpu.vector_store %arg8[%c0_24, %c0_25], %51 {strides = array<i32>} : memref<32x32xf32, #tpu.memory_space<vmem>>, vector<32x32xf32>,
    %c0_26 = arith.constant 0 : index
    %c0_27 = arith.constant 0 : index
    %53 = vector.load %arg5[%c0_26, %c0_27] : memref<64x8xf32, #tpu.memory_space<vmem>>, vector<64x8xf32>
    %54 = arith.truncf %33 : vector<64x32xf32> to vector<64x32xbf16>
    %55 = arith.truncf %53 : vector<64x8xf32> to vector<64x8xbf16>
    %cst_28 = arith.constant dense<0.000000e+00> : vector<32x8xf32>
    %56 = tpu.matmul %54, %55, %cst_28 {dimension_numbers = #tpu.dot_dimension_numbers<[0], [0], [1], [1], [0, 1, 1, 1], [], []>} : vector<64x32xbf16>, vector<64x8xbf16>, vector<32x8xf32> -> vector<32x8xf32>
    %cst_29 = arith.constant dense<0xFF800000> : vector<32xf32>
    %57 = vector.multi_reduction <maximumf>, %56, %cst_29 [1] : vector<32x8xf32> to vector<32xf32>
    %58 = vector.shape_cast %57 : vector<32xf32> to vector<32x1xf32>
    %59 = vector.broadcast %58 : vector<32x1xf32> to vector<32x8xf32>
    %60 = arith.subf %56, %59 : vector<32x8xf32>
    %61 = math.exp %60 : vector<32x8xf32>
    %cst_30 = arith.constant dense<0.000000e+00> : vector<32xf32>
    %62 = vector.multi_reduction <add>, %61, %cst_30 [1] : vector<32x8xf32> to vector<32xf32>
    %63 = vector.shape_cast %62 : vector<32xf32> to vector<32x1xf32>
    %64 = vector.broadcast %63 : vector<32x1xf32> to vector<32x8xf32>
    %65 = arith.divf %61, %64 : vector<32x8xf32>
    %66 = math.log %63 : vector<32x1xf32>
    %67 = vector.broadcast %58 : vector<32x1xf32> to vector<32x8xf32>
    %68 = arith.subf %56, %67 : vector<32x8xf32>
    %69 = arith.mulf %65, %68 : vector<32x8xf32>
    %cst_31 = arith.constant dense<0.000000e+00> : vector<32xf32>
    %70 = vector.multi_reduction <add>, %69, %cst_31 [1] : vector<32x8xf32> to vector<32xf32>
    %71 = vector.shape_cast %70 : vector<32xf32> to vector<32x1xf32>
    %72 = arith.subf %66, %71 : vector<32x1xf32>
    %73 = vector.shape_cast %72 : vector<32x1xf32> to vector<1x32x1xf32>
    %cst_32 = arith.constant dense<0.000000e+00> : vector<1xf32>
    %74 = vector.multi_reduction <add>, %73, %cst_32 [1, 2] : vector<1x32x1xf32> to vector<1xf32>
    %75 = vector.shape_cast %74 : vector<1xf32> to vector<1x1x1xf32>
    %76 = vector.extract %75[0, 0, 0] : f32 from vector<1x1x1xf32>
    %cst_33 = arith.constant 3.200000e+01 : f32
    %77 = arith.divf %76, %cst_33 : f32
    %c0_34 = arith.constant 0 : index
    %c0_35 = arith.constant 0 : index
    %78 = vector.load %arg10[%c0_34, %c0_35] : memref<32x8xf32, #tpu.memory_space<vmem>>, vector<32x8xf32>
    tpu.vector_store %arg10[%c0_34, %c0_35], %65 {strides = array<i32>} : memref<32x8xf32, #tpu.memory_space<vmem>>, vector<32x8xf32>,
    %c0_36 = arith.constant 0 : index
    %c0_37 = arith.constant 0 : index
    %79 = memref.load %arg12[%c0_36, %c0_37] : memref<1x1xf32, #tpu.memory_space<smem>>
    memref.store %77, %arg12[%c0_36, %c0_37] : memref<1x1xf32, #tpu.memory_space<smem>>
    %c0_38 = arith.constant 0 : index
    %c0_39 = arith.constant 0 : index
    %80 = vector.load %arg6[%c0_38, %c0_39] : memref<64x64xf32, #tpu.memory_space<vmem>>, vector<64x64xf32>
    %81 = arith.truncf %80 : vector<64x64xf32> to vector<64x64xbf16>
    %82 = arith.truncf %33 : vector<64x32xf32> to vector<64x32xbf16>
    %cst_40 = arith.constant dense<0.000000e+00> : vector<64x32xf32>
    %83 = tpu.matmul %81, %82, %cst_40 {dimension_numbers = #tpu.dot_dimension_numbers<[1], [0], [0], [1], [0, 0, 1, 1], [], []>} : vector<64x64xbf16>, vector<64x32xbf16>, vector<64x32xf32> -> vector<64x32xf32>
    %84 = arith.truncf %83 : vector<64x32xf32> to vector<64x32xbf16>
    %85 = arith.truncf %33 : vector<64x32xf32> to vector<64x32xbf16>
    %cst_41 = arith.constant dense<0.000000e+00> : vector<32x32xf32>
    %86 = tpu.matmul %84, %85, %cst_41 {dimension_numbers = #tpu.dot_dimension_numbers<[0], [0], [1], [1], [0, 1, 1, 1], [], []>} : vector<64x32xbf16>, vector<64x32xbf16>, vector<32x32xf32> -> vector<32x32xf32>
    %c0_42 = arith.constant 0 : index
    %c0_43 = arith.constant 0 : index
    %87 = vector.load %arg9[%c0_42, %c0_43] : memref<32x32xf32, #tpu.memory_space<vmem>>, vector<32x32xf32>
    tpu.vector_store %arg9[%c0_42, %c0_43], %86 {strides = array<i32>} : memref<32x32xf32, #tpu.memory_space<vmem>>, vector<32x32xf32>,
    %c0_44 = arith.constant 0 : index
    %c0_45 = arith.constant 0 : index
    %88 = vector.load %arg7[%c0_44, %c0_45] : memref<64x32xf32, #tpu.memory_space<vmem>>, vector<64x32xf32>
    %89 = arith.truncf %88 : vector<64x32xf32> to vector<64x32xbf16>
    %c0_46 = arith.constant 0 : index
    %c0_47 = arith.constant 0 : index
    %90 = vector.load %arg7[%c0_46, %c0_47] : memref<64x32xf32, #tpu.memory_space<vmem>>, vector<64x32xf32>
    %91 = arith.truncf %90 : vector<64x32xf32> to vector<64x32xbf16>
    %c0_48 = arith.constant 0 : index
    %c0_49 = arith.constant 0 : index
    %92 = vector.load %arg6[%c0_48, %c0_49] : memref<64x64xf32, #tpu.memory_space<vmem>>, vector<64x64xf32>
    %cst_50 = arith.constant dense<0.000000e+00> : vector<64x64xf32>
    %93 = tpu.matmul %91, %89, %cst_50 {dimension_numbers = #tpu.dot_dimension_numbers<[1], [1], [0], [0], [0, 0, 1, 0], [], []>} : vector<64x32xbf16>, vector<64x32xbf16>, vector<64x64xf32> -> vector<64x64xf32>
    %cst_51 = arith.constant 1.000000e+00 : f32
    %94 = vector.broadcast %cst_51 : f32 to vector<64x64xf32>
    %95 = arith.minimumf %93, %94 : vector<64x64xf32>
    %cst_52 = arith.constant 1.000000e-07 : f32
    %96 = vector.broadcast %cst_52 : f32 to vector<64x64xf32>
    %97 = arith.addf %95, %96 : vector<64x64xf32>
    %98 = math.log %97 : vector<64x64xf32>
    %cst_53 = arith.constant 1.000000e+00 : f32
    %99 = vector.broadcast %cst_53 : f32 to vector<64x64xf32>
    %100 = arith.subf %99, %95 : vector<64x64xf32>
    %cst_54 = arith.constant 1.000000e-07 : f32
    %101 = vector.broadcast %cst_54 : f32 to vector<64x64xf32>
    %102 = arith.addf %100, %101 : vector<64x64xf32>
    %103 = math.log %102 : vector<64x64xf32>
    %104 = arith.mulf %92, %98 : vector<64x64xf32>
    %105 = vector.shape_cast %104 : vector<64x64xf32> to vector<1x64x64xf32>
    %cst_55 = arith.constant dense<0.000000e+00> : vector<1xf32>
    %106 = vector.multi_reduction <add>, %105, %cst_55 [1, 2] : vector<1x64x64xf32> to vector<1xf32>
    %107 = vector.shape_cast %106 : vector<1xf32> to vector<1x1x1xf32>
    %108 = vector.extract %107[0, 0, 0] : f32 from vector<1x1x1xf32>
    %cst_56 = arith.constant 0.000000e+00 : f32
    %109 = arith.subf %cst_56, %108 : f32
    %110 = vector.shape_cast %103 : vector<64x64xf32> to vector<1x64x64xf32>
    %cst_57 = arith.constant dense<0.000000e+00> : vector<1xf32>
    %111 = vector.multi_reduction <add>, %110, %cst_57 [1, 2] : vector<1x64x64xf32> to vector<1xf32>
    %112 = vector.shape_cast %111 : vector<1xf32> to vector<1x1x1xf32>
    %113 = vector.extract %112[0, 0, 0] : f32 from vector<1x1x1xf32>
    %114 = arith.subf %109, %113 : f32
    %115 = arith.mulf %92, %103 : vector<64x64xf32>
    %116 = vector.shape_cast %115 : vector<64x64xf32> to vector<1x64x64xf32>
    %cst_58 = arith.constant dense<0.000000e+00> : vector<1xf32>
    %117 = vector.multi_reduction <add>, %116, %cst_58 [1, 2] : vector<1x64x64xf32> to vector<1xf32>
    %118 = vector.shape_cast %117 : vector<1xf32> to vector<1x1x1xf32>
    %119 = vector.extract %118[0, 0, 0] : f32 from vector<1x1x1xf32>
    %120 = arith.addf %114, %119 : f32
    %cst_59 = arith.constant 4.096000e+03 : f32
    %121 = arith.divf %120, %cst_59 : f32
    %c0_60 = arith.constant 0 : index
    %c0_61 = arith.constant 0 : index
    %122 = memref.load %arg13[%c0_60, %c0_61] : memref<1x1xf32, #tpu.memory_space<smem>>
    memref.store %121, %arg13[%c0_60, %c0_61] : memref<1x1xf32, #tpu.memory_space<smem>>
    return
  }
}

module attributes {stable_mosaic.version = 11 : i64} {
  func.func @_gcn_emb_kernel(%arg0: memref<32x32xf32, #tpu.memory_space<vmem>>, %arg1: memref<32x32xf32, #tpu.memory_space<vmem>>, %arg2: memref<32x32xf32, #tpu.memory_space<vmem>>, %arg3: memref<1x32xf32, #tpu.memory_space<vmem>>, %arg4: memref<32x32xf32, #tpu.memory_space<vmem>>) attributes {dimension_semantics = [], scalar_prefetch = 0 : i64, scratch_operands = 0 : i64, tpu.core_type = #tpu.core_type<tc>} {
    %c0 = arith.constant 0 : index
    %c0_0 = arith.constant 0 : index
    %0 = vector.load %arg1[%c0, %c0_0] : memref<32x32xf32, #tpu.memory_space<vmem>>, vector<32x32xf32>
    %c0_1 = arith.constant 0 : index
    %c0_2 = arith.constant 0 : index
    %1 = vector.load %arg0[%c0_1, %c0_2] : memref<32x32xf32, #tpu.memory_space<vmem>>, vector<32x32xf32>
    %c0_3 = arith.constant 0 : index
    %c0_4 = arith.constant 0 : index
    %2 = vector.load %arg2[%c0_3, %c0_4] : memref<32x32xf32, #tpu.memory_space<vmem>>, vector<32x32xf32>
    %3 = arith.truncf %1 : vector<32x32xf32> to vector<32x32xbf16>
    %4 = arith.truncf %2 : vector<32x32xf32> to vector<32x32xbf16>
    %cst = arith.constant dense<0.000000e+00> : vector<32x32xf32>
    %5 = tpu.matmul %3, %4, %cst {dimension_numbers = #tpu.dot_dimension_numbers<[1], [0], [0], [1], [0, 0, 1, 1], [], []>} : vector<32x32xbf16>, vector<32x32xbf16>, vector<32x32xf32> -> vector<32x32xf32>
    %cst_5 = arith.constant 1.000000e+00 : f32
    %6 = vector.broadcast %cst_5 : f32 to vector<32x1xf32>
    %cst_6 = arith.constant dense<0.000000e+00> : vector<32x1xf32>
    %7 = tpu.matmul %0, %6, %cst_6 {dimension_numbers = #tpu.dot_dimension_numbers<[0], [0], [1], [1], [0, 1, 1, 1], [], []>} : vector<32x32xf32>, vector<32x1xf32>, vector<32x1xf32> -> vector<32x1xf32>
    %cst_7 = arith.constant 0.000000e+00 : f32
    %8 = vector.broadcast %cst_7 : f32 to vector<32x1xf32>
    %9 = arith.cmpf ogt, %7, %8 : vector<32x1xf32>
    %10 = math.rsqrt %7 : vector<32x1xf32>
    %cst_8 = arith.constant 0.000000e+00 : f32
    %11 = vector.broadcast %cst_8 : f32 to vector<32x1xf32>
    %12 = arith.select %9, %10, %11 : vector<32x1xi1>, vector<32x1xf32>
    %13 = vector.broadcast %12 : vector<32x1xf32> to vector<32x32xf32>
    %14 = arith.mulf %13, %5 : vector<32x32xf32>
    %15 = arith.truncf %0 : vector<32x32xf32> to vector<32x32xbf16>
    %16 = arith.truncf %14 : vector<32x32xf32> to vector<32x32xbf16>
    %cst_9 = arith.constant dense<0.000000e+00> : vector<32x32xf32>
    %17 = tpu.matmul %15, %16, %cst_9 {dimension_numbers = #tpu.dot_dimension_numbers<[0], [0], [1], [1], [0, 1, 1, 1], [], []>} : vector<32x32xbf16>, vector<32x32xbf16>, vector<32x32xf32> -> vector<32x32xf32>
    %18 = vector.broadcast %12 : vector<32x1xf32> to vector<32x32xf32>
    %19 = arith.mulf %18, %17 : vector<32x32xf32>
    %c0_10 = arith.constant 0 : index
    %c0_11 = arith.constant 0 : index
    %20 = vector.load %arg3[%c0_10, %c0_11] : memref<1x32xf32, #tpu.memory_space<vmem>>, vector<1x32xf32>
    %21 = vector.broadcast %20 : vector<1x32xf32> to vector<32x32xf32>
    %22 = arith.addf %19, %21 : vector<32x32xf32>
    %cst_12 = arith.constant 0.000000e+00 : f32
    %23 = vector.broadcast %cst_12 : f32 to vector<32x32xf32>
    %24 = arith.maximumf %22, %23 : vector<32x32xf32>
    %c0_13 = arith.constant 0 : index
    %c0_14 = arith.constant 0 : index
    %25 = vector.load %arg4[%c0_13, %c0_14] : memref<32x32xf32, #tpu.memory_space<vmem>>, vector<32x32xf32>
    tpu.vector_store %arg4[%c0_13, %c0_14], %24 {strides = array<i32>} : memref<32x32xf32, #tpu.memory_space<vmem>>, vector<32x32xf32>,
    return
  }
}

module attributes {stable_mosaic.version = 11 : i64} {
  func.func @_pool_kernel_shared_adj(%arg0: memref<32x32xf32, #tpu.memory_space<vmem>>, %arg1: memref<32x32xf32, #tpu.memory_space<vmem>>, %arg2: memref<32x16xf32, #tpu.memory_space<vmem>>, %arg3: memref<1x16xf32, #tpu.memory_space<vmem>>, %arg4: memref<32x32xf32, #tpu.memory_space<vmem>>, %arg5: memref<32x8xf32, #tpu.memory_space<vmem>>, %arg6: memref<32x16xf32, #tpu.memory_space<vmem>>, %arg7: memref<16x32xf32, #tpu.memory_space<vmem>>, %arg8: memref<16x16xf32, #tpu.memory_space<vmem>>, %arg9: memref<16x8xf32, #tpu.memory_space<vmem>>, %arg10: memref<1x1xf32, #tpu.memory_space<smem>>, %arg11: memref<1x1xf32, #tpu.memory_space<smem>>, %arg12: memref<1x1xf32, #tpu.memory_space<smem>>) attributes {dimension_semantics = [], scalar_prefetch = 0 : i64, scratch_operands = 0 : i64, tpu.core_type = #tpu.core_type<tc>} {
    %c0 = arith.constant 0 : index
    %c0_0 = arith.constant 0 : index
    %0 = vector.load %arg1[%c0, %c0_0] : memref<32x32xf32, #tpu.memory_space<vmem>>, vector<32x32xf32>
    %c0_1 = arith.constant 0 : index
    %c0_2 = arith.constant 0 : index
    %1 = vector.load %arg0[%c0_1, %c0_2] : memref<32x32xf32, #tpu.memory_space<vmem>>, vector<32x32xf32>
    %c0_3 = arith.constant 0 : index
    %c0_4 = arith.constant 0 : index
    %2 = vector.load %arg2[%c0_3, %c0_4] : memref<32x16xf32, #tpu.memory_space<vmem>>, vector<32x16xf32>
    %3 = arith.truncf %1 : vector<32x32xf32> to vector<32x32xbf16>
    %4 = arith.truncf %2 : vector<32x16xf32> to vector<32x16xbf16>
    %cst = arith.constant dense<0.000000e+00> : vector<32x16xf32>
    %5 = tpu.matmul %3, %4, %cst {dimension_numbers = #tpu.dot_dimension_numbers<[1], [0], [0], [1], [0, 0, 1, 1], [], []>} : vector<32x32xbf16>, vector<32x16xbf16>, vector<32x16xf32> -> vector<32x16xf32>
    %cst_5 = arith.constant 1.000000e+00 : f32
    %6 = vector.broadcast %cst_5 : f32 to vector<32x1xf32>
    %cst_6 = arith.constant dense<0.000000e+00> : vector<32x1xf32>
    %7 = tpu.matmul %0, %6, %cst_6 {dimension_numbers = #tpu.dot_dimension_numbers<[0], [0], [1], [1], [0, 1, 1, 1], [], []>} : vector<32x32xf32>, vector<32x1xf32>, vector<32x1xf32> -> vector<32x1xf32>
    %cst_7 = arith.constant 0.000000e+00 : f32
    %8 = vector.broadcast %cst_7 : f32 to vector<32x1xf32>
    %9 = arith.cmpf ogt, %7, %8 : vector<32x1xf32>
    %10 = math.rsqrt %7 : vector<32x1xf32>
    %cst_8 = arith.constant 0.000000e+00 : f32
    %11 = vector.broadcast %cst_8 : f32 to vector<32x1xf32>
    %12 = arith.select %9, %10, %11 : vector<32x1xi1>, vector<32x1xf32>
    %13 = vector.broadcast %12 : vector<32x1xf32> to vector<32x16xf32>
    %14 = arith.mulf %13, %5 : vector<32x16xf32>
    %15 = arith.truncf %0 : vector<32x32xf32> to vector<32x32xbf16>
    %16 = arith.truncf %14 : vector<32x16xf32> to vector<32x16xbf16>
    %cst_9 = arith.constant dense<0.000000e+00> : vector<32x16xf32>
    %17 = tpu.matmul %15, %16, %cst_9 {dimension_numbers = #tpu.dot_dimension_numbers<[0], [0], [1], [1], [0, 1, 1, 1], [], []>} : vector<32x32xbf16>, vector<32x16xbf16>, vector<32x16xf32> -> vector<32x16xf32>
    %18 = vector.broadcast %12 : vector<32x1xf32> to vector<32x16xf32>
    %19 = arith.mulf %18, %17 : vector<32x16xf32>
    %c0_10 = arith.constant 0 : index
    %c0_11 = arith.constant 0 : index
    %20 = vector.load %arg3[%c0_10, %c0_11] : memref<1x16xf32, #tpu.memory_space<vmem>>, vector<1x16xf32>
    %21 = vector.broadcast %20 : vector<1x16xf32> to vector<32x16xf32>
    %22 = arith.addf %19, %21 : vector<32x16xf32>
    %cst_12 = arith.constant 0.000000e+00 : f32
    %23 = vector.broadcast %cst_12 : f32 to vector<32x16xf32>
    %24 = arith.maximumf %22, %23 : vector<32x16xf32>
    %cst_13 = arith.constant dense<0xFF800000> : vector<32xf32>
    %25 = vector.multi_reduction <maximumf>, %24, %cst_13 [1] : vector<32x16xf32> to vector<32xf32>
    %26 = vector.shape_cast %25 : vector<32xf32> to vector<32x1xf32>
    %27 = vector.broadcast %26 : vector<32x1xf32> to vector<32x16xf32>
    %28 = arith.subf %24, %27 : vector<32x16xf32>
    %29 = math.exp %28 : vector<32x16xf32>
    %cst_14 = arith.constant dense<0.000000e+00> : vector<32xf32>
    %30 = vector.multi_reduction <add>, %29, %cst_14 [1] : vector<32x16xf32> to vector<32xf32>
    %31 = vector.shape_cast %30 : vector<32xf32> to vector<32x1xf32>
    %32 = vector.broadcast %31 : vector<32x1xf32> to vector<32x16xf32>
    %33 = arith.divf %29, %32 : vector<32x16xf32>
    %34 = math.log %31 : vector<32x1xf32>
    %35 = vector.broadcast %26 : vector<32x1xf32> to vector<32x16xf32>
    %36 = arith.subf %24, %35 : vector<32x16xf32>
    %37 = arith.mulf %33, %36 : vector<32x16xf32>
    %cst_15 = arith.constant dense<0.000000e+00> : vector<32xf32>
    %38 = vector.multi_reduction <add>, %37, %cst_15 [1] : vector<32x16xf32> to vector<32xf32>
    %39 = vector.shape_cast %38 : vector<32xf32> to vector<32x1xf32>
    %40 = arith.subf %34, %39 : vector<32x1xf32>
    %41 = vector.shape_cast %40 : vector<32x1xf32> to vector<1x32x1xf32>
    %cst_16 = arith.constant dense<0.000000e+00> : vector<1xf32>
    %42 = vector.multi_reduction <add>, %41, %cst_16 [1, 2] : vector<1x32x1xf32> to vector<1xf32>
    %43 = vector.shape_cast %42 : vector<1xf32> to vector<1x1x1xf32>
    %44 = vector.extract %43[0, 0, 0] : f32 from vector<1x1x1xf32>
    %cst_17 = arith.constant 3.200000e+01 : f32
    %45 = arith.divf %44, %cst_17 : f32
    %c0_18 = arith.constant 0 : index
    %c0_19 = arith.constant 0 : index
    %46 = vector.load %arg6[%c0_18, %c0_19] : memref<32x16xf32, #tpu.memory_space<vmem>>, vector<32x16xf32>
    tpu.vector_store %arg6[%c0_18, %c0_19], %33 {strides = array<i32>} : memref<32x16xf32, #tpu.memory_space<vmem>>, vector<32x16xf32>,
    %c0_20 = arith.constant 0 : index
    %c0_21 = arith.constant 0 : index
    %47 = memref.load %arg10[%c0_20, %c0_21] : memref<1x1xf32, #tpu.memory_space<smem>>
    memref.store %45, %arg10[%c0_20, %c0_21] : memref<1x1xf32, #tpu.memory_space<smem>>
    %c0_22 = arith.constant 0 : index
    %c0_23 = arith.constant 0 : index
    %48 = vector.load %arg4[%c0_22, %c0_23] : memref<32x32xf32, #tpu.memory_space<vmem>>, vector<32x32xf32>
    %49 = arith.truncf %33 : vector<32x16xf32> to vector<32x16xbf16>
    %50 = arith.truncf %48 : vector<32x32xf32> to vector<32x32xbf16>
    %cst_24 = arith.constant dense<0.000000e+00> : vector<16x32xf32>
    %51 = tpu.matmul %49, %50, %cst_24 {dimension_numbers = #tpu.dot_dimension_numbers<[0], [0], [1], [1], [0, 1, 1, 1], [], []>} : vector<32x16xbf16>, vector<32x32xbf16>, vector<16x32xf32> -> vector<16x32xf32>
    %c0_25 = arith.constant 0 : index
    %c0_26 = arith.constant 0 : index
    %52 = vector.load %arg7[%c0_25, %c0_26] : memref<16x32xf32, #tpu.memory_space<vmem>>, vector<16x32xf32>
    tpu.vector_store %arg7[%c0_25, %c0_26], %51 {strides = array<i32>} : memref<16x32xf32, #tpu.memory_space<vmem>>, vector<16x32xf32>,
    %c0_27 = arith.constant 0 : index
    %c0_28 = arith.constant 0 : index
    %53 = vector.load %arg5[%c0_27, %c0_28] : memref<32x8xf32, #tpu.memory_space<vmem>>, vector<32x8xf32>
    %54 = arith.truncf %33 : vector<32x16xf32> to vector<32x16xbf16>
    %55 = arith.truncf %53 : vector<32x8xf32> to vector<32x8xbf16>
    %cst_29 = arith.constant dense<0.000000e+00> : vector<16x8xf32>
    %56 = tpu.matmul %54, %55, %cst_29 {dimension_numbers = #tpu.dot_dimension_numbers<[0], [0], [1], [1], [0, 1, 1, 1], [], []>} : vector<32x16xbf16>, vector<32x8xbf16>, vector<16x8xf32> -> vector<16x8xf32>
    %cst_30 = arith.constant dense<0xFF800000> : vector<16xf32>
    %57 = vector.multi_reduction <maximumf>, %56, %cst_30 [1] : vector<16x8xf32> to vector<16xf32>
    %58 = vector.shape_cast %57 : vector<16xf32> to vector<16x1xf32>
    %59 = vector.broadcast %58 : vector<16x1xf32> to vector<16x8xf32>
    %60 = arith.subf %56, %59 : vector<16x8xf32>
    %61 = math.exp %60 : vector<16x8xf32>
    %cst_31 = arith.constant dense<0.000000e+00> : vector<16xf32>
    %62 = vector.multi_reduction <add>, %61, %cst_31 [1] : vector<16x8xf32> to vector<16xf32>
    %63 = vector.shape_cast %62 : vector<16xf32> to vector<16x1xf32>
    %64 = vector.broadcast %63 : vector<16x1xf32> to vector<16x8xf32>
    %65 = arith.divf %61, %64 : vector<16x8xf32>
    %66 = math.log %63 : vector<16x1xf32>
    %67 = vector.broadcast %58 : vector<16x1xf32> to vector<16x8xf32>
    %68 = arith.subf %56, %67 : vector<16x8xf32>
    %69 = arith.mulf %65, %68 : vector<16x8xf32>
    %cst_32 = arith.constant dense<0.000000e+00> : vector<16xf32>
    %70 = vector.multi_reduction <add>, %69, %cst_32 [1] : vector<16x8xf32> to vector<16xf32>
    %71 = vector.shape_cast %70 : vector<16xf32> to vector<16x1xf32>
    %72 = arith.subf %66, %71 : vector<16x1xf32>
    %73 = vector.shape_cast %72 : vector<16x1xf32> to vector<1x16x1xf32>
    %cst_33 = arith.constant dense<0.000000e+00> : vector<1xf32>
    %74 = vector.multi_reduction <add>, %73, %cst_33 [1, 2] : vector<1x16x1xf32> to vector<1xf32>
    %75 = vector.shape_cast %74 : vector<1xf32> to vector<1x1x1xf32>
    %76 = vector.extract %75[0, 0, 0] : f32 from vector<1x1x1xf32>
    %cst_34 = arith.constant 1.600000e+01 : f32
    %77 = arith.divf %76, %cst_34 : f32
    %c0_35 = arith.constant 0 : index
    %c0_36 = arith.constant 0 : index
    %78 = vector.load %arg9[%c0_35, %c0_36] : memref<16x8xf32, #tpu.memory_space<vmem>>, vector<16x8xf32>
    tpu.vector_store %arg9[%c0_35, %c0_36], %65 {strides = array<i32>} : memref<16x8xf32, #tpu.memory_space<vmem>>, vector<16x8xf32>,
    %c0_37 = arith.constant 0 : index
    %c0_38 = arith.constant 0 : index
    %79 = memref.load %arg11[%c0_37, %c0_38] : memref<1x1xf32, #tpu.memory_space<smem>>
    memref.store %77, %arg11[%c0_37, %c0_38] : memref<1x1xf32, #tpu.memory_space<smem>>
    %c0_39 = arith.constant 0 : index
    %c0_40 = arith.constant 0 : index
    %80 = vector.load %arg1[%c0_39, %c0_40] : memref<32x32xf32, #tpu.memory_space<vmem>>, vector<32x32xf32>
    %81 = arith.truncf %33 : vector<32x16xf32> to vector<32x16xbf16>
    %82 = arith.truncf %80 : vector<32x32xf32> to vector<32x32xbf16>
    %cst_41 = arith.constant dense<0.000000e+00> : vector<16x32xf32>
    %83 = tpu.matmul %81, %82, %cst_41 {dimension_numbers = #tpu.dot_dimension_numbers<[0], [0], [1], [1], [0, 1, 1, 1], [], []>} : vector<32x16xbf16>, vector<32x32xbf16>, vector<16x32xf32> -> vector<16x32xf32>
    %84 = arith.truncf %83 : vector<16x32xf32> to vector<16x32xbf16>
    %85 = arith.truncf %33 : vector<32x16xf32> to vector<32x16xbf16>
    %cst_42 = arith.constant dense<0.000000e+00> : vector<16x16xf32>
    %86 = tpu.matmul %84, %85, %cst_42 {dimension_numbers = #tpu.dot_dimension_numbers<[1], [0], [0], [1], [0, 0, 1, 1], [], []>} : vector<16x32xbf16>, vector<32x16xbf16>, vector<16x16xf32> -> vector<16x16xf32>
    %c0_43 = arith.constant 0 : index
    %c0_44 = arith.constant 0 : index
    %87 = vector.load %arg8[%c0_43, %c0_44] : memref<16x16xf32, #tpu.memory_space<vmem>>, vector<16x16xf32>
    tpu.vector_store %arg8[%c0_43, %c0_44], %86 {strides = array<i32>} : memref<16x16xf32, #tpu.memory_space<vmem>>, vector<16x16xf32>,
    %c0_45 = arith.constant 0 : index
    %c0_46 = arith.constant 0 : index
    %88 = vector.load %arg6[%c0_45, %c0_46] : memref<32x16xf32, #tpu.memory_space<vmem>>, vector<32x16xf32>
    %89 = arith.truncf %88 : vector<32x16xf32> to vector<32x16xbf16>
    %c0_47 = arith.constant 0 : index
    %c0_48 = arith.constant 0 : index
    %90 = vector.load %arg6[%c0_47, %c0_48] : memref<32x16xf32, #tpu.memory_space<vmem>>, vector<32x16xf32>
    %91 = arith.truncf %90 : vector<32x16xf32> to vector<32x16xbf16>
    %c0_49 = arith.constant 0 : index
    %c0_50 = arith.constant 0 : index
    %92 = vector.load %arg1[%c0_49, %c0_50] : memref<32x32xf32, #tpu.memory_space<vmem>>, vector<32x32xf32>
    %cst_51 = arith.constant dense<0.000000e+00> : vector<32x32xf32>
    %93 = tpu.matmul %91, %89, %cst_51 {dimension_numbers = #tpu.dot_dimension_numbers<[1], [1], [0], [0], [0, 0, 1, 0], [], []>} : vector<32x16xbf16>, vector<32x16xbf16>, vector<32x32xf32> -> vector<32x32xf32>
    %cst_52 = arith.constant 1.000000e+00 : f32
    %94 = vector.broadcast %cst_52 : f32 to vector<32x32xf32>
    %95 = arith.minimumf %93, %94 : vector<32x32xf32>
    %cst_53 = arith.constant 1.000000e-07 : f32
    %96 = vector.broadcast %cst_53 : f32 to vector<32x32xf32>
    %97 = arith.addf %95, %96 : vector<32x32xf32>
    %98 = math.log %97 : vector<32x32xf32>
    %cst_54 = arith.constant 1.000000e+00 : f32
    %99 = vector.broadcast %cst_54 : f32 to vector<32x32xf32>
    %100 = arith.subf %99, %95 : vector<32x32xf32>
    %cst_55 = arith.constant 1.000000e-07 : f32
    %101 = vector.broadcast %cst_55 : f32 to vector<32x32xf32>
    %102 = arith.addf %100, %101 : vector<32x32xf32>
    %103 = math.log %102 : vector<32x32xf32>
    %104 = arith.mulf %92, %98 : vector<32x32xf32>
    %105 = vector.shape_cast %104 : vector<32x32xf32> to vector<1x32x32xf32>
    %cst_56 = arith.constant dense<0.000000e+00> : vector<1xf32>
    %106 = vector.multi_reduction <add>, %105, %cst_56 [1, 2] : vector<1x32x32xf32> to vector<1xf32>
    %107 = vector.shape_cast %106 : vector<1xf32> to vector<1x1x1xf32>
    %108 = vector.extract %107[0, 0, 0] : f32 from vector<1x1x1xf32>
    %cst_57 = arith.constant 0.000000e+00 : f32
    %109 = arith.subf %cst_57, %108 : f32
    %110 = vector.shape_cast %103 : vector<32x32xf32> to vector<1x32x32xf32>
    %cst_58 = arith.constant dense<0.000000e+00> : vector<1xf32>
    %111 = vector.multi_reduction <add>, %110, %cst_58 [1, 2] : vector<1x32x32xf32> to vector<1xf32>
    %112 = vector.shape_cast %111 : vector<1xf32> to vector<1x1x1xf32>
    %113 = vector.extract %112[0, 0, 0] : f32 from vector<1x1x1xf32>
    %114 = arith.subf %109, %113 : f32
    %115 = arith.mulf %92, %103 : vector<32x32xf32>
    %116 = vector.shape_cast %115 : vector<32x32xf32> to vector<1x32x32xf32>
    %cst_59 = arith.constant dense<0.000000e+00> : vector<1xf32>
    %117 = vector.multi_reduction <add>, %116, %cst_59 [1, 2] : vector<1x32x32xf32> to vector<1xf32>
    %118 = vector.shape_cast %117 : vector<1xf32> to vector<1x1x1xf32>
    %119 = vector.extract %118[0, 0, 0] : f32 from vector<1x1x1xf32>
    %120 = arith.addf %114, %119 : f32
    %cst_60 = arith.constant 1.024000e+03 : f32
    %121 = arith.divf %120, %cst_60 : f32
    %c0_61 = arith.constant 0 : index
    %c0_62 = arith.constant 0 : index
    %122 = memref.load %arg12[%c0_61, %c0_62] : memref<1x1xf32, #tpu.memory_space<smem>>
    memref.store %121, %arg12[%c0_61, %c0_62] : memref<1x1xf32, #tpu.memory_space<smem>>
    return
  }
}

module attributes {stable_mosaic.version = 11 : i64} {
  func.func @_pool_kernel_shared_adj(%arg0: memref<16x32xf32, #tpu.memory_space<vmem>>, %arg1: memref<16x16xf32, #tpu.memory_space<vmem>>, %arg2: memref<32x8xf32, #tpu.memory_space<vmem>>, %arg3: memref<1x8xf32, #tpu.memory_space<vmem>>, %arg4: memref<16x32xf32, #tpu.memory_space<vmem>>, %arg5: memref<16x8xf32, #tpu.memory_space<vmem>>, %arg6: memref<16x8xf32, #tpu.memory_space<vmem>>, %arg7: memref<8x32xf32, #tpu.memory_space<vmem>>, %arg8: memref<8x8xf32, #tpu.memory_space<vmem>>, %arg9: memref<8x8xf32, #tpu.memory_space<vmem>>, %arg10: memref<1x1xf32, #tpu.memory_space<smem>>, %arg11: memref<1x1xf32, #tpu.memory_space<smem>>, %arg12: memref<1x1xf32, #tpu.memory_space<smem>>) attributes {dimension_semantics = [], scalar_prefetch = 0 : i64, scratch_operands = 0 : i64, tpu.core_type = #tpu.core_type<tc>} {
    %c0 = arith.constant 0 : index
    %c0_0 = arith.constant 0 : index
    %0 = vector.load %arg1[%c0, %c0_0] : memref<16x16xf32, #tpu.memory_space<vmem>>, vector<16x16xf32>
    %c0_1 = arith.constant 0 : index
    %c0_2 = arith.constant 0 : index
    %1 = vector.load %arg0[%c0_1, %c0_2] : memref<16x32xf32, #tpu.memory_space<vmem>>, vector<16x32xf32>
    %c0_3 = arith.constant 0 : index
    %c0_4 = arith.constant 0 : index
    %2 = vector.load %arg2[%c0_3, %c0_4] : memref<32x8xf32, #tpu.memory_space<vmem>>, vector<32x8xf32>
    %3 = arith.truncf %1 : vector<16x32xf32> to vector<16x32xbf16>
    %4 = arith.truncf %2 : vector<32x8xf32> to vector<32x8xbf16>
    %cst = arith.constant dense<0.000000e+00> : vector<16x8xf32>
    %5 = tpu.matmul %3, %4, %cst {dimension_numbers = #tpu.dot_dimension_numbers<[1], [0], [0], [1], [0, 0, 1, 1], [], []>} : vector<16x32xbf16>, vector<32x8xbf16>, vector<16x8xf32> -> vector<16x8xf32>
    %cst_5 = arith.constant 1.000000e+00 : f32
    %6 = vector.broadcast %cst_5 : f32 to vector<16x1xf32>
    %cst_6 = arith.constant dense<0.000000e+00> : vector<16x1xf32>
    %7 = tpu.matmul %0, %6, %cst_6 {dimension_numbers = #tpu.dot_dimension_numbers<[0], [0], [1], [1], [0, 1, 1, 1], [], []>} : vector<16x16xf32>, vector<16x1xf32>, vector<16x1xf32> -> vector<16x1xf32>
    %cst_7 = arith.constant 0.000000e+00 : f32
    %8 = vector.broadcast %cst_7 : f32 to vector<16x1xf32>
    %9 = arith.cmpf ogt, %7, %8 : vector<16x1xf32>
    %10 = math.rsqrt %7 : vector<16x1xf32>
    %cst_8 = arith.constant 0.000000e+00 : f32
    %11 = vector.broadcast %cst_8 : f32 to vector<16x1xf32>
    %12 = arith.select %9, %10, %11 : vector<16x1xi1>, vector<16x1xf32>
    %13 = vector.broadcast %12 : vector<16x1xf32> to vector<16x8xf32>
    %14 = arith.mulf %13, %5 : vector<16x8xf32>
    %15 = arith.truncf %0 : vector<16x16xf32> to vector<16x16xbf16>
    %16 = arith.truncf %14 : vector<16x8xf32> to vector<16x8xbf16>
    %cst_9 = arith.constant dense<0.000000e+00> : vector<16x8xf32>
    %17 = tpu.matmul %15, %16, %cst_9 {dimension_numbers = #tpu.dot_dimension_numbers<[0], [0], [1], [1], [0, 1, 1, 1], [], []>} : vector<16x16xbf16>, vector<16x8xbf16>, vector<16x8xf32> -> vector<16x8xf32>
    %18 = vector.broadcast %12 : vector<16x1xf32> to vector<16x8xf32>
    %19 = arith.mulf %18, %17 : vector<16x8xf32>
    %c0_10 = arith.constant 0 : index
    %c0_11 = arith.constant 0 : index
    %20 = vector.load %arg3[%c0_10, %c0_11] : memref<1x8xf32, #tpu.memory_space<vmem>>, vector<1x8xf32>
    %21 = vector.broadcast %20 : vector<1x8xf32> to vector<16x8xf32>
    %22 = arith.addf %19, %21 : vector<16x8xf32>
    %cst_12 = arith.constant 0.000000e+00 : f32
    %23 = vector.broadcast %cst_12 : f32 to vector<16x8xf32>
    %24 = arith.maximumf %22, %23 : vector<16x8xf32>
    %cst_13 = arith.constant dense<0xFF800000> : vector<16xf32>
    %25 = vector.multi_reduction <maximumf>, %24, %cst_13 [1] : vector<16x8xf32> to vector<16xf32>
    %26 = vector.shape_cast %25 : vector<16xf32> to vector<16x1xf32>
    %27 = vector.broadcast %26 : vector<16x1xf32> to vector<16x8xf32>
    %28 = arith.subf %24, %27 : vector<16x8xf32>
    %29 = math.exp %28 : vector<16x8xf32>
    %cst_14 = arith.constant dense<0.000000e+00> : vector<16xf32>
    %30 = vector.multi_reduction <add>, %29, %cst_14 [1] : vector<16x8xf32> to vector<16xf32>
    %31 = vector.shape_cast %30 : vector<16xf32> to vector<16x1xf32>
    %32 = vector.broadcast %31 : vector<16x1xf32> to vector<16x8xf32>
    %33 = arith.divf %29, %32 : vector<16x8xf32>
    %34 = math.log %31 : vector<16x1xf32>
    %35 = vector.broadcast %26 : vector<16x1xf32> to vector<16x8xf32>
    %36 = arith.subf %24, %35 : vector<16x8xf32>
    %37 = arith.mulf %33, %36 : vector<16x8xf32>
    %cst_15 = arith.constant dense<0.000000e+00> : vector<16xf32>
    %38 = vector.multi_reduction <add>, %37, %cst_15 [1] : vector<16x8xf32> to vector<16xf32>
    %39 = vector.shape_cast %38 : vector<16xf32> to vector<16x1xf32>
    %40 = arith.subf %34, %39 : vector<16x1xf32>
    %41 = vector.shape_cast %40 : vector<16x1xf32> to vector<1x16x1xf32>
    %cst_16 = arith.constant dense<0.000000e+00> : vector<1xf32>
    %42 = vector.multi_reduction <add>, %41, %cst_16 [1, 2] : vector<1x16x1xf32> to vector<1xf32>
    %43 = vector.shape_cast %42 : vector<1xf32> to vector<1x1x1xf32>
    %44 = vector.extract %43[0, 0, 0] : f32 from vector<1x1x1xf32>
    %cst_17 = arith.constant 1.600000e+01 : f32
    %45 = arith.divf %44, %cst_17 : f32
    %c0_18 = arith.constant 0 : index
    %c0_19 = arith.constant 0 : index
    %46 = vector.load %arg6[%c0_18, %c0_19] : memref<16x8xf32, #tpu.memory_space<vmem>>, vector<16x8xf32>
    tpu.vector_store %arg6[%c0_18, %c0_19], %33 {strides = array<i32>} : memref<16x8xf32, #tpu.memory_space<vmem>>, vector<16x8xf32>,
    %c0_20 = arith.constant 0 : index
    %c0_21 = arith.constant 0 : index
    %47 = memref.load %arg10[%c0_20, %c0_21] : memref<1x1xf32, #tpu.memory_space<smem>>
    memref.store %45, %arg10[%c0_20, %c0_21] : memref<1x1xf32, #tpu.memory_space<smem>>
    %c0_22 = arith.constant 0 : index
    %c0_23 = arith.constant 0 : index
    %48 = vector.load %arg4[%c0_22, %c0_23] : memref<16x32xf32, #tpu.memory_space<vmem>>, vector<16x32xf32>
    %49 = arith.truncf %33 : vector<16x8xf32> to vector<16x8xbf16>
    %50 = arith.truncf %48 : vector<16x32xf32> to vector<16x32xbf16>
    %cst_24 = arith.constant dense<0.000000e+00> : vector<8x32xf32>
    %51 = tpu.matmul %49, %50, %cst_24 {dimension_numbers = #tpu.dot_dimension_numbers<[0], [0], [1], [1], [0, 1, 1, 1], [], []>} : vector<16x8xbf16>, vector<16x32xbf16>, vector<8x32xf32> -> vector<8x32xf32>
    %c0_25 = arith.constant 0 : index
    %c0_26 = arith.constant 0 : index
    %52 = vector.load %arg7[%c0_25, %c0_26] : memref<8x32xf32, #tpu.memory_space<vmem>>, vector<8x32xf32>
    tpu.vector_store %arg7[%c0_25, %c0_26], %51 {strides = array<i32>} : memref<8x32xf32, #tpu.memory_space<vmem>>, vector<8x32xf32>,
    %c0_27 = arith.constant 0 : index
    %c0_28 = arith.constant 0 : index
    %53 = vector.load %arg5[%c0_27, %c0_28] : memref<16x8xf32, #tpu.memory_space<vmem>>, vector<16x8xf32>
    %54 = arith.truncf %33 : vector<16x8xf32> to vector<16x8xbf16>
    %55 = arith.truncf %53 : vector<16x8xf32> to vector<16x8xbf16>
    %cst_29 = arith.constant dense<0.000000e+00> : vector<8x8xf32>
    %56 = tpu.matmul %54, %55, %cst_29 {dimension_numbers = #tpu.dot_dimension_numbers<[0], [0], [1], [1], [0, 1, 1, 1], [], []>} : vector<16x8xbf16>, vector<16x8xbf16>, vector<8x8xf32> -> vector<8x8xf32>
    %cst_30 = arith.constant dense<0xFF800000> : vector<8xf32>
    %57 = vector.multi_reduction <maximumf>, %56, %cst_30 [1] : vector<8x8xf32> to vector<8xf32>
    %58 = vector.shape_cast %57 : vector<8xf32> to vector<8x1xf32>
    %59 = vector.broadcast %58 : vector<8x1xf32> to vector<8x8xf32>
    %60 = arith.subf %56, %59 : vector<8x8xf32>
    %61 = math.exp %60 : vector<8x8xf32>
    %cst_31 = arith.constant dense<0.000000e+00> : vector<8xf32>
    %62 = vector.multi_reduction <add>, %61, %cst_31 [1] : vector<8x8xf32> to vector<8xf32>
    %63 = vector.shape_cast %62 : vector<8xf32> to vector<8x1xf32>
    %64 = vector.broadcast %63 : vector<8x1xf32> to vector<8x8xf32>
    %65 = arith.divf %61, %64 : vector<8x8xf32>
    %66 = math.log %63 : vector<8x1xf32>
    %67 = vector.broadcast %58 : vector<8x1xf32> to vector<8x8xf32>
    %68 = arith.subf %56, %67 : vector<8x8xf32>
    %69 = arith.mulf %65, %68 : vector<8x8xf32>
    %cst_32 = arith.constant dense<0.000000e+00> : vector<8xf32>
    %70 = vector.multi_reduction <add>, %69, %cst_32 [1] : vector<8x8xf32> to vector<8xf32>
    %71 = vector.shape_cast %70 : vector<8xf32> to vector<8x1xf32>
    %72 = arith.subf %66, %71 : vector<8x1xf32>
    %73 = vector.shape_cast %72 : vector<8x1xf32> to vector<1x8x1xf32>
    %cst_33 = arith.constant dense<0.000000e+00> : vector<1xf32>
    %74 = vector.multi_reduction <add>, %73, %cst_33 [1, 2] : vector<1x8x1xf32> to vector<1xf32>
    %75 = vector.shape_cast %74 : vector<1xf32> to vector<1x1x1xf32>
    %76 = vector.extract %75[0, 0, 0] : f32 from vector<1x1x1xf32>
    %cst_34 = arith.constant 8.000000e+00 : f32
    %77 = arith.divf %76, %cst_34 : f32
    %c0_35 = arith.constant 0 : index
    %c0_36 = arith.constant 0 : index
    %78 = vector.load %arg9[%c0_35, %c0_36] : memref<8x8xf32, #tpu.memory_space<vmem>>, vector<8x8xf32>
    tpu.vector_store %arg9[%c0_35, %c0_36], %65 {strides = array<i32>} : memref<8x8xf32, #tpu.memory_space<vmem>>, vector<8x8xf32>,
    %c0_37 = arith.constant 0 : index
    %c0_38 = arith.constant 0 : index
    %79 = memref.load %arg11[%c0_37, %c0_38] : memref<1x1xf32, #tpu.memory_space<smem>>
    memref.store %77, %arg11[%c0_37, %c0_38] : memref<1x1xf32, #tpu.memory_space<smem>>
    %c0_39 = arith.constant 0 : index
    %c0_40 = arith.constant 0 : index
    %80 = vector.load %arg1[%c0_39, %c0_40] : memref<16x16xf32, #tpu.memory_space<vmem>>, vector<16x16xf32>
    %81 = arith.truncf %33 : vector<16x8xf32> to vector<16x8xbf16>
    %82 = arith.truncf %80 : vector<16x16xf32> to vector<16x16xbf16>
    %cst_41 = arith.constant dense<0.000000e+00> : vector<8x16xf32>
    %83 = tpu.matmul %81, %82, %cst_41 {dimension_numbers = #tpu.dot_dimension_numbers<[0], [0], [1], [1], [0, 1, 1, 1], [], []>} : vector<16x8xbf16>, vector<16x16xbf16>, vector<8x16xf32> -> vector<8x16xf32>
    %84 = arith.truncf %83 : vector<8x16xf32> to vector<8x16xbf16>
    %85 = arith.truncf %33 : vector<16x8xf32> to vector<16x8xbf16>
    %cst_42 = arith.constant dense<0.000000e+00> : vector<8x8xf32>
    %86 = tpu.matmul %84, %85, %cst_42 {dimension_numbers = #tpu.dot_dimension_numbers<[1], [0], [0], [1], [0, 0, 1, 1], [], []>} : vector<8x16xbf16>, vector<16x8xbf16>, vector<8x8xf32> -> vector<8x8xf32>
    %c0_43 = arith.constant 0 : index
    %c0_44 = arith.constant 0 : index
    %87 = vector.load %arg8[%c0_43, %c0_44] : memref<8x8xf32, #tpu.memory_space<vmem>>, vector<8x8xf32>
    tpu.vector_store %arg8[%c0_43, %c0_44], %86 {strides = array<i32>} : memref<8x8xf32, #tpu.memory_space<vmem>>, vector<8x8xf32>,
    %c0_45 = arith.constant 0 : index
    %c0_46 = arith.constant 0 : index
    %88 = vector.load %arg6[%c0_45, %c0_46] : memref<16x8xf32, #tpu.memory_space<vmem>>, vector<16x8xf32>
    %89 = arith.truncf %88 : vector<16x8xf32> to vector<16x8xbf16>
    %c0_47 = arith.constant 0 : index
    %c0_48 = arith.constant 0 : index
    %90 = vector.load %arg6[%c0_47, %c0_48] : memref<16x8xf32, #tpu.memory_space<vmem>>, vector<16x8xf32>
    %91 = arith.truncf %90 : vector<16x8xf32> to vector<16x8xbf16>
    %c0_49 = arith.constant 0 : index
    %c0_50 = arith.constant 0 : index
    %92 = vector.load %arg1[%c0_49, %c0_50] : memref<16x16xf32, #tpu.memory_space<vmem>>, vector<16x16xf32>
    %cst_51 = arith.constant dense<0.000000e+00> : vector<16x16xf32>
    %93 = tpu.matmul %91, %89, %cst_51 {dimension_numbers = #tpu.dot_dimension_numbers<[1], [1], [0], [0], [0, 0, 1, 0], [], []>} : vector<16x8xbf16>, vector<16x8xbf16>, vector<16x16xf32> -> vector<16x16xf32>
    %cst_52 = arith.constant 1.000000e+00 : f32
    %94 = vector.broadcast %cst_52 : f32 to vector<16x16xf32>
    %95 = arith.minimumf %93, %94 : vector<16x16xf32>
    %cst_53 = arith.constant 1.000000e-07 : f32
    %96 = vector.broadcast %cst_53 : f32 to vector<16x16xf32>
    %97 = arith.addf %95, %96 : vector<16x16xf32>
    %98 = math.log %97 : vector<16x16xf32>
    %cst_54 = arith.constant 1.000000e+00 : f32
    %99 = vector.broadcast %cst_54 : f32 to vector<16x16xf32>
    %100 = arith.subf %99, %95 : vector<16x16xf32>
    %cst_55 = arith.constant 1.000000e-07 : f32
    %101 = vector.broadcast %cst_55 : f32 to vector<16x16xf32>
    %102 = arith.addf %100, %101 : vector<16x16xf32>
    %103 = math.log %102 : vector<16x16xf32>
    %104 = arith.mulf %92, %98 : vector<16x16xf32>
    %105 = vector.shape_cast %104 : vector<16x16xf32> to vector<1x16x16xf32>
    %cst_56 = arith.constant dense<0.000000e+00> : vector<1xf32>
    %106 = vector.multi_reduction <add>, %105, %cst_56 [1, 2] : vector<1x16x16xf32> to vector<1xf32>
    %107 = vector.shape_cast %106 : vector<1xf32> to vector<1x1x1xf32>
    %108 = vector.extract %107[0, 0, 0] : f32 from vector<1x1x1xf32>
    %cst_57 = arith.constant 0.000000e+00 : f32
    %109 = arith.subf %cst_57, %108 : f32
    %110 = vector.shape_cast %103 : vector<16x16xf32> to vector<1x16x16xf32>
    %cst_58 = arith.constant dense<0.000000e+00> : vector<1xf32>
    %111 = vector.multi_reduction <add>, %110, %cst_58 [1, 2] : vector<1x16x16xf32> to vector<1xf32>
    %112 = vector.shape_cast %111 : vector<1xf32> to vector<1x1x1xf32>
    %113 = vector.extract %112[0, 0, 0] : f32 from vector<1x1x1xf32>
    %114 = arith.subf %109, %113 : f32
    %115 = arith.mulf %92, %103 : vector<16x16xf32>
    %116 = vector.shape_cast %115 : vector<16x16xf32> to vector<1x16x16xf32>
    %cst_59 = arith.constant dense<0.000000e+00> : vector<1xf32>
    %117 = vector.multi_reduction <add>, %116, %cst_59 [1, 2] : vector<1x16x16xf32> to vector<1xf32>
    %118 = vector.shape_cast %117 : vector<1xf32> to vector<1x1x1xf32>
    %119 = vector.extract %118[0, 0, 0] : f32 from vector<1x1x1xf32>
    %120 = arith.addf %114, %119 : f32
    %cst_60 = arith.constant 2.560000e+02 : f32
    %121 = arith.divf %120, %cst_60 : f32
    %c0_61 = arith.constant 0 : index
    %c0_62 = arith.constant 0 : index
    %122 = memref.load %arg12[%c0_61, %c0_62] : memref<1x1xf32, #tpu.memory_space<smem>>
    memref.store %121, %arg12[%c0_61, %c0_62] : memref<1x1xf32, #tpu.memory_space<smem>>
    return
  }
}

module attributes {stable_mosaic.version = 11 : i64} {
  func.func @_gcn_emb_kernel(%arg0: memref<16x32xf32, #tpu.memory_space<vmem>>, %arg1: memref<16x16xf32, #tpu.memory_space<vmem>>, %arg2: memref<32x32xf32, #tpu.memory_space<vmem>>, %arg3: memref<1x32xf32, #tpu.memory_space<vmem>>, %arg4: memref<16x32xf32, #tpu.memory_space<vmem>>) attributes {dimension_semantics = [], scalar_prefetch = 0 : i64, scratch_operands = 0 : i64, tpu.core_type = #tpu.core_type<tc>} {
    %c0 = arith.constant 0 : index
    %c0_0 = arith.constant 0 : index
    %0 = vector.load %arg1[%c0, %c0_0] : memref<16x16xf32, #tpu.memory_space<vmem>>, vector<16x16xf32>
    %c0_1 = arith.constant 0 : index
    %c0_2 = arith.constant 0 : index
    %1 = vector.load %arg0[%c0_1, %c0_2] : memref<16x32xf32, #tpu.memory_space<vmem>>, vector<16x32xf32>
    %c0_3 = arith.constant 0 : index
    %c0_4 = arith.constant 0 : index
    %2 = vector.load %arg2[%c0_3, %c0_4] : memref<32x32xf32, #tpu.memory_space<vmem>>, vector<32x32xf32>
    %3 = arith.truncf %1 : vector<16x32xf32> to vector<16x32xbf16>
    %4 = arith.truncf %2 : vector<32x32xf32> to vector<32x32xbf16>
    %cst = arith.constant dense<0.000000e+00> : vector<16x32xf32>
    %5 = tpu.matmul %3, %4, %cst {dimension_numbers = #tpu.dot_dimension_numbers<[1], [0], [0], [1], [0, 0, 1, 1], [], []>} : vector<16x32xbf16>, vector<32x32xbf16>, vector<16x32xf32> -> vector<16x32xf32>
    %cst_5 = arith.constant 1.000000e+00 : f32
    %6 = vector.broadcast %cst_5 : f32 to vector<16x1xf32>
    %cst_6 = arith.constant dense<0.000000e+00> : vector<16x1xf32>
    %7 = tpu.matmul %0, %6, %cst_6 {dimension_numbers = #tpu.dot_dimension_numbers<[0], [0], [1], [1], [0, 1, 1, 1], [], []>} : vector<16x16xf32>, vector<16x1xf32>, vector<16x1xf32> -> vector<16x1xf32>
    %cst_7 = arith.constant 0.000000e+00 : f32
    %8 = vector.broadcast %cst_7 : f32 to vector<16x1xf32>
    %9 = arith.cmpf ogt, %7, %8 : vector<16x1xf32>
    %10 = math.rsqrt %7 : vector<16x1xf32>
    %cst_8 = arith.constant 0.000000e+00 : f32
    %11 = vector.broadcast %cst_8 : f32 to vector<16x1xf32>
    %12 = arith.select %9, %10, %11 : vector<16x1xi1>, vector<16x1xf32>
    %13 = vector.broadcast %12 : vector<16x1xf32> to vector<16x32xf32>
    %14 = arith.mulf %13, %5 : vector<16x32xf32>
    %15 = arith.truncf %0 : vector<16x16xf32> to vector<16x16xbf16>
    %16 = arith.truncf %14 : vector<16x32xf32> to vector<16x32xbf16>
    %cst_9 = arith.constant dense<0.000000e+00> : vector<16x32xf32>
    %17 = tpu.matmul %15, %16, %cst_9 {dimension_numbers = #tpu.dot_dimension_numbers<[0], [0], [1], [1], [0, 1, 1, 1], [], []>} : vector<16x16xbf16>, vector<16x32xbf16>, vector<16x32xf32> -> vector<16x32xf32>
    %18 = vector.broadcast %12 : vector<16x1xf32> to vector<16x32xf32>
    %19 = arith.mulf %18, %17 : vector<16x32xf32>
    %c0_10 = arith.constant 0 : index
    %c0_11 = arith.constant 0 : index
    %20 = vector.load %arg3[%c0_10, %c0_11] : memref<1x32xf32, #tpu.memory_space<vmem>>, vector<1x32xf32>
    %21 = vector.broadcast %20 : vector<1x32xf32> to vector<16x32xf32>
    %22 = arith.addf %19, %21 : vector<16x32xf32>
    %cst_12 = arith.constant 0.000000e+00 : f32
    %23 = vector.broadcast %cst_12 : f32 to vector<16x32xf32>
    %24 = arith.maximumf %22, %23 : vector<16x32xf32>
    %c0_13 = arith.constant 0 : index
    %c0_14 = arith.constant 0 : index
    %25 = vector.load %arg4[%c0_13, %c0_14] : memref<16x32xf32, #tpu.memory_space<vmem>>, vector<16x32xf32>
    tpu.vector_store %arg4[%c0_13, %c0_14], %24 {strides = array<i32>} : memref<16x32xf32, #tpu.memory_space<vmem>>, vector<16x32xf32>,
    return
  }
}

</mosaic_0001>

<llo_original>
// kernel: jhgda_forward.13
$region0: #{jhgda_forward.13}
  #allocation0 [shape = 'u32[]', space=smem, size = 0x4, offset = 0x4, fixed_abs, tag = 'smem constant byte address 0x4 - core index']
  #allocation1 [shape = 'u32[144,128]{1,0:T(1,128)}', space=vmem, size = 0x12000, scoped, tag = 'internal scratch']
  %s0 = inlined_call_operand.vmem [shape: f32[64,16], index: 0, kind: input, shape index: {}]
  %s1 = inlined_call_operand.vmem [shape: f32[64,64], index: 1, kind: input, shape index: {}]
  %s2 = inlined_call_operand.vmem [shape: f32[16,32], index: 2, kind: input, shape index: {}]
  %s3 = inlined_call_operand.vmem [shape: f32[1,32], index: 3, kind: input, shape index: {}]
  %s4 = inlined_call_operand.vmem [shape: f32[32,8], index: 4, kind: input, shape index: {}]
  %s5 = inlined_call_operand.vmem [shape: f32[1,8], index: 5, kind: input, shape index: {}]
  %s6 = inlined_call_operand.vmem [shape: f32[64,32], index: 6, kind: output, shape index: {0}]
  %s7 = inlined_call_operand.vmem [shape: f32[64,8], index: 7, kind: output, shape index: {1}]
  %8 = xla_tuple %s6, %s7
  %s9 = sld [smem:[#allocation0]]
  $region42: #{jhgda_forward.13} parent=0
    _
  %s11 = ssub.s32 1, %s9
  %s12 = scalar_select 0, %s11, %s9
  // Predicated region
  $region2: #{jhgda_forward.13} parent=0 // pred_check
    _
  $region3: #{jhgda_forward.13} parent=0 // pred_check_branch
    %14 = sbr.rel (0) target = $region5
  $region4: #{jhgda_forward.13} parent=0 // pred_region
    _
  $region5: #{jhgda_forward.13} parent=0 // pred_fallthru
    _
  // Predicated region
  $region6: #{jhgda_forward.13} parent=0 // pred_check
    _
  $region7: #{jhgda_forward.13} parent=0 // pred_check_branch
    %16 = sbr.rel (0) target = $region9
  $region8: #{jhgda_forward.13} parent=0 // pred_region
    _
  $region9: #{jhgda_forward.13} parent=0 // pred_fallthru
    _
  // Predicated region
  $region10: #{jhgda_forward.13} parent=0 // pred_check
    _
  $region11: #{jhgda_forward.13} parent=0 // pred_check_branch
    %18 = sbr.rel (0) target = $region13
  $region12: #{jhgda_forward.13} parent=0 // pred_region
    _
  $region13: #{jhgda_forward.13} parent=0 // pred_fallthru
    _
  // Predicated region
  $region14: #{jhgda_forward.13} parent=0 // pred_check
    _
  $region15: #{jhgda_forward.13} parent=0 // pred_check_branch
    %20 = sbr.rel (0) target = $region17
  $region16: #{jhgda_forward.13} parent=0 // pred_region
    _
  $region17: #{jhgda_forward.13} parent=0 // pred_fallthru
    _
  // Predicated region
  $region18: #{jhgda_forward.13} parent=0 // pred_check
    _
  $region19: #{jhgda_forward.13} parent=0 // pred_check_branch
    %22 = sbr.rel (0) target = $region21
  $region20: #{jhgda_forward.13} parent=0 // pred_region
    _
  $region21: #{jhgda_forward.13} parent=0 // pred_fallthru
    _
  // Predicated region
  $region22: #{jhgda_forward.13} parent=0 // pred_check
    _
  $region23: #{jhgda_forward.13} parent=0 // pred_check_branch
    %24 = sbr.rel (0) target = $region25
  $region24: #{jhgda_forward.13} parent=0 // pred_region
    _
  $region25: #{jhgda_forward.13} parent=0 // pred_fallthru
    _
  %v26 = vld [vmem:[%s1] sm:$0xff]
  %v27 = vld [vmem:[%s1 + $0x8] sm:$0xff]
  %v28 = vld [vmem:[%s1 + $0x10] sm:$0xff]
  %v29 = vld [vmem:[%s1 + $0x18] sm:$0xff]
  %v30 = vld [vmem:[%s1 + $0x20] sm:$0xff]
  %v31 = vld [vmem:[%s1 + $0x28] sm:$0xff]
  %v32 = vld [vmem:[%s1 + $0x30] sm:$0xff]
  %v33 = vld [vmem:[%s1 + $0x38] sm:$0xff]
  %v34 = vld [vmem:[%s0] sm:$0xff]
  %v35 = vld [vmem:[%s0 + $0x8] sm:$0xff]
  %v36 = vld [vmem:[%s0 + $0x10] sm:$0xff]
  %v37 = vld [vmem:[%s0 + $0x18] sm:$0xff]
  %v38 = vld [vmem:[%s0 + $0x20] sm:$0xff]
  %v39 = vld [vmem:[%s0 + $0x28] sm:$0xff]
  %v40 = vld [vmem:[%s0 + $0x30] sm:$0xff]
  %v41 = vld [vmem:[%s0 + $0x38] sm:$0xff]
  %v42 = vld [vmem:[%s2] sm:$0xff]
  %v43 = vld [vmem:[%s2 + $0x8] sm:$0xff]
  %v44 = vpack.c.bf16 %v35, %v34
  %v45 = vpack.c.bf16 %v37, %v36
  %v46 = vpack.c.bf16 %v39, %v38
  %v47 = vpack.c.bf16 %v41, %v40
  %v48 = vpack.c.bf16 %v43, %v42
  %vm49 = vcmask 130048
  %v51 = vsel %vm49, %v44, 0
  %v54 = vsel %vm49, %v45, 0
  %v57 = vsel %vm49, %v46, 0
  %v60 = vsel %vm49, %v47, 0
  %62 = vmatprep.subr.bf16.mxu0 0
  %63 = vmatpush1.bf16.msra.mxu0 0
  %64 = vmatprep.subr.bf16.mxu0 0
  %65 = vmatpush1.bf16.msra.mxu0 0
  %66 = vmatprep.subr.bf16.mxu0 0
  %67 = vmatpush1.bf16.msra.mxu0 0
  %68 = vmatprep.subr.bf16.mxu0 0
  %69 = vmatpush1.bf16.msra.mxu0 0
  %70 = vmatprep.subr.bf16.mxu0 0
  %71 = vmatpush1.bf16.msra.mxu0 0
  %72 = vmatprep.subr.bf16.mxu0 0
  %73 = vmatpush1.bf16.msra.mxu0 0
  %74 = vmatprep.subr.bf16.mxu0 0
  %75 = vmatpush1.bf16.msra.mxu0 0
  %76 = vmatprep.subr.bf16.mxu0 0
  %77 = vmatpush1.bf16.msra.mxu0 %v48
  %78 = vmatprep.subr.bf16.mxu0 0
  %79 = vmatpush2.bf16.msra.mxu0 0
  %80 = vmatprep.subr.bf16.mxu0 0
  %81 = vmatpush2.bf16.msra.mxu0 0
  %82 = vmatprep.subr.bf16.mxu0 0
  %83 = vmatpush2.bf16.msra.mxu0 0
  %84 = vmatprep.subr.bf16.mxu0 0
  %85 = vmatpush2.bf16.msra.mxu0 0
  %86 = vmatprep.subr.bf16.mxu0 0
  %87 = vmatpush2.bf16.msra.mxu0 0
  %88 = vmatprep.subr.bf16.mxu0 0
  %89 = vmatpush2.bf16.msra.mxu0 0
  %90 = vmatprep.subr.bf16.mxu0 0
  %91 = vmatpush2.bf16.msra.mxu0 0
  %92 = vmatprep.subr.bf16.mxu0 0
  %93 = vmatpush2.bf16.msra.mxu0 0
  %94 = vmatprep.mubr.bf16.mxu0 0
  %95 = vmatmul.mubr.bf16.gmra.mxu0 %v51
  %v96 = vpop.f32.mrf.mxu0
  %v97 = vadd.f32 0.0, %v96
  %v98 = vpop.f32.mrf.mxu0
  %v99 = vpop.f32.mrf.mxu0
  %v100 = vadd.f32 0.0, %v99
  %v101 = vpop.f32.mrf.mxu0
  %102 = vmatprep.mubr.bf16.mxu0 0
  %103 = vmatmul.mubr.bf16.gmra.mxu0 %v54
  %v104 = vpop.f32.mrf.mxu0
  %v105 = vadd.f32 0.0, %v104
  %v106 = vpop.f32.mrf.mxu0
  %v107 = vpop.f32.mrf.mxu0
  %v108 = vadd.f32 0.0, %v107
  %v109 = vpop.f32.mrf.mxu0
  %110 = vmatprep.mubr.bf16.mxu0 0
  %111 = vmatmul.mubr.bf16.gmra.mxu0 %v57
  %v112 = vpop.f32.mrf.mxu0
  %v113 = vadd.f32 0.0, %v112
  %v114 = vpop.f32.mrf.mxu0
  %v115 = vpop.f32.mrf.mxu0
  %v116 = vadd.f32 0.0, %v115
  %v117 = vpop.f32.mrf.mxu0
  %118 = vmatprep.mubr.bf16.mxu0 0
  %119 = vmatmul.mubr.bf16.gmra.mxu0 %v60
  %v120 = vpop.f32.mrf.mxu0
  %v121 = vadd.f32 0.0, %v120
  %v122 = vpop.f32.mrf.mxu0
  %v123 = vpop.f32.mrf.mxu0
  %v124 = vadd.f32 0.0, %v123
  %v125 = vpop.f32.mrf.mxu0
  %126 = vdwg.mxu0
  %vm127 = vcmask 523264
  %v128 = vsel %vm127, %v26, 0.0
  %129 = vadd.xlane.f32.xlu0 %v128
  %v130 = vpop.xlane.xlu0 %129
  %v131 = vsel %vm127, %v27, 0.0
  %132 = vadd.xlane.f32.xlu0 %v131
  %v133 = vpop.xlane.xlu0 %132
  %v134 = vsel %vm127, %v28, 0.0
  %135 = vadd.xlane.f32.xlu0 %v134
  %v136 = vpop.xlane.xlu0 %135
  %v137 = vsel %vm127, %v29, 0.0
  %138 = vadd.xlane.f32.xlu0 %v137
  %v139 = vpop.xlane.xlu0 %138
  %v140 = vsel %vm127, %v30, 0.0
  %141 = vadd.xlane.f32.xlu0 %v140
  %v142 = vpop.xlane.xlu0 %141
  %v143 = vsel %vm127, %v31, 0.0
  %144 = vadd.xlane.f32.xlu0 %v143
  %v145 = vpop.xlane.xlu0 %144
  %v146 = vsel %vm127, %v32, 0.0
  %147 = vadd.xlane.f32.xlu0 %v146
  %v148 = vpop.xlane.xlu0 %147
  %v149 = vsel %vm127, %v33, 0.0
  %150 = vadd.xlane.f32.xlu0 %v149
  %v151 = vpop.xlane.xlu0 %150
  %vm152 = vcmp.gt.f32.partialorder %v130, 0.0
  %vm153 = vcmp.gt.f32.partialorder %v133, 0.0
  %vm154 = vcmp.gt.f32.partialorder %v136, 0.0
  %vm155 = vcmp.gt.f32.partialorder %v139, 0.0
  %vm156 = vcmp.gt.f32.partialorder %v142, 0.0
  %vm157 = vcmp.gt.f32.partialorder %v145, 0.0
  %vm158 = vcmp.gt.f32.partialorder %v148, 0.0
  %vm159 = vcmp.gt.f32.partialorder %v151, 0.0
  %v160 = vrsqrt.pop %v130
  %v161 = vrsqrt.pop %v133
  %v162 = vrsqrt.pop %v136
  %v163 = vrsqrt.pop %v139
  %v164 = vrsqrt.pop %v142
  %v165 = vrsqrt.pop %v145
  %v166 = vrsqrt.pop %v148
  %v167 = vrsqrt.pop %v151
  %v168 = vsel %vm152, %v160, 0.0
  %v169 = vsel %vm153, %v161, 0.0
  %v170 = vsel %vm154, %v162, 0.0
  %v171 = vsel %vm155, %v163, 0.0
  %v172 = vsel %vm156, %v164, 0.0
  %v173 = vsel %vm157, %v165, 0.0
  %v174 = vsel %vm158, %v166, 0.0
  %v175 = vsel %vm159, %v167, 0.0
  %v176 = vmul.f32 %v168, %v97
  %v177 = vmul.f32 %v169, %v100
  %v178 = vmul.f32 %v170, %v105
  %v179 = vmul.f32 %v171, %v108
  %v180 = vmul.f32 %v172, %v113
  %v181 = vmul.f32 %v173, %v116
  %v182 = vmul.f32 %v174, %v121
  %v183 = vmul.f32 %v175, %v124
  %v184 = vpack.c.bf16 %v27, %v26
  %v185 = vpack.c.bf16 %v29, %v28
  %v186 = vpack.c.bf16 %v31, %v30
  %v187 = vpack.c.bf16 %v33, %v32
  %v188 = vpack.c.bf16 %v177, %v176
  %v189 = vpack.c.bf16 %v179, %v178
  %v190 = vpack.c.bf16 %v181, %v180
  %v191 = vpack.c.bf16 %v183, %v182
  %v193 = vsel %vm127, %v184, 0
  %v196 = vsel %vm127, %v185, 0
  %v199 = vsel %vm127, %v186, 0
  %v202 = vsel %vm127, %v187, 0
  %204 = vmatprep.subr.bf16.mxu0 0
  %205 = vmatpush1.bf16.msra.mxu0 0
  %206 = vmatprep.subr.bf16.mxu0 0
  %207 = vmatpush1.bf16.msra.mxu0 0
  %208 = vmatprep.subr.bf16.mxu0 0
  %209 = vmatpush1.bf16.msra.mxu0 0
  %210 = vmatprep.subr.bf16.mxu0 0
  %211 = vmatpush1.bf16.msra.mxu0 0
  %212 = vmatprep.subr.bf16.mxu0 0
  %213 = vmatpush1.bf16.msra.mxu0 %v191
  %214 = vmatprep.subr.bf16.mxu0 0
  %215 = vmatpush1.bf16.msra.mxu0 %v190
  %216 = vmatprep.subr.bf16.mxu0 0
  %217 = vmatpush1.bf16.msra.mxu0 %v189
  %218 = vmatprep.subr.bf16.mxu0 0
  %219 = vmatpush1.bf16.msra.mxu0 %v188
  %220 = vmatprep.subr.bf16.mxu0 0
  %221 = vmatpush2.bf16.msra.mxu0 0
  %222 = vmatprep.subr.bf16.mxu0 0
  %223 = vmatpush2.bf16.msra.mxu0 0
  %224 = vmatprep.subr.bf16.mxu0 0
  %225 = vmatpush2.bf16.msra.mxu0 0
  %226 = vmatprep.subr.bf16.mxu0 0
  %227 = vmatpush2.bf16.msra.mxu0 0
  %228 = vmatprep.subr.bf16.mxu0 0
  %229 = vmatpush2.bf16.msra.mxu0 0
  %230 = vmatprep.subr.bf16.mxu0 0
  %231 = vmatpush2.bf16.msra.mxu0 0
  %232 = vmatprep.subr.bf16.mxu0 0
  %233 = vmatpush2.bf16.msra.mxu0 0
  %234 = vmatprep.subr.bf16.mxu0 0
  %235 = vmatpush2.bf16.msra.mxu0 0
  %236 = vmatprep.mubr.bf16.mxu0 0
  %237 = vmatmul.mubr.bf16.gmra.mxu0 %v193
  %v238 = vpop.f32.mrf.mxu0
  %v239 = vadd.f32 0.0, %v238
  %v240 = vpop.f32.mrf.mxu0
  %v241 = vpop.f32.mrf.mxu0
  %v242 = vadd.f32 0.0, %v241
  %v243 = vpop.f32.mrf.mxu0
  %244 = vmatprep.mubr.bf16.mxu0 0
  %245 = vmatmul.mubr.bf16.gmra.mxu0 %v196
  %v246 = vpop.f32.mrf.mxu0
  %v247 = vadd.f32 0.0, %v246
  %v248 = vpop.f32.mrf.mxu0
  %v249 = vpop.f32.mrf.mxu0
  %v250 = vadd.f32 0.0, %v249
  %v251 = vpop.f32.mrf.mxu0
  %252 = vmatprep.mubr.bf16.mxu0 0
  %253 = vmatmul.mubr.bf16.gmra.mxu0 %v199
  %v254 = vpop.f32.mrf.mxu0
  %v255 = vadd.f32 0.0, %v254
  %v256 = vpop.f32.mrf.mxu0
  %v257 = vpop.f32.mrf.mxu0
  %v258 = vadd.f32 0.0, %v257
  %v259 = vpop.f32.mrf.mxu0
  %260 = vmatprep.mubr.bf16.mxu0 0
  %261 = vmatmul.mubr.bf16.gmra.mxu0 %v202
  %v262 = vpop.f32.mrf.mxu0
  %v263 = vadd.f32 0.0, %v262
  %v264 = vpop.f32.mrf.mxu0
  %v265 = vpop.f32.mrf.mxu0
  %v266 = vadd.f32 0.0, %v265
  %v267 = vpop.f32.mrf.mxu0
  %268 = vdwg.mxu0
  %v269 = vmul.f32 %v168, %v239
  %v270 = vmul.f32 %v169, %v242
  %v271 = vmul.f32 %v170, %v247
  %v272 = vmul.f32 %v171, %v250
  %v273 = vmul.f32 %v172, %v255
  %v274 = vmul.f32 %v173, %v258
  %v275 = vmul.f32 %v174, %v263
  %v276 = vmul.f32 %v175, %v266
  %v277 = vld [vmem:[%s3] sm:$0x1]
  %v279 = vlaneseq
  %v280 = vshrl.u32 %v279, 7
  %v281 = vsub.s32 0, %v280
  %v282 = vrot.slane %v277, %v281
  %v284 = vadd.f32 %v269, %v282
  %v285 = vadd.f32 %v270, %v282
  %v286 = vadd.f32 %v271, %v282
  %v287 = vadd.f32 %v272, %v282
  %v288 = vadd.f32 %v273, %v282
  %v289 = vadd.f32 %v274, %v282
  %v290 = vadd.f32 %v275, %v282
  %v291 = vadd.f32 %v276, %v282
  %v292 = vmax.f32 %v284, 0.0
  %v293 = vmax.f32 %v285, 0.0
  %v294 = vmax.f32 %v286, 0.0
  %v295 = vmax.f32 %v287, 0.0
  %v296 = vmax.f32 %v288, 0.0
  %v297 = vmax.f32 %v289, 0.0
  %v298 = vmax.f32 %v290, 0.0
  %v299 = vmax.f32 %v291, 0.0
  %vm300 = vcmask 261120
  %301 = vst.msk [vmem:[%s6] sm:$0xff] %vm300, %v292
  %302 = vst.msk [vmem:[%s6 + $0x8] sm:$0xff] %vm300, %v293
  %303 = vst.msk [vmem:[%s6 + $0x10] sm:$0xff] %vm300, %v294
  %304 = vst.msk [vmem:[%s6 + $0x18] sm:$0xff] %vm300, %v295
  %305 = vst.msk [vmem:[%s6 + $0x20] sm:$0xff] %vm300, %v296
  %306 = vst.msk [vmem:[%s6 + $0x28] sm:$0xff] %vm300, %v297
  %307 = vst.msk [vmem:[%s6 + $0x30] sm:$0xff] %vm300, %v298
  %308 = vst.msk [vmem:[%s6 + $0x38] sm:$0xff] %vm300, %v299
  %v309 = vld [vmem:[%s4] sm:$0xff]
  %v310 = vld [vmem:[%s4 + $0x8] sm:$0xff]
  %v311 = vld [vmem:[%s4 + $0x10] sm:$0xff]
  %v312 = vld [vmem:[%s4 + $0x18] sm:$0xff]
  %v313 = vpack.c.bf16 %v293, %v292
  %v314 = vpack.c.bf16 %v295, %v294
  %v315 = vpack.c.bf16 %v297, %v296
  %v316 = vpack.c.bf16 %v299, %v298
  %v317 = vpack.c.bf16 %v310, %v309
  %v318 = vpack.c.bf16 %v312, %v311
  %v319 = vld [vmem:[%s5] sm:$0x1]
  %v321 = vlaneseq
  %v322 = vshrl.u32 %v321, 7
  %v323 = vsub.s32 0, %v322
  %v324 = vrot.slane %v319, %v323
  %v327 = vsel %vm300, %v313, 0
  %v330 = vsel %vm300, %v314, 0
  %v333 = vsel %vm300, %v315, 0
  %v336 = vsel %vm300, %v316, 0
  %338 = vmatprep.subr.bf16.mxu0 0
  %339 = vmatpush1.bf16.msra.mxu0 0
  %340 = vmatprep.subr.bf16.mxu0 0
  %341 = vmatpush1.bf16.msra.mxu0 0
  %342 = vmatprep.subr.bf16.mxu0 0
  %343 = vmatpush1.bf16.msra.mxu0 0
  %344 = vmatprep.subr.bf16.mxu0 0
  %345 = vmatpush1.bf16.msra.mxu0 0
  %346 = vmatprep.subr.bf16.mxu0 0
  %347 = vmatpush1.bf16.msra.mxu0 0
  %348 = vmatprep.subr.bf16.mxu0 0
  %349 = vmatpush1.bf16.msra.mxu0 0
  %350 = vmatprep.subr.bf16.mxu0 0
  %351 = vmatpush1.bf16.msra.mxu0 %v318
  %352 = vmatprep.subr.bf16.mxu0 0
  %353 = vmatpush1.bf16.msra.mxu0 %v317
  %354 = vmatprep.subr.bf16.mxu0 0
  %355 = vmatpush2.bf16.msra.mxu0 0
  %356 = vmatprep.subr.bf16.mxu0 0
  %357 = vmatpush2.bf16.msra.mxu0 0
  %358 = vmatprep.subr.bf16.mxu0 0
  %359 = vmatpush2.bf16.msra.mxu0 0
  %360 = vmatprep.subr.bf16.mxu0 0
  %361 = vmatpush2.bf16.msra.mxu0 0
  %362 = vmatprep.subr.bf16.mxu0 0
  %363 = vmatpush2.bf16.msra.mxu0 0
  %364 = vmatprep.subr.bf16.mxu0 0
  %365 = vmatpush2.bf16.msra.mxu0 0
  %366 = vmatprep.subr.bf16.mxu0 0
  %367 = vmatpush2.bf16.msra.mxu0 0
  %368 = vmatprep.subr.bf16.mxu0 0
  %369 = vmatpush2.bf16.msra.mxu0 0
  %370 = vmatprep.mubr.bf16.mxu0 0
  %371 = vmatmul.mubr.bf16.gmra.mxu0 %v327
  %v372 = vpop.f32.mrf.mxu0
  %v373 = vadd.f32 %v324, %v372
  %v374 = vpop.f32.mrf.mxu0
  %v375 = vpop.f32.mrf.mxu0
  %v376 = vadd.f32 %v324, %v375
  %v377 = vpop.f32.mrf.mxu0
  %378 = vmatprep.mubr.bf16.mxu0 0
  %379 = vmatmul.mubr.bf16.gmra.mxu0 %v330
  %v380 = vpop.f32.mrf.mxu0
  %v381 = vadd.f32 %v324, %v380
  %v382 = vpop.f32.mrf.mxu0
  %v383 = vpop.f32.mrf.mxu0
  %v384 = vadd.f32 %v324, %v383
  %v385 = vpop.f32.mrf.mxu0
  %386 = vmatprep.mubr.bf16.mxu0 0
  %387 = vmatmul.mubr.bf16.gmra.mxu0 %v333
  %v388 = vpop.f32.mrf.mxu0
  %v389 = vadd.f32 %v324, %v388
  %v390 = vpop.f32.mrf.mxu0
  %v391 = vpop.f32.mrf.mxu0
  %v392 = vadd.f32 %v324, %v391
  %v393 = vpop.f32.mrf.mxu0
  %394 = vmatprep.mubr.bf16.mxu0 0
  %395 = vmatmul.mubr.bf16.gmra.mxu0 %v336
  %v396 = vpop.f32.mrf.mxu0
  %v397 = vadd.f32 %v324, %v396
  %v398 = vpop.f32.mrf.mxu0
  %v399 = vpop.f32.mrf.mxu0
  %v400 = vadd.f32 %v324, %v399
  %v401 = vpop.f32.mrf.mxu0
  %402 = vdwg.mxu0
  %vm403 = vcmask 64512
  %404 = vst.msk [vmem:[%s7] sm:$0xff] %vm403, %v373
  %405 = vst.msk [vmem:[%s7 + $0x8] sm:$0xff] %vm403, %v376
  %406 = vst.msk [vmem:[%s7 + $0x10] sm:$0xff] %vm403, %v381
  %407 = vst.msk [vmem:[%s7 + $0x18] sm:$0xff] %vm403, %v384
  %408 = vst.msk [vmem:[%s7 + $0x20] sm:$0xff] %vm403, %v389
  %409 = vst.msk [vmem:[%s7 + $0x28] sm:$0xff] %vm403, %v392
  %410 = vst.msk [vmem:[%s7 + $0x30] sm:$0xff] %vm403, %v397
  %411 = vst.msk [vmem:[%s7 + $0x38] sm:$0xff] %vm403, %v400
  // Predicated region
  $region26: #{jhgda_forward.13} parent=0 // pred_check
    _
  $region27: #{jhgda_forward.13} parent=0 // pred_check_branch
    %413 = sbr.rel (0) target = $region29
  $region28: #{jhgda_forward.13} parent=0 // pred_region
    _
  $region29: #{jhgda_forward.13} parent=0 // pred_fallthru
    _
  // Predicated region
  $region30: #{jhgda_forward.13} parent=0 // pred_check
    _
  $region31: #{jhgda_forward.13} parent=0 // pred_check_branch
    %415 = sbr.rel (0) target = $region33
  $region32: #{jhgda_forward.13} parent=0 // pred_region
    _
  $region33: #{jhgda_forward.13} parent=0 // pred_fallthru
    _
  // Predicated region
  $region34: #{jhgda_forward.13} parent=0 // pred_check
    _
  $region35: #{jhgda_forward.13} parent=0 // pred_check_branch
    %417 = sbr.rel (0) target = $region37
  $region36: #{jhgda_forward.13} parent=0 // pred_region
    _
  $region37: #{jhgda_forward.13} parent=0 // pred_fallthru
    _
  // Predicated region
  $region38: #{jhgda_forward.13} parent=0 // pred_check
    _
  $region39: #{jhgda_forward.13} parent=0 // pred_check_branch
    %419 = sbr.rel (0) target = $region41
  $region40: #{jhgda_forward.13} parent=0 // pred_region
    _
  $region41: #{jhgda_forward.13} parent=0 // pred_fallthru
    _

// kernel: jhgda_forward.17
$region0: #{jhgda_forward.17}
  #allocation0 [shape = 'u32[]', space=smem, size = 0x4, offset = 0x4, fixed_abs, tag = 'smem constant byte address 0x4 - core index']
  #allocation1 [shape = 'u32[144,128]{1,0:T(1,128)}', space=vmem, size = 0x12000, scoped, tag = 'internal scratch']
  %s0 = inlined_call_operand.vmem [shape: f32[32,32], index: 0, kind: input, shape index: {}]
  %s1 = inlined_call_operand.vmem [shape: f32[32,32], index: 1, kind: input, shape index: {}]
  %s2 = inlined_call_operand.vmem [shape: f32[32,32], index: 2, kind: input, shape index: {}]
  %s3 = inlined_call_operand.vmem [shape: f32[1,32], index: 3, kind: input, shape index: {}]
  %s4 = inlined_call_operand.vmem [shape: f32[32,32], index: 4, kind: output, shape index: {}]
  %s5 = sld [smem:[#allocation0]]
  $region26: #{jhgda_forward.17} parent=0
    _
  %s7 = ssub.s32 1, %s5
  %s8 = scalar_select 0, %s7, %s5
  // Predicated region
  $region2: #{jhgda_forward.17} parent=0 // pred_check
    _
  $region3: #{jhgda_forward.17} parent=0 // pred_check_branch
    %10 = sbr.rel (0) target = $region5
  $region4: #{jhgda_forward.17} parent=0 // pred_region
    _
  $region5: #{jhgda_forward.17} parent=0 // pred_fallthru
    _
  // Predicated region
  $region6: #{jhgda_forward.17} parent=0 // pred_check
    _
  $region7: #{jhgda_forward.17} parent=0 // pred_check_branch
    %12 = sbr.rel (0) target = $region9
  $region8: #{jhgda_forward.17} parent=0 // pred_region
    _
  $region9: #{jhgda_forward.17} parent=0 // pred_fallthru
    _
  // Predicated region
  $region10: #{jhgda_forward.17} parent=0 // pred_check
    _
  $region11: #{jhgda_forward.17} parent=0 // pred_check_branch
    %14 = sbr.rel (0) target = $region13
  $region12: #{jhgda_forward.17} parent=0 // pred_region
    _
  $region13: #{jhgda_forward.17} parent=0 // pred_fallthru
    _
  // Predicated region
  $region14: #{jhgda_forward.17} parent=0 // pred_check
    _
  $region15: #{jhgda_forward.17} parent=0 // pred_check_branch
    %16 = sbr.rel (0) target = $region17
  $region16: #{jhgda_forward.17} parent=0 // pred_region
    _
  $region17: #{jhgda_forward.17} parent=0 // pred_fallthru
    _
  %v18 = vld [vmem:[%s1] sm:$0xff]
  %v19 = vld [vmem:[%s1 + $0x8] sm:$0xff]
  %v20 = vld [vmem:[%s1 + $0x10] sm:$0xff]
  %v21 = vld [vmem:[%s1 + $0x18] sm:$0xff]
  %v22 = vld [vmem:[%s0] sm:$0xff]
  %v23 = vld [vmem:[%s0 + $0x8] sm:$0xff]
  %v24 = vld [vmem:[%s0 + $0x10] sm:$0xff]
  %v25 = vld [vmem:[%s0 + $0x18] sm:$0xff]
  %v26 = vld [vmem:[%s2] sm:$0xff]
  %v27 = vld [vmem:[%s2 + $0x8] sm:$0xff]
  %v28 = vld [vmem:[%s2 + $0x10] sm:$0xff]
  %v29 = vld [vmem:[%s2 + $0x18] sm:$0xff]
  %v30 = vpack.c.bf16 %v23, %v22
  %v31 = vpack.c.bf16 %v25, %v24
  %v32 = vpack.c.bf16 %v27, %v26
  %v33 = vpack.c.bf16 %v29, %v28
  %vm34 = vcmask 261120
  %v36 = vsel %vm34, %v30, 0
  %v39 = vsel %vm34, %v31, 0
  %41 = vmatprep.subr.bf16.mxu0 0
  %42 = vmatpush1.bf16.msra.mxu0 0
  %43 = vmatprep.subr.bf16.mxu0 0
  %44 = vmatpush1.bf16.msra.mxu0 0
  %45 = vmatprep.subr.bf16.mxu0 0
  %46 = vmatpush1.bf16.msra.mxu0 0
  %47 = vmatprep.subr.bf16.mxu0 0
  %48 = vmatpush1.bf16.msra.mxu0 0
  %49 = vmatprep.subr.bf16.mxu0 0
  %50 = vmatpush1.bf16.msra.mxu0 0
  %51 = vmatprep.subr.bf16.mxu0 0
  %52 = vmatpush1.bf16.msra.mxu0 0
  %53 = vmatprep.subr.bf16.mxu0 0
  %54 = vmatpush1.bf16.msra.mxu0 %v33
  %55 = vmatprep.subr.bf16.mxu0 0
  %56 = vmatpush1.bf16.msra.mxu0 %v32
  %57 = vmatprep.subr.bf16.mxu0 0
  %58 = vmatpush2.bf16.msra.mxu0 0
  %59 = vmatprep.subr.bf16.mxu0 0
  %60 = vmatpush2.bf16.msra.mxu0 0
  %61 = vmatprep.subr.bf16.mxu0 0
  %62 = vmatpush2.bf16.msra.mxu0 0
  %63 = vmatprep.subr.bf16.mxu0 0
  %64 = vmatpush2.bf16.msra.mxu0 0
  %65 = vmatprep.subr.bf16.mxu0 0
  %66 = vmatpush2.bf16.msra.mxu0 0
  %67 = vmatprep.subr.bf16.mxu0 0
  %68 = vmatpush2.bf16.msra.mxu0 0
  %69 = vmatprep.subr.bf16.mxu0 0
  %70 = vmatpush2.bf16.msra.mxu0 0
  %71 = vmatprep.subr.bf16.mxu0 0
  %72 = vmatpush2.bf16.msra.mxu0 0
  %73 = vmatprep.mubr.bf16.mxu0 0
  %74 = vmatmul.mubr.bf16.gmra.mxu0 %v36
  %v75 = vpop.f32.mrf.mxu0
  %v76 = vadd.f32 0.0, %v75
  %v77 = vpop.f32.mrf.mxu0
  %v78 = vpop.f32.mrf.mxu0
  %v79 = vadd.f32 0.0, %v78
  %v80 = vpop.f32.mrf.mxu0
  %81 = vmatprep.mubr.bf16.mxu0 0
  %82 = vmatmul.mubr.bf16.gmra.mxu0 %v39
  %v83 = vpop.f32.mrf.mxu0
  %v84 = vadd.f32 0.0, %v83
  %v85 = vpop.f32.mrf.mxu0
  %v86 = vpop.f32.mrf.mxu0
  %v87 = vadd.f32 0.0, %v86
  %v88 = vpop.f32.mrf.mxu0
  %89 = vdwg.mxu0
  %90 = vxpose.xlu0.b32.start [1/16] %v18, 128
  %91 = vxpose.xlu0.b32.cont [2/16] %v19, 128
  %92 = vxpose.xlu0.b32.cont [3/16] %v20, 128
  %93 = vxpose.xlu0.b32.cont [4/16] %v21, 128
  %94 = vxpose.xlu0.b32.cont [5/16] 0.0, 128
  %95 = vxpose.xlu0.b32.cont [6/16] 0.0, 128
  %96 = vxpose.xlu0.b32.cont [7/16] 0.0, 128
  %97 = vxpose.xlu0.b32.cont [8/16] 0.0, 128
  %98 = vxpose.xlu0.b32.cont [9/16] 0.0, 128
  %99 = vxpose.xlu0.b32.cont [10/16] 0.0, 128
  %100 = vxpose.xlu0.b32.cont [11/16] 0.0, 128
  %101 = vxpose.xlu0.b32.cont [12/16] 0.0, 128
  %102 = vxpose.xlu0.b32.cont [13/16] 0.0, 128
  %103 = vxpose.xlu0.b32.cont [14/16] 0.0, 128
  %104 = vxpose.xlu0.b32.cont [15/16] 0.0, 128
  %105 = vxpose.xlu0.b32.end [16/16] 0.0, 128
  %v106 = vpop.trf.xlu0
  %v107 = vpop.trf.xlu0
  %v108 = vpop.trf.xlu0
  %v109 = vpop.trf.xlu0
  %v110 = vpop.trf.xlu0
  %v111 = vpop.trf.xlu0
  %v112 = vpop.trf.xlu0
  %v113 = vpop.trf.xlu0
  %v114 = vpop.trf.xlu0
  %v115 = vpop.trf.xlu0
  %v116 = vpop.trf.xlu0
  %v117 = vpop.trf.xlu0
  %v118 = vpop.trf.xlu0
  %v119 = vpop.trf.xlu0
  %v120 = vpop.trf.xlu0
  %v121 = vpop.trf.xlu0
  %v123 = vsel %vm34, %v106, 0
  %v126 = vsel %vm34, %v107, 0
  %v129 = vsel %vm34, %v108, 0
  %v132 = vsel %vm34, %v109, 0
  %134 = vmatprep.subr.mxu0 0.0
  %135 = vmatpush1.msra.mxu0 0.0
  %136 = vmatprep.subr.mxu0 0.0
  %137 = vmatpush1.msra.mxu0 0.0
  %138 = vmatprep.subr.mxu0 0.0
  %139 = vmatpush1.msra.mxu0 0.0
  %140 = vmatprep.subr.mxu0 0.0
  %141 = vmatpush1.msra.mxu0 0.0
  %142 = vmatprep.subr.mxu0 0.0
  %143 = vmatpush1.msra.mxu0 0.0
  %144 = vmatprep.subr.mxu0 0.0
  %145 = vmatpush1.msra.mxu0 0.0
  %146 = vmatprep.subr.mxu0 0.0
  %147 = vmatpush1.msra.mxu0 0.0
  %148 = vmatprep.subr.mxu0 0.0
  %149 = vmatpush1.msra.mxu0 0.0
  %150 = vmatprep.subr.mxu0 0.0
  %151 = vmatpush1.msra.mxu0 0.0
  %152 = vmatprep.subr.mxu0 0.0
  %153 = vmatpush1.msra.mxu0 0.0
  %154 = vmatprep.subr.mxu0 0.0
  %155 = vmatpush1.msra.mxu0 0.0
  %156 = vmatprep.subr.mxu0 0.0
  %157 = vmatpush1.msra.mxu0 0.0
  %158 = vmatprep.subr.mxu0 0.0
  %159 = vmatpush1.msra.mxu0 1.0
  %160 = vmatprep.subr.mxu0 0.0
  %161 = vmatpush1.msra.mxu0 1.0
  %162 = vmatprep.subr.mxu0 0.0
  %163 = vmatpush1.msra.mxu0 1.0
  %164 = vmatprep.subr.mxu0 0.0
  %165 = vmatpush1.msra.mxu0 1.0
  %166 = vmatprep.subr.mxu0 0.0
  %167 = vmatpush2.msra.mxu0 0.0
  %168 = vmatprep.subr.mxu0 0.0
  %169 = vmatpush2.msra.mxu0 0.0
  %170 = vmatprep.subr.mxu0 0.0
  %171 = vmatpush2.msra.mxu0 0.0
  %172 = vmatprep.subr.mxu0 0.0
  %173 = vmatpush2.msra.mxu0 0.0
  %174 = vmatprep.subr.mxu0 0.0
  %175 = vmatpush2.msra.mxu0 0.0
  %176 = vmatprep.subr.mxu0 0.0
  %177 = vmatpush2.msra.mxu0 0.0
  %178 = vmatprep.subr.mxu0 0.0
  %179 = vmatpush2.msra.mxu0 0.0
  %180 = vmatprep.subr.mxu0 0.0
  %181 = vmatpush2.msra.mxu0 0.0
  %182 = vmatprep.subr.mxu0 0.0
  %183 = vmatpush2.msra.mxu0 0.0
  %184 = vmatprep.subr.mxu0 0.0
  %185 = vmatpush2.msra.mxu0 0.0
  %186 = vmatprep.subr.mxu0 0.0
  %187 = vmatpush2.msra.mxu0 0.0
  %188 = vmatprep.subr.mxu0 0.0
  %189 = vmatpush2.msra.mxu0 0.0
  %190 = vmatprep.subr.mxu0 0.0
  %191 = vmatpush2.msra.mxu0 0.0
  %192 = vmatprep.subr.mxu0 0.0
  %193 = vmatpush2.msra.mxu0 0.0
  %194 = vmatprep.subr.mxu0 0.0
  %195 = vmatpush2.msra.mxu0 0.0
  %196 = vmatprep.subr.mxu0 0.0
  %197 = vmatpush2.msra.mxu0 0.0
  %198 = vmatprep.mubr.f32.mxu0 0.0
  %199 = vmatmul.mubr.f32.gmra.mxu0 %v123
  %v200 = vpop.f32.mrf.mxu0
  %v201 = vadd.f32 0.0, %v200
  %v202 = vpop.f32.mrf.mxu0
  %203 = vmatprep.mubr.f32.mxu0 0.0
  %204 = vmatmul.mubr.f32.gmra.mxu0 %v126
  %v205 = vpop.f32.mrf.mxu0
  %v206 = vadd.f32 0.0, %v205
  %v207 = vpop.f32.mrf.mxu0
  %208 = vmatprep.mubr.f32.mxu0 0.0
  %209 = vmatmul.mubr.f32.gmra.mxu0 %v129
  %v210 = vpop.f32.mrf.mxu0
  %v211 = vadd.f32 0.0, %v210
  %v212 = vpop.f32.mrf.mxu0
  %213 = vmatprep.mubr.f32.mxu0 0.0
  %214 = vmatmul.mubr.f32.gmra.mxu0 %v132
  %v215 = vpop.f32.mrf.mxu0
  %v216 = vadd.f32 0.0, %v215
  %v217 = vpop.f32.mrf.mxu0
  %218 = vdwg.mxu0
  %vm219 = vcmp.gt.f32.partialorder %v201, 0.0
  %vm220 = vcmp.gt.f32.partialorder %v206, 0.0
  %vm221 = vcmp.gt.f32.partialorder %v211, 0.0
  %vm222 = vcmp.gt.f32.partialorder %v216, 0.0
  %v223 = vrsqrt.pop %v201
  %v224 = vrsqrt.pop %v206
  %v225 = vrsqrt.pop %v211
  %v226 = vrsqrt.pop %v216
  %v227 = vsel %vm219, %v223, 0.0
  %v228 = vsel %vm220, %v224, 0.0
  %v229 = vsel %vm221, %v225, 0.0
  %v230 = vsel %vm222, %v226, 0.0
  %232 = vset.pattern.permute.xlu0 0
  %233 = vperm.xlu0 %232, %v227
  %v234 = vpop.permute.xlu0 %233
  %237 = vset.pattern.permute.xlu0 0
  %238 = vperm.xlu0 %237, %v228
  %v239 = vpop.permute.xlu0 %238
  %242 = vset.pattern.permute.xlu0 0
  %243 = vperm.xlu0 %242, %v229
  %v244 = vpop.permute.xlu0 %243
  %247 = vset.pattern.permute.xlu0 0
  %248 = vperm.xlu0 %247, %v230
  %v249 = vpop.permute.xlu0 %248
  %v251 = vmul.f32 %v234, %v76
  %v252 = vmul.f32 %v239, %v79
  %v253 = vmul.f32 %v244, %v84
  %v254 = vmul.f32 %v249, %v87
  %v255 = vpack.c.bf16 %v19, %v18
  %v256 = vpack.c.bf16 %v21, %v20
  %v257 = vpack.c.bf16 %v252, %v251
  %v258 = vpack.c.bf16 %v254, %v253
  %259 = vxpose.xlu0.c.b16.start [1/8] %v255, 128
  %260 = vxpose.xlu0.c.b16.cont [2/8] %v256, 128
  %261 = vxpose.xlu0.c.b16.cont [3/8] 0, 128
  %262 = vxpose.xlu0.c.b16.cont [4/8] 0, 128
  %263 = vxpose.xlu0.c.b16.cont [5/8] 0, 128
  %264 = vxpose.xlu0.c.b16.cont [6/8] 0, 128
  %265 = vxpose.xlu0.c.b16.cont [7/8] 0, 128
  %266 = vxpose.xlu0.c.b16.end [8/8] 0, 128
  %v267 = vpop.trf.xlu0
  %v268 = vpop.trf.xlu0
  %v269 = vpop.trf.xlu0
  %v270 = vpop.trf.xlu0
  %v271 = vpop.trf.xlu0
  %v272 = vpop.trf.xlu0
  %v273 = vpop.trf.xlu0
  %v274 = vpop.trf.xlu0
  %v276 = vsel %vm34, %v267, 0
  %v279 = vsel %vm34, %v268, 0
  %281 = vmatprep.subr.bf16.mxu0 0
  %282 = vmatpush1.bf16.msra.mxu0 0
  %283 = vmatprep.subr.bf16.mxu0 0
  %284 = vmatpush1.bf16.msra.mxu0 0
  %285 = vmatprep.subr.bf16.mxu0 0
  %286 = vmatpush1.bf16.msra.mxu0 0
  %287 = vmatprep.subr.bf16.mxu0 0
  %288 = vmatpush1.bf16.msra.mxu0 0
  %289 = vmatprep.subr.bf16.mxu0 0
  %290 = vmatpush1.bf16.msra.mxu0 0
  %291 = vmatprep.subr.bf16.mxu0 0
  %292 = vmatpush1.bf16.msra.mxu0 0
  %293 = vmatprep.subr.bf16.mxu0 0
  %294 = vmatpush1.bf16.msra.mxu0 %v258
  %295 = vmatprep.subr.bf16.mxu0 0
  %296 = vmatpush1.bf16.msra.mxu0 %v257
  %297 = vmatprep.subr.bf16.mxu0 0
  %298 = vmatpush2.bf16.msra.mxu0 0
  %299 = vmatprep.subr.bf16.mxu0 0
  %300 = vmatpush2.bf16.msra.mxu0 0
  %301 = vmatprep.subr.bf16.mxu0 0
  %302 = vmatpush2.bf16.msra.mxu0 0
  %303 = vmatprep.subr.bf16.mxu0 0
  %304 = vmatpush2.bf16.msra.mxu0 0
  %305 = vmatprep.subr.bf16.mxu0 0
  %306 = vmatpush2.bf16.msra.mxu0 0
  %307 = vmatprep.subr.bf16.mxu0 0
  %308 = vmatpush2.bf16.msra.mxu0 0
  %309 = vmatprep.subr.bf16.mxu0 0
  %310 = vmatpush2.bf16.msra.mxu0 0
  %311 = vmatprep.subr.bf16.mxu0 0
  %312 = vmatpush2.bf16.msra.mxu0 0
  %313 = vmatprep.mubr.bf16.mxu0 0
  %314 = vmatmul.mubr.bf16.gmra.mxu0 %v276
  %v315 = vpop.f32.mrf.mxu0
  %v316 = vadd.f32 0.0, %v315
  %v317 = vpop.f32.mrf.mxu0
  %v318 = vpop.f32.mrf.mxu0
  %v319 = vadd.f32 0.0, %v318
  %v320 = vpop.f32.mrf.mxu0
  %321 = vmatprep.mubr.bf16.mxu0 0
  %322 = vmatmul.mubr.bf16.gmra.mxu0 %v279
  %v323 = vpop.f32.mrf.mxu0
  %v324 = vadd.f32 0.0, %v323
  %v325 = vpop.f32.mrf.mxu0
  %v326 = vpop.f32.mrf.mxu0
  %v327 = vadd.f32 0.0, %v326
  %v328 = vpop.f32.mrf.mxu0
  %329 = vdwg.mxu0
  %v330 = vmul.f32 %v234, %v316
  %v331 = vmul.f32 %v239, %v319
  %v332 = vmul.f32 %v244, %v324
  %v333 = vmul.f32 %v249, %v327
  %v334 = vld [vmem:[%s3] sm:$0x1]
  %v336 = vlaneseq
  %v337 = vshrl.u32 %v336, 7
  %v338 = vsub.s32 0, %v337
  %v339 = vrot.slane %v334, %v338
  %v341 = vadd.f32 %v330, %v339
  %v342 = vadd.f32 %v331, %v339
  %v343 = vadd.f32 %v332, %v339
  %v344 = vadd.f32 %v333, %v339
  %v345 = vmax.f32 %v341, 0.0
  %v346 = vmax.f32 %v342, 0.0
  %v347 = vmax.f32 %v343, 0.0
  %v348 = vmax.f32 %v344, 0.0
  %349 = vst.msk [vmem:[%s4] sm:$0xff] %vm34, %v345
  %350 = vst.msk [vmem:[%s4 + $0x8] sm:$0xff] %vm34, %v346
  %351 = vst.msk [vmem:[%s4 + $0x10] sm:$0xff] %vm34, %v347
  %352 = vst.msk [vmem:[%s4 + $0x18] sm:$0xff] %vm34, %v348
  // Predicated region
  $region18: #{jhgda_forward.17} parent=0 // pred_check
    _
  $region19: #{jhgda_forward.17} parent=0 // pred_check_branch
    %354 = sbr.rel (0) target = $region21
  $region20: #{jhgda_forward.17} parent=0 // pred_region
    _
  $region21: #{jhgda_forward.17} parent=0 // pred_fallthru
    _
  // Predicated region
  $region22: #{jhgda_forward.17} parent=0 // pred_check
    _
  $region23: #{jhgda_forward.17} parent=0 // pred_check_branch
    %356 = sbr.rel (0) target = $region25
  $region24: #{jhgda_forward.17} parent=0 // pred_region
    _
  $region25: #{jhgda_forward.17} parent=0 // pred_fallthru
    _

// kernel: jhgda_forward.15
$region0: #{jhgda_forward.15}
  #allocation0 [shape = 'u32[]', space=smem, size = 0x4, offset = 0x4, fixed_abs, tag = 'smem constant byte address 0x4 - core index']
  #allocation1 [shape = 'u32[144,128]{1,0:T(1,128)}', space=vmem, size = 0x12000, scoped, tag = 'internal scratch']
  %s0 = inlined_call_operand.vmem [shape: f32[64,16], index: 0, kind: input, shape index: {}]
  %s1 = inlined_call_operand.vmem [shape: f32[64,64], index: 1, kind: input, shape index: {}]
  %s2 = inlined_call_operand.vmem [shape: f32[16,32], index: 2, kind: input, shape index: {}]
  %s3 = inlined_call_operand.vmem [shape: f32[1,32], index: 3, kind: input, shape index: {}]
  %s4 = inlined_call_operand.vmem [shape: f32[64,32], index: 4, kind: input, shape index: {}]
  %s5 = inlined_call_operand.vmem [shape: f32[64,8], index: 5, kind: input, shape index: {}]
  %s6 = inlined_call_operand.hbm [shape: f32[64,64], index: 6, kind: input, shape index: {}]
  %s7 = inlined_call_operand.vmem [shape: f32[64,32], index: 7, kind: output, shape index: {0}]
  %s8 = inlined_call_operand.vmem [shape: f32[32,32], index: 8, kind: output, shape index: {1}]
  %s9 = inlined_call_operand.vmem [shape: f32[32,32], index: 9, kind: output, shape index: {2}]
  %s10 = inlined_call_operand.vmem [shape: f32[32,8], index: 10, kind: output, shape index: {3}]
  %s11 = inlined_call_operand.hbm [shape: f32[1,1], index: 11, kind: output, shape index: {4}]
  %s12 = inlined_call_operand.hbm [shape: f32[1,1], index: 12, kind: output, shape index: {5}]
  %s13 = inlined_call_operand.hbm [shape: f32[1,1], index: 13, kind: output, shape index: {6}]
  %14 = xla_tuple %s7, %s8, %s9, %s10, %s11, %s12, %s13
  %s15 = sld [smem:[#allocation0]]
  $region90: #{jhgda_forward.15} parent=0
    _
  %s17 = ssub.s32 1, %s15
  %s18 = scalar_select 0, %s17, %s15
  $region1: #{jhgda_forward.15} parent=0
    #allocation2 [shape = 'u8[32768]{0}', space=vmem, size = 0x8000, scoped, tag = 'input window, operand 6, single buffered']
    #allocation3 [shape = 's32[1]{0}', space=sflag, size = 0x4, scoped, tag = 'scoped memory for jhgda_forward.15']
    #allocation4 [shape = 's32[1]{0}', space=sflag, size = 0x4, scoped, tag = 'scoped memory for jhgda_forward.15']
    #allocation5 [shape = 'u8[512]{0}', space=smem, size = 0x200, scoped, tag = 'output window, operand 4, single buffered']
    #allocation6 [shape = 'u8[512]{0}', space=smem, size = 0x200, scoped, tag = 'output window, operand 5, single buffered']
    #allocation7 [shape = 's32[1]{0}', space=sflag, size = 0x4, scoped, tag = 'scoped memory for jhgda_forward.15']
    #allocation8 [shape = 'u8[512]{0}', space=smem, size = 0x200, scoped, tag = 'output window, operand 6, single buffered']
    %19 = vsyncpa [#allocation3], 0
    %20 = vsyncpa [#allocation4], 0
    %21 = vsyncpa [#allocation7], 0
    // Predicated region
    $region2: #{jhgda_forward.15} parent=1 // pred_check
      _
    $region3: #{jhgda_forward.15} parent=1 // pred_check_branch
      %23 = sbr.rel (0) target = $region5
    $region4: #{jhgda_forward.15} parent=1 // pred_region
      _
    $region5: #{jhgda_forward.15} parent=1 // pred_fallthru
      _
    // Predicated region
    $region6: #{jhgda_forward.15} parent=1 // pred_check
      _
    $region7: #{jhgda_forward.15} parent=1 // pred_check_branch
      %25 = sbr.rel (0) target = $region9
    $region8: #{jhgda_forward.15} parent=1 // pred_region
      _
    $region9: #{jhgda_forward.15} parent=1 // pred_fallthru
      _
    // Predicated region
    $region10: #{jhgda_forward.15} parent=1 // pred_check
      _
    $region11: #{jhgda_forward.15} parent=1 // pred_check_branch
      %27 = sbr.rel (0) target = $region13
    $region12: #{jhgda_forward.15} parent=1 // pred_region
      _
    $region13: #{jhgda_forward.15} parent=1 // pred_fallthru
      _
    // Predicated region
    $region14: #{jhgda_forward.15} parent=1 // pred_check
      _
    $region15: #{jhgda_forward.15} parent=1 // pred_check_branch
      %29 = sbr.rel (0) target = $region17
    $region16: #{jhgda_forward.15} parent=1 // pred_region
      _
    $region17: #{jhgda_forward.15} parent=1 // pred_fallthru
      _
    // Predicated region
    $region18: #{jhgda_forward.15} parent=1 // pred_check
      _
    $region19: #{jhgda_forward.15} parent=1 // pred_check_branch
      %31 = sbr.rel (0) target = $region21
    $region20: #{jhgda_forward.15} parent=1 // pred_region
      _
    $region21: #{jhgda_forward.15} parent=1 // pred_fallthru
      _
    // Predicated region
    $region22: #{jhgda_forward.15} parent=1 // pred_check
      _
    $region23: #{jhgda_forward.15} parent=1 // pred_check_branch
      %33 = sbr.rel (0) target = $region25
    $region24: #{jhgda_forward.15} parent=1 // pred_region
      _
    $region25: #{jhgda_forward.15} parent=1 // pred_fallthru
      _
    // Predicated region
    $region26: #{jhgda_forward.15} parent=1 // pred_check
      _
    $region27: #{jhgda_forward.15} parent=1 // pred_check_branch
      %35 = sbr.rel (0) target = $region29
    $region28: #{jhgda_forward.15} parent=1 // pred_region
      %s37 = ssub.s32 1024, 1024
      %38 = vsyncadd [#allocation3], %s37
      %s39 = sshll.u32 [#allocation2], 4
      %s40 = int_to_ptr.vmem [resolvable:$true] %s39
      %45 = dma.hbm_to_vmem [thread:$0]  %s6, 1024, %s40, [#allocation3], 128, 128, 8
    $region29: #{jhgda_forward.15} parent=1 // pred_fallthru
      _
    // Predicated region
    $region30: #{jhgda_forward.15} parent=1 // pred_check
      _
    $region31: #{jhgda_forward.15} parent=1 // pred_check_branch
      %47 = sbr.rel (0) target = $region33
    $region32: #{jhgda_forward.15} parent=1 // pred_region
      %48 = dma.done [#allocation3], 1024
    $region33: #{jhgda_forward.15} parent=1 // pred_fallthru
      _
    %v50 = vld [vmem:[%s1] sm:$0xff]
    %v51 = vld [vmem:[%s1 + $0x8] sm:$0xff]
    %v52 = vld [vmem:[%s1 + $0x10] sm:$0xff]
    %v53 = vld [vmem:[%s1 + $0x18] sm:$0xff]
    %v54 = vld [vmem:[%s1 + $0x20] sm:$0xff]
    %v55 = vld [vmem:[%s1 + $0x28] sm:$0xff]
    %v56 = vld [vmem:[%s1 + $0x30] sm:$0xff]
    %v57 = vld [vmem:[%s1 + $0x38] sm:$0xff]
    %v58 = vld [vmem:[%s0] sm:$0xff]
    %v59 = vld [vmem:[%s0 + $0x8] sm:$0xff]
    %v60 = vld [vmem:[%s0 + $0x10] sm:$0xff]
    %v61 = vld [vmem:[%s0 + $0x18] sm:$0xff]
    %v62 = vld [vmem:[%s0 + $0x20] sm:$0xff]
    %v63 = vld [vmem:[%s0 + $0x28] sm:$0xff]
    %v64 = vld [vmem:[%s0 + $0x30] sm:$0xff]
    %v65 = vld [vmem:[%s0 + $0x38] sm:$0xff]
    %v66 = vld [vmem:[%s2] sm:$0xff]
    %v67 = vld [vmem:[%s2 + $0x8] sm:$0xff]
    %v68 = vpack.c.bf16 %v59, %v58
    %v69 = vpack.c.bf16 %v61, %v60
    %v70 = vpack.c.bf16 %v63, %v62
    %v71 = vpack.c.bf16 %v65, %v64
    %v72 = vpack.c.bf16 %v67, %v66
    %vm73 = vcmask 130048
    %v75 = vsel %vm73, %v68, 0
    %v78 = vsel %vm73, %v69, 0
    %v81 = vsel %vm73, %v70, 0
    %v84 = vsel %vm73, %v71, 0
    %86 = vmatprep.subr.bf16.mxu0 0
    %87 = vmatpush1.bf16.msra.mxu0 0
    %88 = vmatprep.subr.bf16.mxu0 0
    %89 = vmatpush1.bf16.msra.mxu0 0
    %90 = vmatprep.subr.bf16.mxu0 0
    %91 = vmatpush1.bf16.msra.mxu0 0
    %92 = vmatprep.subr.bf16.mxu0 0
    %93 = vmatpush1.bf16.msra.mxu0 0
    %94 = vmatprep.subr.bf16.mxu0 0
    %95 = vmatpush1.bf16.msra.mxu0 0
    %96 = vmatprep.subr.bf16.mxu0 0
    %97 = vmatpush1.bf16.msra.mxu0 0
    %98 = vmatprep.subr.bf16.mxu0 0
    %99 = vmatpush1.bf16.msra.mxu0 0
    %100 = vmatprep.subr.bf16.mxu0 0
    %101 = vmatpush1.bf16.msra.mxu0 %v72
    %102 = vmatprep.subr.bf16.mxu0 0
    %103 = vmatpush2.bf16.msra.mxu0 0
    %104 = vmatprep.subr.bf16.mxu0 0
    %105 = vmatpush2.bf16.msra.mxu0 0
    %106 = vmatprep.subr.bf16.mxu0 0
    %107 = vmatpush2.bf16.msra.mxu0 0
    %108 = vmatprep.subr.bf16.mxu0 0
    %109 = vmatpush2.bf16.msra.mxu0 0
    %110 = vmatprep.subr.bf16.mxu0 0
    %111 = vmatpush2.bf16.msra.mxu0 0
    %112 = vmatprep.subr.bf16.mxu0 0
    %113 = vmatpush2.bf16.msra.mxu0 0
    %114 = vmatprep.subr.bf16.mxu0 0
    %115 = vmatpush2.bf16.msra.mxu0 0
    %116 = vmatprep.subr.bf16.mxu0 0
    %117 = vmatpush2.bf16.msra.mxu0 0
    %118 = vmatprep.mubr.bf16.mxu0 0
    %119 = vmatmul.mubr.bf16.gmra.mxu0 %v75
    %v120 = vpop.f32.mrf.mxu0
    %v121 = vadd.f32 0.0, %v120
    %v122 = vpop.f32.mrf.mxu0
    %v123 = vpop.f32.mrf.mxu0
    %v124 = vadd.f32 0.0, %v123
    %v125 = vpop.f32.mrf.mxu0
    %126 = vmatprep.mubr.bf16.mxu0 0
    %127 = vmatmul.mubr.bf16.gmra.mxu0 %v78
    %v128 = vpop.f32.mrf.mxu0
    %v129 = vadd.f32 0.0, %v128
    %v130 = vpop.f32.mrf.mxu0
    %v131 = vpop.f32.mrf.mxu0
    %v132 = vadd.f32 0.0, %v131
    %v133 = vpop.f32.mrf.mxu0
    %134 = vmatprep.mubr.bf16.mxu0 0
    %135 = vmatmul.mubr.bf16.gmra.mxu0 %v81
    %v136 = vpop.f32.mrf.mxu0
    %v137 = vadd.f32 0.0, %v136
    %v138 = vpop.f32.mrf.mxu0
    %v139 = vpop.f32.mrf.mxu0
    %v140 = vadd.f32 0.0, %v139
    %v141 = vpop.f32.mrf.mxu0
    %142 = vmatprep.mubr.bf16.mxu0 0
    %143 = vmatmul.mubr.bf16.gmra.mxu0 %v84
    %v144 = vpop.f32.mrf.mxu0
    %v145 = vadd.f32 0.0, %v144
    %v146 = vpop.f32.mrf.mxu0
    %v147 = vpop.f32.mrf.mxu0
    %v148 = vadd.f32 0.0, %v147
    %v149 = vpop.f32.mrf.mxu0
    %150 = vdwg.mxu0
    %vm151 = vcmask 523264
    %v152 = vsel %vm151, %v50, 0.0
    %153 = vadd.xlane.f32.xlu0 %v152
    %v154 = vpop.xlane.xlu0 %153
    %v155 = vsel %vm151, %v51, 0.0
    %156 = vadd.xlane.f32.xlu0 %v155
    %v157 = vpop.xlane.xlu0 %156
    %v158 = vsel %vm151, %v52, 0.0
    %159 = vadd.xlane.f32.xlu0 %v158
    %v160 = vpop.xlane.xlu0 %159
    %v161 = vsel %vm151, %v53, 0.0
    %162 = vadd.xlane.f32.xlu0 %v161
    %v163 = vpop.xlane.xlu0 %162
    %v164 = vsel %vm151, %v54, 0.0
    %165 = vadd.xlane.f32.xlu0 %v164
    %v166 = vpop.xlane.xlu0 %165
    %v167 = vsel %vm151, %v55, 0.0
    %168 = vadd.xlane.f32.xlu0 %v167
    %v169 = vpop.xlane.xlu0 %168
    %v170 = vsel %vm151, %v56, 0.0
    %171 = vadd.xlane.f32.xlu0 %v170
    %v172 = vpop.xlane.xlu0 %171
    %v173 = vsel %vm151, %v57, 0.0
    %174 = vadd.xlane.f32.xlu0 %v173
    %v175 = vpop.xlane.xlu0 %174
    %vm176 = vcmp.gt.f32.partialorder %v154, 0.0
    %vm177 = vcmp.gt.f32.partialorder %v157, 0.0
    %vm178 = vcmp.gt.f32.partialorder %v160, 0.0
    %vm179 = vcmp.gt.f32.partialorder %v163, 0.0
    %vm180 = vcmp.gt.f32.partialorder %v166, 0.0
    %vm181 = vcmp.gt.f32.partialorder %v169, 0.0
    %vm182 = vcmp.gt.f32.partialorder %v172, 0.0
    %vm183 = vcmp.gt.f32.partialorder %v175, 0.0
    %v184 = vrsqrt.pop %v154
    %v185 = vrsqrt.pop %v157
    %v186 = vrsqrt.pop %v160
    %v187 = vrsqrt.pop %v163
    %v188 = vrsqrt.pop %v166
    %v189 = vrsqrt.pop %v169
    %v190 = vrsqrt.pop %v172
    %v191 = vrsqrt.pop %v175
    %v192 = vsel %vm176, %v184, 0.0
    %v193 = vsel %vm177, %v185, 0.0
    %v194 = vsel %vm178, %v186, 0.0
    %v195 = vsel %vm179, %v187, 0.0
    %v196 = vsel %vm180, %v188, 0.0
    %v197 = vsel %vm181, %v189, 0.0
    %v198 = vsel %vm182, %v190, 0.0
    %v199 = vsel %vm183, %v191, 0.0
    %v200 = vmul.f32 %v192, %v121
    %v201 = vmul.f32 %v193, %v124
    %v202 = vmul.f32 %v194, %v129
    %v203 = vmul.f32 %v195, %v132
    %v204 = vmul.f32 %v196, %v137
    %v205 = vmul.f32 %v197, %v140
    %v206 = vmul.f32 %v198, %v145
    %v207 = vmul.f32 %v199, %v148
    %v208 = vpack.c.bf16 %v51, %v50
    %v209 = vpack.c.bf16 %v53, %v52
    %v210 = vpack.c.bf16 %v55, %v54
    %v211 = vpack.c.bf16 %v57, %v56
    %v212 = vpack.c.bf16 %v201, %v200
    %v213 = vpack.c.bf16 %v203, %v202
    %v214 = vpack.c.bf16 %v205, %v204
    %v215 = vpack.c.bf16 %v207, %v206
    %v217 = vsel %vm151, %v208, 0
    %v220 = vsel %vm151, %v209, 0
    %v223 = vsel %vm151, %v210, 0
    %v226 = vsel %vm151, %v211, 0
    %228 = vmatprep.subr.bf16.mxu0 0
    %229 = vmatpush1.bf16.msra.mxu0 0
    %230 = vmatprep.subr.bf16.mxu0 0
    %231 = vmatpush1.bf16.msra.mxu0 0
    %232 = vmatprep.subr.bf16.mxu0 0
    %233 = vmatpush1.bf16.msra.mxu0 0
    %234 = vmatprep.subr.bf16.mxu0 0
    %235 = vmatpush1.bf16.msra.mxu0 0
    %236 = vmatprep.subr.bf16.mxu0 0
    %237 = vmatpush1.bf16.msra.mxu0 %v215
    %238 = vmatprep.subr.bf16.mxu0 0
    %239 = vmatpush1.bf16.msra.mxu0 %v214
    %240 = vmatprep.subr.bf16.mxu0 0
    %241 = vmatpush1.bf16.msra.mxu0 %v213
    %242 = vmatprep.subr.bf16.mxu0 0
    %243 = vmatpush1.bf16.msra.mxu0 %v212
    %244 = vmatprep.subr.bf16.mxu0 0
    %245 = vmatpush2.bf16.msra.mxu0 0
    %246 = vmatprep.subr.bf16.mxu0 0
    %247 = vmatpush2.bf16.msra.mxu0 0
    %248 = vmatprep.subr.bf16.mxu0 0
    %249 = vmatpush2.bf16.msra.mxu0 0
    %250 = vmatprep.subr.bf16.mxu0 0
    %251 = vmatpush2.bf16.msra.mxu0 0
    %252 = vmatprep.subr.bf16.mxu0 0
    %253 = vmatpush2.bf16.msra.mxu0 0
    %254 = vmatprep.subr.bf16.mxu0 0
    %255 = vmatpush2.bf16.msra.mxu0 0
    %256 = vmatprep.subr.bf16.mxu0 0
    %257 = vmatpush2.bf16.msra.mxu0 0
    %258 = vmatprep.subr.bf16.mxu0 0
    %259 = vmatpush2.bf16.msra.mxu0 0
    %260 = vmatprep.mubr.bf16.mxu0 0
    %261 = vmatmul.mubr.bf16.gmra.mxu0 %v217
    %v262 = vpop.f32.mrf.mxu0
    %v263 = vadd.f32 0.0, %v262
    %v264 = vpop.f32.mrf.mxu0
    %v265 = vpop.f32.mrf.mxu0
    %v266 = vadd.f32 0.0, %v265
    %v267 = vpop.f32.mrf.mxu0
    %268 = vmatprep.mubr.bf16.mxu0 0
    %269 = vmatmul.mubr.bf16.gmra.mxu0 %v220
    %v270 = vpop.f32.mrf.mxu0
    %v271 = vadd.f32 0.0, %v270
    %v272 = vpop.f32.mrf.mxu0
    %v273 = vpop.f32.mrf.mxu0
    %v274 = vadd.f32 0.0, %v273
    %v275 = vpop.f32.mrf.mxu0
    %276 = vmatprep.mubr.bf16.mxu0 0
    %277 = vmatmul.mubr.bf16.gmra.mxu0 %v223
    %v278 = vpop.f32.mrf.mxu0
    %v279 = vadd.f32 0.0, %v278
    %v280 = vpop.f32.mrf.mxu0
    %v281 = vpop.f32.mrf.mxu0
    %v282 = vadd.f32 0.0, %v281
    %v283 = vpop.f32.mrf.mxu0
    %284 = vmatprep.mubr.bf16.mxu0 0
    %285 = vmatmul.mubr.bf16.gmra.mxu0 %v226
    %v286 = vpop.f32.mrf.mxu0
    %v287 = vadd.f32 0.0, %v286
    %v288 = vpop.f32.mrf.mxu0
    %v289 = vpop.f32.mrf.mxu0
    %v290 = vadd.f32 0.0, %v289
    %v291 = vpop.f32.mrf.mxu0
    %292 = vdwg.mxu0
    %v293 = vmul.f32 %v192, %v263
    %v294 = vmul.f32 %v193, %v266
    %v295 = vmul.f32 %v194, %v271
    %v296 = vmul.f32 %v195, %v274
    %v297 = vmul.f32 %v196, %v279
    %v298 = vmul.f32 %v197, %v282
    %v299 = vmul.f32 %v198, %v287
    %v300 = vmul.f32 %v199, %v290
    %v301 = vld [vmem:[%s3] sm:$0x1]
    %v303 = vlaneseq
    %v304 = vshrl.u32 %v303, 7
    %v305 = vsub.s32 0, %v304
    %v306 = vrot.slane %v301, %v305
    %v308 = vadd.f32 %v293, %v306
    %v309 = vadd.f32 %v294, %v306
    %v310 = vadd.f32 %v295, %v306
    %v311 = vadd.f32 %v296, %v306
    %v312 = vadd.f32 %v297, %v306
    %v313 = vadd.f32 %v298, %v306
    %v314 = vadd.f32 %v299, %v306
    %v315 = vadd.f32 %v300, %v306
    %v316 = vmax.f32 %v308, 0.0
    %v317 = vmax.f32 %v309, 0.0
    %v318 = vmax.f32 %v310, 0.0
    %v319 = vmax.f32 %v311, 0.0
    %v320 = vmax.f32 %v312, 0.0
    %v321 = vmax.f32 %v313, 0.0
    %v322 = vmax.f32 %v314, 0.0
    %v323 = vmax.f32 %v315, 0.0
    %vm324 = vcmask 261120
    %v325 = vsel %vm324, %v316, -inf
    %326 = vmax.xlane.f32.xlu0 %v325
    %v327 = vpop.xlane.xlu0 %326
    %v328 = vsel %vm324, %v317, -inf
    %329 = vmax.xlane.f32.xlu0 %v328
    %v330 = vpop.xlane.xlu0 %329
    %v331 = vsel %vm324, %v318, -inf
    %332 = vmax.xlane.f32.xlu0 %v331
    %v333 = vpop.xlane.xlu0 %332
    %v334 = vsel %vm324, %v319, -inf
    %335 = vmax.xlane.f32.xlu0 %v334
    %v336 = vpop.xlane.xlu0 %335
    %v337 = vsel %vm324, %v320, -inf
    %338 = vmax.xlane.f32.xlu0 %v337
    %v339 = vpop.xlane.xlu0 %338
    %v340 = vsel %vm324, %v321, -inf
    %341 = vmax.xlane.f32.xlu0 %v340
    %v342 = vpop.xlane.xlu0 %341
    %v343 = vsel %vm324, %v322, -inf
    %344 = vmax.xlane.f32.xlu0 %v343
    %v345 = vpop.xlane.xlu0 %344
    %v346 = vsel %vm324, %v323, -inf
    %347 = vmax.xlane.f32.xlu0 %v346
    %v348 = vpop.xlane.xlu0 %347
    %v349 = vsub.f32 %v316, %v327
    %v350 = vsub.f32 %v317, %v330
    %v351 = vsub.f32 %v318, %v333
    %v352 = vsub.f32 %v319, %v336
    %v353 = vsub.f32 %v320, %v339
    %v354 = vsub.f32 %v321, %v342
    %v355 = vsub.f32 %v322, %v345
    %v356 = vsub.f32 %v323, %v348
    %v357 = vmul.f32 %v349, 1.442695
    %v358 = vpow.pop %v357
    %v359 = vmul.f32 %v350, 1.442695
    %v360 = vpow.pop %v359
    %v361 = vmul.f32 %v351, 1.442695
    %v362 = vpow.pop %v361
    %v363 = vmul.f32 %v352, 1.442695
    %v364 = vpow.pop %v363
    %v365 = vmul.f32 %v353, 1.442695
    %v366 = vpow.pop %v365
    %v367 = vmul.f32 %v354, 1.442695
    %v368 = vpow.pop %v367
    %v369 = vmul.f32 %v355, 1.442695
    %v370 = vpow.pop %v369
    %v371 = vmul.f32 %v356, 1.442695
    %v372 = vpow.pop %v371
    %v373 = vsel %vm324, %v358, 0.0
    %374 = vadd.xlane.f32.xlu0 %v373
    %v375 = vpop.xlane.xlu0 %374
    %v376 = vsel %vm324, %v360, 0.0
    %377 = vadd.xlane.f32.xlu0 %v376
    %v378 = vpop.xlane.xlu0 %377
    %v379 = vsel %vm324, %v362, 0.0
    %380 = vadd.xlane.f32.xlu0 %v379
    %v381 = vpop.xlane.xlu0 %380
    %v382 = vsel %vm324, %v364, 0.0
    %383 = vadd.xlane.f32.xlu0 %v382
    %v384 = vpop.xlane.xlu0 %383
    %v385 = vsel %vm324, %v366, 0.0
    %386 = vadd.xlane.f32.xlu0 %v385
    %v387 = vpop.xlane.xlu0 %386
    %v388 = vsel %vm324, %v368, 0.0
    %389 = vadd.xlane.f32.xlu0 %v388
    %v390 = vpop.xlane.xlu0 %389
    %v391 = vsel %vm324, %v370, 0.0
    %392 = vadd.xlane.f32.xlu0 %v391
    %v393 = vpop.xlane.xlu0 %392
    %v394 = vsel %vm324, %v372, 0.0
    %395 = vadd.xlane.f32.xlu0 %v394
    %v396 = vpop.xlane.xlu0 %395
    %v397 = vrcp.pop %v375
    %v398 = vmul.f32 %v358, %v397
    %v399 = vrcp.pop %v378
    %v400 = vmul.f32 %v360, %v399
    %v401 = vrcp.pop %v381
    %v402 = vmul.f32 %v362, %v401
    %v403 = vrcp.pop %v384
    %v404 = vmul.f32 %v364, %v403
    %v405 = vrcp.pop %v387
    %v406 = vmul.f32 %v366, %v405
    %v407 = vrcp.pop %v390
    %v408 = vmul.f32 %v368, %v407
    %v409 = vrcp.pop %v393
    %v410 = vmul.f32 %v370, %v409
    %v411 = vrcp.pop %v396
    %v412 = vmul.f32 %v372, %v411
    %v413 = vlog2.pop %v375
    %v414 = vmul.f32 %v413, 0.6931472
    %v415 = vlog2.pop %v378
    %v416 = vmul.f32 %v415, 0.6931472
    %v417 = vlog2.pop %v381
    %v418 = vmul.f32 %v417, 0.6931472
    %v419 = vlog2.pop %v384
    %v420 = vmul.f32 %v419, 0.6931472
    %v421 = vlog2.pop %v387
    %v422 = vmul.f32 %v421, 0.6931472
    %v423 = vlog2.pop %v390
    %v424 = vmul.f32 %v423, 0.6931472
    %v425 = vlog2.pop %v393
    %v426 = vmul.f32 %v425, 0.6931472
    %v427 = vlog2.pop %v396
    %v428 = vmul.f32 %v427, 0.6931472
    %v429 = vmul.f32 %v398, %v349
    %v430 = vmul.f32 %v400, %v350
    %v431 = vmul.f32 %v402, %v351
    %v432 = vmul.f32 %v404, %v352
    %v433 = vmul.f32 %v406, %v353
    %v434 = vmul.f32 %v408, %v354
    %v435 = vmul.f32 %v410, %v355
    %v436 = vmul.f32 %v412, %v356
    %v437 = vsel %vm324, %v429, 0.0
    %438 = vadd.xlane.f32.xlu0 %v437
    %v439 = vpop.xlane.xlu0 %438
    %v440 = vsel %vm324, %v430, 0.0
    %441 = vadd.xlane.f32.xlu0 %v440
    %v442 = vpop.xlane.xlu0 %441
    %v443 = vsel %vm324, %v431, 0.0
    %444 = vadd.xlane.f32.xlu0 %v443
    %v445 = vpop.xlane.xlu0 %444
    %v446 = vsel %vm324, %v432, 0.0
    %447 = vadd.xlane.f32.xlu0 %v446
    %v448 = vpop.xlane.xlu0 %447
    %v449 = vsel %vm324, %v433, 0.0
    %450 = vadd.xlane.f32.xlu0 %v449
    %v451 = vpop.xlane.xlu0 %450
    %v452 = vsel %vm324, %v434, 0.0
    %453 = vadd.xlane.f32.xlu0 %v452
    %v454 = vpop.xlane.xlu0 %453
    %v455 = vsel %vm324, %v435, 0.0
    %456 = vadd.xlane.f32.xlu0 %v455
    %v457 = vpop.xlane.xlu0 %456
    %v458 = vsel %vm324, %v436, 0.0
    %459 = vadd.xlane.f32.xlu0 %v458
    %v460 = vpop.xlane.xlu0 %459
    %v461 = vsub.f32 %v414, %v439
    %v462 = vsub.f32 %v416, %v442
    %v463 = vsub.f32 %v418, %v445
    %v464 = vsub.f32 %v420, %v448
    %v465 = vsub.f32 %v422, %v451
    %v466 = vsub.f32 %v424, %v454
    %v467 = vsub.f32 %v426, %v457
    %v468 = vsub.f32 %v428, %v460
    %vm469 = vcmask 7168
    %v470 = vsel %vm469, %v461, 0.0
    %v471 = vsel %vm469, %v462, 0.0
    %v472 = vadd.f32 %v470, %v471
    %v473 = vsel %vm469, %v463, 0.0
    %v474 = vadd.f32 %v472, %v473
    %v475 = vsel %vm469, %v464, 0.0
    %v476 = vadd.f32 %v474, %v475
    %v477 = vsel %vm469, %v465, 0.0
    %v478 = vadd.f32 %v476, %v477
    %v479 = vsel %vm469, %v466, 0.0
    %v480 = vadd.f32 %v478, %v479
    %v481 = vsel %vm469, %v467, 0.0
    %v482 = vadd.f32 %v480, %v481
    %v483 = vsel %vm469, %v468, 0.0
    %v484 = vadd.f32 %v482, %v483
    %485 = vadd.xlane.f32.xlu0 %v484
    %v486 = vpop.xlane.xlu0 %485
    %v487 = vrot.slane %v486, 4
    %v488 = vadd.f32 %v486, %v487
    %v489 = vrot.slane %v488, 2
    %v490 = vadd.f32 %v488, %v489
    %v491 = vrot.slane %v490, 1
    %v492 = vadd.f32 %v490, %v491
    %s493 = vtos %v492
    %v494 = vrcp.pop 64.0
    %s495 = vtos %v494
    %s496 = smul.f32 %s493, %s495
    %497 = vst.msk [vmem:[%s7] sm:$0xff] %vm324, %v398
    %498 = vst.msk [vmem:[%s7 + $0x8] sm:$0xff] %vm324, %v400
    %499 = vst.msk [vmem:[%s7 + $0x10] sm:$0xff] %vm324, %v402
    %500 = vst.msk [vmem:[%s7 + $0x18] sm:$0xff] %vm324, %v404
    %501 = vst.msk [vmem:[%s7 + $0x20] sm:$0xff] %vm324, %v406
    %502 = vst.msk [vmem:[%s7 + $0x28] sm:$0xff] %vm324, %v408
    %503 = vst.msk [vmem:[%s7 + $0x30] sm:$0xff] %vm324, %v410
    %504 = vst.msk [vmem:[%s7 + $0x38] sm:$0xff] %vm324, %v412
    %s505 = scalar_lea.smem [#allocation5], 0
    %506 = sst [smem:[%s505]] %s496
    %v507 = vld [vmem:[%s4] sm:$0xff]
    %v508 = vld [vmem:[%s4 + $0x8] sm:$0xff]
    %v509 = vld [vmem:[%s4 + $0x10] sm:$0xff]
    %v510 = vld [vmem:[%s4 + $0x18] sm:$0xff]
    %v511 = vld [vmem:[%s4 + $0x20] sm:$0xff]
    %v512 = vld [vmem:[%s4 + $0x28] sm:$0xff]
    %v513 = vld [vmem:[%s4 + $0x30] sm:$0xff]
    %v514 = vld [vmem:[%s4 + $0x38] sm:$0xff]
    %v515 = vpack.c.bf16 %v400, %v398
    %v516 = vpack.c.bf16 %v404, %v402
    %v517 = vpack.c.bf16 %v408, %v406
    %v518 = vpack.c.bf16 %v412, %v410
    %v519 = vpack.c.bf16 %v508, %v507
    %v520 = vpack.c.bf16 %v510, %v509
    %v521 = vpack.c.bf16 %v512, %v511
    %v522 = vpack.c.bf16 %v514, %v513
    %523 = vxpose.xlu0.c.b16.start [1/8] %v515, 128
    %524 = vxpose.xlu0.c.b16.cont [2/8] %v516, 128
    %525 = vxpose.xlu0.c.b16.cont [3/8] %v517, 128
    %526 = vxpose.xlu0.c.b16.cont [4/8] %v518, 128
    %527 = vxpose.xlu0.c.b16.cont [5/8] 0, 128
    %528 = vxpose.xlu0.c.b16.cont [6/8] 0, 128
    %529 = vxpose.xlu0.c.b16.cont [7/8] 0, 128
    %530 = vxpose.xlu0.c.b16.end [8/8] 0, 128
    %v531 = vpop.trf.xlu0
    %v532 = vpop.trf.xlu0
    %v533 = vpop.trf.xlu0
    %v534 = vpop.trf.xlu0
    %v535 = vpop.trf.xlu0
    %v536 = vpop.trf.xlu0
    %v537 = vpop.trf.xlu0
    %v538 = vpop.trf.xlu0
    %v540 = vsel %vm151, %v531, 0
    %v543 = vsel %vm151, %v532, 0
    %545 = vmatprep.subr.bf16.mxu0 0
    %546 = vmatpush1.bf16.msra.mxu0 0
    %547 = vmatprep.subr.bf16.mxu0 0
    %548 = vmatpush1.bf16.msra.mxu0 0
    %549 = vmatprep.subr.bf16.mxu0 0
    %550 = vmatpush1.bf16.msra.mxu0 0
    %551 = vmatprep.subr.bf16.mxu0 0
    %552 = vmatpush1.bf16.msra.mxu0 0
    %553 = vmatprep.subr.bf16.mxu0 0
    %554 = vmatpush1.bf16.msra.mxu0 %v522
    %555 = vmatprep.subr.bf16.mxu0 0
    %556 = vmatpush1.bf16.msra.mxu0 %v521
    %557 = vmatprep.subr.bf16.mxu0 0
    %558 = vmatpush1.bf16.msra.mxu0 %v520
    %559 = vmatprep.subr.bf16.mxu0 0
    %560 = vmatpush1.bf16.msra.mxu0 %v519
    %561 = vmatprep.subr.bf16.mxu0 0
    %562 = vmatpush2.bf16.msra.mxu0 0
    %563 = vmatprep.subr.bf16.mxu0 0
    %564 = vmatpush2.bf16.msra.mxu0 0
    %565 = vmatprep.subr.bf16.mxu0 0
    %566 = vmatpush2.bf16.msra.mxu0 0
    %567 = vmatprep.subr.bf16.mxu0 0
    %568 = vmatpush2.bf16.msra.mxu0 0
    %569 = vmatprep.subr.bf16.mxu0 0
    %570 = vmatpush2.bf16.msra.mxu0 0
    %571 = vmatprep.subr.bf16.mxu0 0
    %572 = vmatpush2.bf16.msra.mxu0 0
    %573 = vmatprep.subr.bf16.mxu0 0
    %574 = vmatpush2.bf16.msra.mxu0 0
    %575 = vmatprep.subr.bf16.mxu0 0
    %576 = vmatpush2.bf16.msra.mxu0 0
    %577 = vmatprep.mubr.bf16.mxu0 0
    %578 = vmatmul.mubr.bf16.gmra.mxu0 %v540
    %v579 = vpop.f32.mrf.mxu0
    %v580 = vadd.f32 0.0, %v579
    %v581 = vpop.f32.mrf.mxu0
    %v582 = vpop.f32.mrf.mxu0
    %v583 = vadd.f32 0.0, %v582
    %v584 = vpop.f32.mrf.mxu0
    %585 = vmatprep.mubr.bf16.mxu0 0
    %586 = vmatmul.mubr.bf16.gmra.mxu0 %v543
    %v587 = vpop.f32.mrf.mxu0
    %v588 = vadd.f32 0.0, %v587
    %v589 = vpop.f32.mrf.mxu0
    %v590 = vpop.f32.mrf.mxu0
    %v591 = vadd.f32 0.0, %v590
    %v592 = vpop.f32.mrf.mxu0
    %593 = vdwg.mxu0
    %594 = vst.msk [vmem:[%s8] sm:$0xff] %vm324, %v580
    %595 = vst.msk [vmem:[%s8 + $0x8] sm:$0xff] %vm324, %v583
    %596 = vst.msk [vmem:[%s8 + $0x10] sm:$0xff] %vm324, %v588
    %597 = vst.msk [vmem:[%s8 + $0x18] sm:$0xff] %vm324, %v591
    %v598 = vld [vmem:[%s5] sm:$0xff]
    %v599 = vld [vmem:[%s5 + $0x8] sm:$0xff]
    %v600 = vld [vmem:[%s5 + $0x10] sm:$0xff]
    %v601 = vld [vmem:[%s5 + $0x18] sm:$0xff]
    %v602 = vld [vmem:[%s5 + $0x20] sm:$0xff]
    %v603 = vld [vmem:[%s5 + $0x28] sm:$0xff]
    %v604 = vld [vmem:[%s5 + $0x30] sm:$0xff]
    %v605 = vld [vmem:[%s5 + $0x38] sm:$0xff]
    %v606 = vpack.c.bf16 %v599, %v598
    %v607 = vpack.c.bf16 %v601, %v600
    %v608 = vpack.c.bf16 %v603, %v602
    %v609 = vpack.c.bf16 %v605, %v604
    %610 = vmatprep.subr.bf16.mxu0 0
    %611 = vmatpush1.bf16.msra.mxu0 0
    %612 = vmatprep.subr.bf16.mxu0 0
    %613 = vmatpush1.bf16.msra.mxu0 0
    %614 = vmatprep.subr.bf16.mxu0 0
    %615 = vmatpush1.bf16.msra.mxu0 0
    %616 = vmatprep.subr.bf16.mxu0 0
    %617 = vmatpush1.bf16.msra.mxu0 0
    %618 = vmatprep.subr.bf16.mxu0 0
    %619 = vmatpush1.bf16.msra.mxu0 %v609
    %620 = vmatprep.subr.bf16.mxu0 0
    %621 = vmatpush1.bf16.msra.mxu0 %v608
    %622 = vmatprep.subr.bf16.mxu0 0
    %623 = vmatpush1.bf16.msra.mxu0 %v607
    %624 = vmatprep.subr.bf16.mxu0 0
    %625 = vmatpush1.bf16.msra.mxu0 %v606
    %626 = vmatprep.subr.bf16.mxu0 0
    %627 = vmatpush2.bf16.msra.mxu0 0
    %628 = vmatprep.subr.bf16.mxu0 0
    %629 = vmatpush2.bf16.msra.mxu0 0
    %630 = vmatprep.subr.bf16.mxu0 0
    %631 = vmatpush2.bf16.msra.mxu0 0
    %632 = vmatprep.subr.bf16.mxu0 0
    %633 = vmatpush2.bf16.msra.mxu0 0
    %634 = vmatprep.subr.bf16.mxu0 0
    %635 = vmatpush2.bf16.msra.mxu0 0
    %636 = vmatprep.subr.bf16.mxu0 0
    %637 = vmatpush2.bf16.msra.mxu0 0
    %638 = vmatprep.subr.bf16.mxu0 0
    %639 = vmatpush2.bf16.msra.mxu0 0
    %640 = vmatprep.subr.bf16.mxu0 0
    %641 = vmatpush2.bf16.msra.mxu0 0
    %642 = vmatprep.mubr.bf16.mxu0 0
    %643 = vmatmul.mubr.bf16.gmra.mxu0 %v540
    %v644 = vpop.f32.mrf.mxu0
    %v645 = vadd.f32 0.0, %v644
    %v646 = vpop.f32.mrf.mxu0
    %v647 = vpop.f32.mrf.mxu0
    %v648 = vadd.f32 0.0, %v647
    %v649 = vpop.f32.mrf.mxu0
    %650 = vmatprep.mubr.bf16.mxu0 0
    %651 = vmatmul.mubr.bf16.gmra.mxu0 %v543
    %v652 = vpop.f32.mrf.mxu0
    %v653 = vadd.f32 0.0, %v652
    %v654 = vpop.f32.mrf.mxu0
    %v655 = vpop.f32.mrf.mxu0
    %v656 = vadd.f32 0.0, %v655
    %v657 = vpop.f32.mrf.mxu0
    %658 = vdwg.mxu0
    %vm659 = vcmask 64512
    %v660 = vsel %vm659, %v645, -inf
    %661 = vmax.xlane.f32.xlu0 %v660
    %v662 = vpop.xlane.xlu0 %661
    %v663 = vsel %vm659, %v648, -inf
    %664 = vmax.xlane.f32.xlu0 %v663
    %v665 = vpop.xlane.xlu0 %664
    %v666 = vsel %vm659, %v653, -inf
    %667 = vmax.xlane.f32.xlu0 %v666
    %v668 = vpop.xlane.xlu0 %667
    %v669 = vsel %vm659, %v656, -inf
    %670 = vmax.xlane.f32.xlu0 %v669
    %v671 = vpop.xlane.xlu0 %670
    %v672 = vsub.f32 %v645, %v662
    %v673 = vsub.f32 %v648, %v665
    %v674 = vsub.f32 %v653, %v668
    %v675 = vsub.f32 %v656, %v671
    %v676 = vmul.f32 %v672, 1.442695
    %v677 = vpow.pop %v676
    %v678 = vmul.f32 %v673, 1.442695
    %v679 = vpow.pop %v678
    %v680 = vmul.f32 %v674, 1.442695
    %v681 = vpow.pop %v680
    %v682 = vmul.f32 %v675, 1.442695
    %v683 = vpow.pop %v682
    %v684 = vsel %vm659, %v677, 0.0
    %685 = vadd.xlane.f32.xlu0 %v684
    %v686 = vpop.xlane.xlu0 %685
    %v687 = vsel %vm659, %v679, 0.0
    %688 = vadd.xlane.f32.xlu0 %v687
    %v689 = vpop.xlane.xlu0 %688
    %v690 = vsel %vm659, %v681, 0.0
    %691 = vadd.xlane.f32.xlu0 %v690
    %v692 = vpop.xlane.xlu0 %691
    %v693 = vsel %vm659, %v683, 0.0
    %694 = vadd.xlane.f32.xlu0 %v693
    %v695 = vpop.xlane.xlu0 %694
    %v696 = vrcp.pop %v686
    %v697 = vmul.f32 %v677, %v696
    %v698 = vrcp.pop %v689
    %v699 = vmul.f32 %v679, %v698
    %v700 = vrcp.pop %v692
    %v701 = vmul.f32 %v681, %v700
    %v702 = vrcp.pop %v695
    %v703 = vmul.f32 %v683, %v702
    %v704 = vlog2.pop %v686
    %v705 = vmul.f32 %v704, 0.6931472
    %v706 = vlog2.pop %v689
    %v707 = vmul.f32 %v706, 0.6931472
    %v708 = vlog2.pop %v692
    %v709 = vmul.f32 %v708, 0.6931472
    %v710 = vlog2.pop %v695
    %v711 = vmul.f32 %v710, 0.6931472
    %v712 = vmul.f32 %v697, %v672
    %v713 = vmul.f32 %v699, %v673
    %v714 = vmul.f32 %v701, %v674
    %v715 = vmul.f32 %v703, %v675
    %v716 = vsel %vm659, %v712, 0.0
    %717 = vadd.xlane.f32.xlu0 %v716
    %v718 = vpop.xlane.xlu0 %717
    %v719 = vsel %vm659, %v713, 0.0
    %720 = vadd.xlane.f32.xlu0 %v719
    %v721 = vpop.xlane.xlu0 %720
    %v722 = vsel %vm659, %v714, 0.0
    %723 = vadd.xlane.f32.xlu0 %v722
    %v724 = vpop.xlane.xlu0 %723
    %v725 = vsel %vm659, %v715, 0.0
    %726 = vadd.xlane.f32.xlu0 %v725
    %v727 = vpop.xlane.xlu0 %726
    %v728 = vsub.f32 %v705, %v718
    %v729 = vsub.f32 %v707, %v721
    %v730 = vsub.f32 %v709, %v724
    %v731 = vsub.f32 %v711, %v727
    %v732 = vsel %vm469, %v728, 0.0
    %v733 = vsel %vm469, %v729, 0.0
    %v734 = vadd.f32 %v732, %v733
    %v735 = vsel %vm469, %v730, 0.0
    %v736 = vadd.f32 %v734, %v735
    %v737 = vsel %vm469, %v731, 0.0
    %v738 = vadd.f32 %v736, %v737
    %739 = vadd.xlane.f32.xlu0 %v738
    %v740 = vpop.xlane.xlu0 %739
    %v741 = vrot.slane %v740, 4
    %v742 = vadd.f32 %v740, %v741
    %v743 = vrot.slane %v742, 2
    %v744 = vadd.f32 %v742, %v743
    %v745 = vrot.slane %v744, 1
    %v746 = vadd.f32 %v744, %v745
    %s747 = vtos %v746
    %v748 = vrcp.pop 32.0
    %s749 = vtos %v748
    %s750 = smul.f32 %s747, %s749
    %751 = vst.msk [vmem:[%s10] sm:$0xff] %vm659, %v697
    %752 = vst.msk [vmem:[%s10 + $0x8] sm:$0xff] %vm659, %v699
    %753 = vst.msk [vmem:[%s10 + $0x10] sm:$0xff] %vm659, %v701
    %754 = vst.msk [vmem:[%s10 + $0x18] sm:$0xff] %vm659, %v703
    %s755 = scalar_lea.smem [#allocation6], 0
    %756 = sst [smem:[%s755]] %s750
    %v757 = vld [vmem:[#allocation2] sm:$0xff]
    %v758 = vld [vmem:[#allocation2 + $0x8] sm:$0xff]
    %v759 = vld [vmem:[#allocation2 + $0x10] sm:$0xff]
    %v760 = vld [vmem:[#allocation2 + $0x18] sm:$0xff]
    %v761 = vld [vmem:[#allocation2 + $0x20] sm:$0xff]
    %v762 = vld [vmem:[#allocation2 + $0x28] sm:$0xff]
    %v763 = vld [vmem:[#allocation2 + $0x30] sm:$0xff]
    %v764 = vld [vmem:[#allocation2 + $0x38] sm:$0xff]
    %v765 = vpack.c.bf16 %v758, %v757
    %v766 = vpack.c.bf16 %v760, %v759
    %v767 = vpack.c.bf16 %v762, %v761
    %v768 = vpack.c.bf16 %v764, %v763
    %v770 = vsel %vm151, %v765, 0
    %v773 = vsel %vm151, %v766, 0
    %v776 = vsel %vm151, %v767, 0
    %v779 = vsel %vm151, %v768, 0
    %781 = vmatprep.subr.bf16.mxu0 0
    %782 = vmatpush1.bf16.msra.mxu0 0
    %783 = vmatprep.subr.bf16.mxu0 0
    %784 = vmatpush1.bf16.msra.mxu0 0
    %785 = vmatprep.subr.bf16.mxu0 0
    %786 = vmatpush1.bf16.msra.mxu0 0
    %787 = vmatprep.subr.bf16.mxu0 0
    %788 = vmatpush1.bf16.msra.mxu0 0
    %789 = vmatprep.subr.bf16.mxu0 0
    %790 = vmatpush1.bf16.msra.mxu0 %v518
    %791 = vmatprep.subr.bf16.mxu0 0
    %792 = vmatpush1.bf16.msra.mxu0 %v517
    %793 = vmatprep.subr.bf16.mxu0 0
    %794 = vmatpush1.bf16.msra.mxu0 %v516
    %795 = vmatprep.subr.bf16.mxu0 0
    %796 = vmatpush1.bf16.msra.mxu0 %v515
    %797 = vmatprep.subr.bf16.mxu0 0
    %798 = vmatpush2.bf16.msra.mxu0 0
    %799 = vmatprep.subr.bf16.mxu0 0
    %800 = vmatpush2.bf16.msra.mxu0 0
    %801 = vmatprep.subr.bf16.mxu0 0
    %802 = vmatpush2.bf16.msra.mxu0 0
    %803 = vmatprep.subr.bf16.mxu0 0
    %804 = vmatpush2.bf16.msra.mxu0 0
    %805 = vmatprep.subr.bf16.mxu0 0
    %806 = vmatpush2.bf16.msra.mxu0 0
    %807 = vmatprep.subr.bf16.mxu0 0
    %808 = vmatpush2.bf16.msra.mxu0 0
    %809 = vmatprep.subr.bf16.mxu0 0
    %810 = vmatpush2.bf16.msra.mxu0 0
    %811 = vmatprep.subr.bf16.mxu0 0
    %812 = vmatpush2.bf16.msra.mxu0 0
    %813 = vmatprep.mubr.bf16.mxu0 0
    %814 = vmatmul.mubr.bf16.gmra.mxu0 %v770
    %v815 = vpop.f32.mrf.mxu0
    %v816 = vadd.f32 0.0, %v815
    %v817 = vpop.f32.mrf.mxu0
    %v818 = vpop.f32.mrf.mxu0
    %v819 = vadd.f32 0.0, %v818
    %v820 = vpop.f32.mrf.mxu0
    %821 = vmatprep.mubr.bf16.mxu0 0
    %822 = vmatmul.mubr.bf16.gmra.mxu0 %v773
    %v823 = vpop.f32.mrf.mxu0
    %v824 = vadd.f32 0.0, %v823
    %v825 = vpop.f32.mrf.mxu0
    %v826 = vpop.f32.mrf.mxu0
    %v827 = vadd.f32 0.0, %v826
    %v828 = vpop.f32.mrf.mxu0
    %829 = vmatprep.mubr.bf16.mxu0 0
    %830 = vmatmul.mubr.bf16.gmra.mxu0 %v776
    %v831 = vpop.f32.mrf.mxu0
    %v832 = vadd.f32 0.0, %v831
    %v833 = vpop.f32.mrf.mxu0
    %v834 = vpop.f32.mrf.mxu0
    %v835 = vadd.f32 0.0, %v834
    %v836 = vpop.f32.mrf.mxu0
    %837 = vmatprep.mubr.bf16.mxu0 0
    %838 = vmatmul.mubr.bf16.gmra.mxu0 %v779
    %v839 = vpop.f32.mrf.mxu0
    %v840 = vadd.f32 0.0, %v839
    %v841 = vpop.f32.mrf.mxu0
    %v842 = vpop.f32.mrf.mxu0
    %v843 = vadd.f32 0.0, %v842
    %v844 = vpop.f32.mrf.mxu0
    %845 = vdwg.mxu0
    %v846 = vpack.c.bf16 %v819, %v816
    %v847 = vpack.c.bf16 %v827, %v824
    %v848 = vpack.c.bf16 %v835, %v832
    %v849 = vpack.c.bf16 %v843, %v840
    %850 = vxpose.xlu0.c.b16.start [1/8] %v846, 128
    %851 = vxpose.xlu0.c.b16.cont [2/8] %v847, 128
    %852 = vxpose.xlu0.c.b16.cont [3/8] %v848, 128
    %853 = vxpose.xlu0.c.b16.cont [4/8] %v849, 128
    %854 = vxpose.xlu0.c.b16.cont [5/8] 0, 128
    %855 = vxpose.xlu0.c.b16.cont [6/8] 0, 128
    %856 = vxpose.xlu0.c.b16.cont [7/8] 0, 128
    %857 = vxpose.xlu0.c.b16.end [8/8] 0, 128
    %v858 = vpop.trf.xlu0
    %v859 = vpop.trf.xlu0
    %v860 = vpop.trf.xlu0
    %v861 = vpop.trf.xlu0
    %v862 = vpop.trf.xlu0
    %v863 = vpop.trf.xlu0
    %v864 = vpop.trf.xlu0
    %v865 = vpop.trf.xlu0
    %v867 = vsel %vm151, %v858, 0
    %v870 = vsel %vm151, %v859, 0
    %872 = vmatprep.subr.bf16.mxu0 0
    %873 = vmatpush1.bf16.msra.mxu0 0
    %874 = vmatprep.subr.bf16.mxu0 0
    %875 = vmatpush1.bf16.msra.mxu0 0
    %876 = vmatprep.subr.bf16.mxu0 0
    %877 = vmatpush1.bf16.msra.mxu0 0
    %878 = vmatprep.subr.bf16.mxu0 0
    %879 = vmatpush1.bf16.msra.mxu0 0
    %880 = vmatprep.subr.bf16.mxu0 0
    %881 = vmatpush1.bf16.msra.mxu0 %v518
    %882 = vmatprep.subr.bf16.mxu0 0
    %883 = vmatpush1.bf16.msra.mxu0 %v517
    %884 = vmatprep.subr.bf16.mxu0 0
    %885 = vmatpush1.bf16.msra.mxu0 %v516
    %886 = vmatprep.subr.bf16.mxu0 0
    %887 = vmatpush1.bf16.msra.mxu0 %v515
    %888 = vmatprep.subr.bf16.mxu0 0
    %889 = vmatpush2.bf16.msra.mxu0 0
    %890 = vmatprep.subr.bf16.mxu0 0
    %891 = vmatpush2.bf16.msra.mxu0 0
    %892 = vmatprep.subr.bf16.mxu0 0
    %893 = vmatpush2.bf16.msra.mxu0 0
    %894 = vmatprep.subr.bf16.mxu0 0
    %895 = vmatpush2.bf16.msra.mxu0 0
    %896 = vmatprep.subr.bf16.mxu0 0
    %897 = vmatpush2.bf16.msra.mxu0 0
    %898 = vmatprep.subr.bf16.mxu0 0
    %899 = vmatpush2.bf16.msra.mxu0 0
    %900 = vmatprep.subr.bf16.mxu0 0
    %901 = vmatpush2.bf16.msra.mxu0 0
    %902 = vmatprep.subr.bf16.mxu0 0
    %903 = vmatpush2.bf16.msra.mxu0 0
    %904 = vmatprep.mubr.bf16.mxu0 0
    %905 = vmatmul.mubr.bf16.gmra.mxu0 %v867
    %v906 = vpop.f32.mrf.mxu0
    %v907 = vadd.f32 0.0, %v906
    %v908 = vpop.f32.mrf.mxu0
    %v909 = vpop.f32.mrf.mxu0
    %v910 = vadd.f32 0.0, %v909
    %v911 = vpop.f32.mrf.mxu0
    %912 = vmatprep.mubr.bf16.mxu0 0
    %913 = vmatmul.mubr.bf16.gmra.mxu0 %v870
    %v914 = vpop.f32.mrf.mxu0
    %v915 = vadd.f32 0.0, %v914
    %v916 = vpop.f32.mrf.mxu0
    %v917 = vpop.f32.mrf.mxu0
    %v918 = vadd.f32 0.0, %v917
    %v919 = vpop.f32.mrf.mxu0
    %920 = vdwg.mxu0
    %921 = vst.msk [vmem:[%s9] sm:$0xff] %vm324, %v907
    %922 = vst.msk [vmem:[%s9 + $0x8] sm:$0xff] %vm324, %v910
    %923 = vst.msk [vmem:[%s9 + $0x10] sm:$0xff] %vm324, %v915
    %924 = vst.msk [vmem:[%s9 + $0x18] sm:$0xff] %vm324, %v918
    %v925 = vld [vmem:[%s7] sm:$0xff]
    %v926 = vld [vmem:[%s7 + $0x8] sm:$0xff]
    %v927 = vld [vmem:[%s7 + $0x10] sm:$0xff]
    %v928 = vld [vmem:[%s7 + $0x18] sm:$0xff]
    %v929 = vld [vmem:[%s7 + $0x20] sm:$0xff]
    %v930 = vld [vmem:[%s7 + $0x28] sm:$0xff]
    %v931 = vld [vmem:[%s7 + $0x30] sm:$0xff]
    %v932 = vld [vmem:[%s7 + $0x38] sm:$0xff]
    %v933 = vpack.c.bf16 %v926, %v925
    %v934 = vpack.c.bf16 %v928, %v927
    %v935 = vpack.c.bf16 %v930, %v929
    %v936 = vpack.c.bf16 %v932, %v931
    %v937 = vld [vmem:[#allocation2] sm:$0xff]
    %v938 = vld [vmem:[#allocation2 + $0x8] sm:$0xff]
    %v939 = vld [vmem:[#allocation2 + $0x10] sm:$0xff]
    %v940 = vld [vmem:[#allocation2 + $0x18] sm:$0xff]
    %v941 = vld [vmem:[#allocation2 + $0x20] sm:$0xff]
    %v942 = vld [vmem:[#allocation2 + $0x28] sm:$0xff]
    %v943 = vld [vmem:[#allocation2 + $0x30] sm:$0xff]
    %v944 = vld [vmem:[#allocation2 + $0x38] sm:$0xff]
    %v946 = vsel %vm324, %v933, 0
    %v949 = vsel %vm324, %v934, 0
    %v952 = vsel %vm324, %v935, 0
    %v955 = vsel %vm324, %v936, 0
    %957 = vmatprep.subr.bf16.mxu0 0
    %958 = vmatpush1.bf16.xpose.msra.mxu0 0
    %959 = vmatprep.subr.bf16.mxu0 0
    %960 = vmatpush1.bf16.xpose.msra.mxu0 0
    %961 = vmatprep.subr.bf16.mxu0 0
    %962 = vmatpush1.bf16.xpose.msra.mxu0 0
    %963 = vmatprep.subr.bf16.mxu0 0
    %964 = vmatpush1.bf16.xpose.msra.mxu0 0
    %965 = vmatprep.subr.bf16.mxu0 0
    %966 = vmatpush1.bf16.xpose.msra.mxu0 %v955
    %967 = vmatprep.subr.bf16.mxu0 0
    %968 = vmatpush1.bf16.xpose.msra.mxu0 %v952
    %969 = vmatprep.subr.bf16.mxu0 0
    %970 = vmatpush1.bf16.xpose.msra.mxu0 %v949
    %971 = vmatprep.subr.bf16.mxu0 0
    %972 = vmatpush1.bf16.xpose.msra.mxu0 %v946
    %973 = vmatprep.subr.bf16.mxu0 0
    %974 = vmatpush2.bf16.xpose.msra.mxu0 0
    %975 = vmatprep.subr.bf16.mxu0 0
    %976 = vmatpush2.bf16.xpose.msra.mxu0 0
    %977 = vmatprep.subr.bf16.mxu0 0
    %978 = vmatpush2.bf16.xpose.msra.mxu0 0
    %979 = vmatprep.subr.bf16.mxu0 0
    %980 = vmatpush2.bf16.xpose.msra.mxu0 0
    %981 = vmatprep.subr.bf16.mxu0 0
    %982 = vmatpush2.bf16.xpose.msra.mxu0 0
    %983 = vmatprep.subr.bf16.mxu0 0
    %984 = vmatpush2.bf16.xpose.msra.mxu0 0
    %985 = vmatprep.subr.bf16.mxu0 0
    %986 = vmatpush2.bf16.xpose.msra.mxu0 0
    %987 = vmatprep.subr.bf16.mxu0 0
    %988 = vmatpush2.bf16.xpose.msra.mxu0 0
    %989 = vmatprep.mubr.bf16.mxu0 0
    %990 = vmatmul.mubr.bf16.gmra.mxu0 %v946
    %v991 = vpop.f32.mrf.mxu0
    %v992 = vadd.f32 0.0, %v991
    %v993 = vpop.f32.mrf.mxu0
    %v994 = vpop.f32.mrf.mxu0
    %v995 = vadd.f32 0.0, %v994
    %v996 = vpop.f32.mrf.mxu0
    %997 = vmatprep.mubr.bf16.mxu0 0
    %998 = vmatmul.mubr.bf16.gmra.mxu0 %v949
    %v999 = vpop.f32.mrf.mxu0
    %v1000 = vadd.f32 0.0, %v999
    %v1001 = vpop.f32.mrf.mxu0
    %v1002 = vpop.f32.mrf.mxu0
    %v1003 = vadd.f32 0.0, %v1002
    %v1004 = vpop.f32.mrf.mxu0
    %1005 = vmatprep.mubr.bf16.mxu0 0
    %1006 = vmatmul.mubr.bf16.gmra.mxu0 %v952
    %v1007 = vpop.f32.mrf.mxu0
    %v1008 = vadd.f32 0.0, %v1007
    %v1009 = vpop.f32.mrf.mxu0
    %v1010 = vpop.f32.mrf.mxu0
    %v1011 = vadd.f32 0.0, %v1010
    %v1012 = vpop.f32.mrf.mxu0
    %1013 = vmatprep.mubr.bf16.mxu0 0
    %1014 = vmatmul.mubr.bf16.gmra.mxu0 %v955
    %v1015 = vpop.f32.mrf.mxu0
    %v1016 = vadd.f32 0.0, %v1015
    %v1017 = vpop.f32.mrf.mxu0
    %v1018 = vpop.f32.mrf.mxu0
    %v1019 = vadd.f32 0.0, %v1018
    %v1020 = vpop.f32.mrf.mxu0
    %1021 = vdwg.mxu0
    %v1022 = vmin.f32 %v992, 1.0
    %v1023 = vmin.f32 %v995, 1.0
    %v1024 = vmin.f32 %v1000, 1.0
    %v1025 = vmin.f32 %v1003, 1.0
    %v1026 = vmin.f32 %v1008, 1.0
    %v1027 = vmin.f32 %v1011, 1.0
    %v1028 = vmin.f32 %v1016, 1.0
    %v1029 = vmin.f32 %v1019, 1.0
    %v1030 = vadd.f32 %v1022, 1e-07
    %v1031 = vadd.f32 %v1023, 1e-07
    %v1032 = vadd.f32 %v1024, 1e-07
    %v1033 = vadd.f32 %v1025, 1e-07
    %v1034 = vadd.f32 %v1026, 1e-07
    %v1035 = vadd.f32 %v1027, 1e-07
    %v1036 = vadd.f32 %v1028, 1e-07
    %v1037 = vadd.f32 %v1029, 1e-07
    %v1038 = vlog2.pop %v1030
    %v1039 = vmul.f32 %v1038, 0.6931472
    %v1040 = vlog2.pop %v1031
    %v1041 = vmul.f32 %v1040, 0.6931472
    %v1042 = vlog2.pop %v1032
    %v1043 = vmul.f32 %v1042, 0.6931472
    %v1044 = vlog2.pop %v1033
    %v1045 = vmul.f32 %v1044, 0.6931472
    %v1046 = vlog2.pop %v1034
    %v1047 = vmul.f32 %v1046, 0.6931472
    %v1048 = vlog2.pop %v1035
    %v1049 = vmul.f32 %v1048, 0.6931472
    %v1050 = vlog2.pop %v1036
    %v1051 = vmul.f32 %v1050, 0.6931472
    %v1052 = vlog2.pop %v1037
    %v1053 = vmul.f32 %v1052, 0.6931472
    %v1054 = vsub.f32 1.0, %v1022
    %v1055 = vsub.f32 1.0, %v1023
    %v1056 = vsub.f32 1.0, %v1024
    %v1057 = vsub.f32 1.0, %v1025
    %v1058 = vsub.f32 1.0, %v1026
    %v1059 = vsub.f32 1.0, %v1027
    %v1060 = vsub.f32 1.0, %v1028
    %v1061 = vsub.f32 1.0, %v1029
    %v1062 = vadd.f32 %v1054, 1e-07
    %v1063 = vadd.f32 %v1055, 1e-07
    %v1064 = vadd.f32 %v1056, 1e-07
    %v1065 = vadd.f32 %v1057, 1e-07
    %v1066 = vadd.f32 %v1058, 1e-07
    %v1067 = vadd.f32 %v1059, 1e-07
    %v1068 = vadd.f32 %v1060, 1e-07
    %v1069 = vadd.f32 %v1061, 1e-07
    %v1070 = vlog2.pop %v1062
    %v1071 = vmul.f32 %v1070, 0.6931472
    %v1072 = vlog2.pop %v1063
    %v1073 = vmul.f32 %v1072, 0.6931472
    %v1074 = vlog2.pop %v1064
    %v1075 = vmul.f32 %v1074, 0.6931472
    %v1076 = vlog2.pop %v1065
    %v1077 = vmul.f32 %v1076, 0.6931472
    %v1078 = vlog2.pop %v1066
    %v1079 = vmul.f32 %v1078, 0.6931472
    %v1080 = vlog2.pop %v1067
    %v1081 = vmul.f32 %v1080, 0.6931472
    %v1082 = vlog2.pop %v1068
    %v1083 = vmul.f32 %v1082, 0.6931472
    %v1084 = vlog2.pop %v1069
    %v1085 = vmul.f32 %v1084, 0.6931472
    %v1086 = vmul.f32 %v937, %v1039
    %v1087 = vmul.f32 %v938, %v1041
    %v1088 = vmul.f32 %v939, %v1043
    %v1089 = vmul.f32 %v940, %v1045
    %v1090 = vmul.f32 %v941, %v1047
    %v1091 = vmul.f32 %v942, %v1049
    %v1092 = vmul.f32 %v943, %v1051
    %v1093 = vmul.f32 %v944, %v1053
    %v1094 = vsel %vm151, %v1086, 0.0
    %v1095 = vsel %vm151, %v1087, 0.0
    %v1096 = vadd.f32 %v1094, %v1095
    %v1097 = vsel %vm151, %v1088, 0.0
    %v1098 = vadd.f32 %v1096, %v1097
    %v1099 = vsel %vm151, %v1089, 0.0
    %v1100 = vadd.f32 %v1098, %v1099
    %v1101 = vsel %vm151, %v1090, 0.0
    %v1102 = vadd.f32 %v1100, %v1101
    %v1103 = vsel %vm151, %v1091, 0.0
    %v1104 = vadd.f32 %v1102, %v1103
    %v1105 = vsel %vm151, %v1092, 0.0
    %v1106 = vadd.f32 %v1104, %v1105
    %v1107 = vsel %vm151, %v1093, 0.0
    %v1108 = vadd.f32 %v1106, %v1107
    %1109 = vadd.xlane.f32.xlu0 %v1108
    %v1110 = vpop.xlane.xlu0 %1109
    %v1111 = vrot.slane %v1110, 4
    %v1112 = vadd.f32 %v1110, %v1111
    %v1113 = vrot.slane %v1112, 2
    %v1114 = vadd.f32 %v1112, %v1113
    %v1115 = vrot.slane %v1114, 1
    %v1116 = vadd.f32 %v1114, %v1115
    %s1117 = vtos %v1116
    %s1118 = ssub.f32 0.0, %s1117
    %v1119 = vsel %vm151, %v1071, 0.0
    %v1120 = vsel %vm151, %v1073, 0.0
    %v1121 = vadd.f32 %v1119, %v1120
    %v1122 = vsel %vm151, %v1075, 0.0
    %v1123 = vadd.f32 %v1121, %v1122
    %v1124 = vsel %vm151, %v1077, 0.0
    %v1125 = vadd.f32 %v1123, %v1124
    %v1126 = vsel %vm151, %v1079, 0.0
    %v1127 = vadd.f32 %v1125, %v1126
    %v1128 = vsel %vm151, %v1081, 0.0
    %v1129 = vadd.f32 %v1127, %v1128
    %v1130 = vsel %vm151, %v1083, 0.0
    %v1131 = vadd.f32 %v1129, %v1130
    %v1132 = vsel %vm151, %v1085, 0.0
    %v1133 = vadd.f32 %v1131, %v1132
    %1134 = vadd.xlane.f32.xlu0 %v1133
    %v1135 = vpop.xlane.xlu0 %1134
    %v1136 = vrot.slane %v1135, 4
    %v1137 = vadd.f32 %v1135, %v1136
    %v1138 = vrot.slane %v1137, 2
    %v1139 = vadd.f32 %v1137, %v1138
    %v1140 = vrot.slane %v1139, 1
    %v1141 = vadd.f32 %v1139, %v1140
    %s1142 = vtos %v1141
    %s1143 = ssub.f32 %s1118, %s1142
    %v1144 = vmul.f32 %v937, %v1071
    %v1145 = vmul.f32 %v938, %v1073
    %v1146 = vmul.f32 %v939, %v1075
    %v1147 = vmul.f32 %v940, %v1077
    %v1148 = vmul.f32 %v941, %v1079
    %v1149 = vmul.f32 %v942, %v1081
    %v1150 = vmul.f32 %v943, %v1083
    %v1151 = vmul.f32 %v944, %v1085
    %v1152 = vsel %vm151, %v1144, 0.0
    %v1153 = vsel %vm151, %v1145, 0.0
    %v1154 = vadd.f32 %v1152, %v1153
    %v1155 = vsel %vm151, %v1146, 0.0
    %v1156 = vadd.f32 %v1154, %v1155
    %v1157 = vsel %vm151, %v1147, 0.0
    %v1158 = vadd.f32 %v1156, %v1157
    %v1159 = vsel %vm151, %v1148, 0.0
    %v1160 = vadd.f32 %v1158, %v1159
    %v1161 = vsel %vm151, %v1149, 0.0
    %v1162 = vadd.f32 %v1160, %v1161
    %v1163 = vsel %vm151, %v1150, 0.0
    %v1164 = vadd.f32 %v1162, %v1163
    %v1165 = vsel %vm151, %v1151, 0.0
    %v1166 = vadd.f32 %v1164, %v1165
    %1167 = vadd.xlane.f32.xlu0 %v1166
    %v1168 = vpop.xlane.xlu0 %1167
    %v1169 = vrot.slane %v1168, 4
    %v1170 = vadd.f32 %v1168, %v1169
    %v1171 = vrot.slane %v1170, 2
    %v1172 = vadd.f32 %v1170, %v1171
    %v1173 = vrot.slane %v1172, 1
    %v1174 = vadd.f32 %v1172, %v1173
    %s1175 = vtos %v1174
    %s1176 = sadd.f32 %s1143, %s1175
    %v1177 = vrcp.pop 4096.0
    %s1178 = vtos %v1177
    %s1179 = smul.f32 %s1176, %s1178
    %s1180 = scalar_lea.smem [#allocation8], 0
    %1181 = sst [smem:[%s1180]] %s1179
    // Predicated region
    $region34: #{jhgda_forward.15} parent=1 // pred_check
      _
    $region35: #{jhgda_forward.15} parent=1 // pred_check_branch
      %1183 = sbr.rel (0) target = $region37
    $region36: #{jhgda_forward.15} parent=1 // pred_region
      _
    $region37: #{jhgda_forward.15} parent=1 // pred_fallthru
      _
    // Predicated region
    $region38: #{jhgda_forward.15} parent=1 // pred_check
      _
    $region39: #{jhgda_forward.15} parent=1 // pred_check_branch
      %1185 = sbr.rel (0) target = $region41
    $region40: #{jhgda_forward.15} parent=1 // pred_region
      _
    $region41: #{jhgda_forward.15} parent=1 // pred_fallthru
      _
    // Predicated region
    $region42: #{jhgda_forward.15} parent=1 // pred_check
      _
    $region43: #{jhgda_forward.15} parent=1 // pred_check_branch
      %1187 = sbr.rel (0) target = $region45
    $region44: #{jhgda_forward.15} parent=1 // pred_region
      _
    $region45: #{jhgda_forward.15} parent=1 // pred_fallthru
      _
    // Predicated region
    $region46: #{jhgda_forward.15} parent=1 // pred_check
      _
    $region47: #{jhgda_forward.15} parent=1 // pred_check_branch
      %1189 = sbr.rel (0) target = $region49
    $region48: #{jhgda_forward.15} parent=1 // pred_region
      _
    $region49: #{jhgda_forward.15} parent=1 // pred_fallthru
      _
    // Predicated region
    $region50: #{jhgda_forward.15} parent=1 // pred_check
      _
    $region51: #{jhgda_forward.15} parent=1 // pred_check_branch
      %1191 = sbr.rel (0) target = $region53
    $region52: #{jhgda_forward.15} parent=1 // pred_region
      %s1193 = ssub.s32 16, 16
      %1194 = vsyncadd [#allocation4], %s1193
      %1197 = dma.smem_to_hbm [#allocation5], 16, %s11, [#allocation4]
    $region53: #{jhgda_forward.15} parent=1 // pred_fallthru
      _
    // Predicated region
    $region54: #{jhgda_forward.15} parent=1 // pred_check
      _
    $region55: #{jhgda_forward.15} parent=1 // pred_check_branch
      %1199 = sbr.rel (0) target = $region57
    $region56: #{jhgda_forward.15} parent=1 // pred_region
      %s1201 = ssub.s32 16, 16
      %1202 = vsyncadd [#allocation7], %s1201
      %1205 = dma.smem_to_hbm [#allocation6], 16, %s12, [#allocation7]
    $region57: #{jhgda_forward.15} parent=1 // pred_fallthru
      _
    // Predicated region
    $region58: #{jhgda_forward.15} parent=1 // pred_check
      _
    $region59: #{jhgda_forward.15} parent=1 // pred_check_branch
      %1207 = sbr.rel (0) target = $region61
    $region60: #{jhgda_forward.15} parent=1 // pred_region
      %s1209 = ssub.s32 16, 16
      %1210 = vsyncadd [#allocation7], %s1209
      %1213 = dma.smem_to_hbm [#allocation8], 16, %s13, [#allocation7]
    $region61: #{jhgda_forward.15} parent=1 // pred_fallthru
      _
    // Predicated region
    $region62: #{jhgda_forward.15} parent=1 // pred_check
      _
    $region63: #{jhgda_forward.15} parent=1 // pred_check_branch
      %1215 = sbr.rel (0) target = $region65
    $region64: #{jhgda_forward.15} parent=1 // pred_region
      _
    $region65: #{jhgda_forward.15} parent=1 // pred_fallthru
      _
    // Predicated region
    $region66: #{jhgda_forward.15} parent=1 // pred_check
      _
    $region67: #{jhgda_forward.15} parent=1 // pred_check_branch
      %1217 = sbr.rel (0) target = $region69
    $region68: #{jhgda_forward.15} parent=1 // pred_region
      _
    $region69: #{jhgda_forward.15} parent=1 // pred_fallthru
      _
    // Predicated region
    $region70: #{jhgda_forward.15} parent=1 // pred_check
      _
    $region71: #{jhgda_forward.15} parent=1 // pred_check_branch
      %1219 = sbr.rel (0) target = $region73
    $region72: #{jhgda_forward.15} parent=1 // pred_region
      _
    $region73: #{jhgda_forward.15} parent=1 // pred_fallthru
      _
    // Predicated region
    $region74: #{jhgda_forward.15} parent=1 // pred_check
      _
    $region75: #{jhgda_forward.15} parent=1 // pred_check_branch
      %1221 = sbr.rel (0) target = $region77
    $region76: #{jhgda_forward.15} parent=1 // pred_region
      _
    $region77: #{jhgda_forward.15} parent=1 // pred_fallthru
      _
    // Predicated region
    $region78: #{jhgda_forward.15} parent=1 // pred_check
      _
    $region79: #{jhgda_forward.15} parent=1 // pred_check_branch
      %1223 = sbr.rel (0) target = $region81
    $region80: #{jhgda_forward.15} parent=1 // pred_region
      %1224 = dma.done [#allocation4], 16
    $region81: #{jhgda_forward.15} parent=1 // pred_fallthru
      _
    // Predicated region
    $region82: #{jhgda_forward.15} parent=1 // pred_check
      _
    $region83: #{jhgda_forward.15} parent=1 // pred_check_branch
      %1226 = sbr.rel (0) target = $region85
    $region84: #{jhgda_forward.15} parent=1 // pred_region
      %1227 = dma.done [#allocation7], 16
    $region85: #{jhgda_forward.15} parent=1 // pred_fallthru
      _
    // Predicated region
    $region86: #{jhgda_forward.15} parent=1 // pred_check
      _
    $region87: #{jhgda_forward.15} parent=1 // pred_check_branch
      %1229 = sbr.rel (0) target = $region89
    $region88: #{jhgda_forward.15} parent=1 // pred_region
      %1230 = dma.done [#allocation7], 16
    $region89: #{jhgda_forward.15} parent=1 // pred_fallthru
      _
    %1231 = sfence
    %1232 = vsyncpa [#allocation3], 1
    %1233 = vsyncpa [#allocation4], 1
    %1234 = vsyncpa [#allocation7], 1

// kernel: jhgda_forward.19
$region0: #{jhgda_forward.19}
  #allocation0 [shape = 'u32[]', space=smem, size = 0x4, offset = 0x4, fixed_abs, tag = 'smem constant byte address 0x4 - core index']
  #allocation1 [shape = 'u32[144,128]{1,0:T(1,128)}', space=vmem, size = 0x12000, scoped, tag = 'internal scratch']
  %s0 = inlined_call_operand.vmem [shape: f32[32,32], index: 0, kind: input, shape index: {}]
  %s1 = inlined_call_operand.vmem [shape: f32[32,32], index: 1, kind: input, shape index: {}]
  %s2 = inlined_call_operand.vmem [shape: f32[32,16], index: 2, kind: input, shape index: {}]
  %s3 = inlined_call_operand.vmem [shape: f32[1,16], index: 3, kind: input, shape index: {}]
  %s4 = inlined_call_operand.vmem [shape: f32[32,32], index: 4, kind: input, shape index: {}]
  %s5 = inlined_call_operand.vmem [shape: f32[32,8], index: 5, kind: input, shape index: {}]
  %s6 = inlined_call_operand.vmem [shape: f32[32,16], index: 6, kind: output, shape index: {0}]
  %s7 = inlined_call_operand.vmem [shape: f32[16,32], index: 7, kind: output, shape index: {1}]
  %s8 = inlined_call_operand.vmem [shape: f32[16,16], index: 8, kind: output, shape index: {2}]
  %s9 = inlined_call_operand.vmem [shape: f32[16,8], index: 9, kind: output, shape index: {3}]
  %s10 = inlined_call_operand.hbm [shape: f32[1,1], index: 10, kind: output, shape index: {4}]
  %s11 = inlined_call_operand.hbm [shape: f32[1,1], index: 11, kind: output, shape index: {5}]
  %s12 = inlined_call_operand.hbm [shape: f32[1,1], index: 12, kind: output, shape index: {6}]
  %13 = xla_tuple %s6, %s7, %s8, %s9, %s10, %s11, %s12
  %s14 = sld [smem:[#allocation0]]
  $region82: #{jhgda_forward.19} parent=0
    _
  %s16 = ssub.s32 1, %s14
  %s17 = scalar_select 0, %s16, %s14
  $region1: #{jhgda_forward.19} parent=0
    #allocation2 [shape = 'u8[512]{0}', space=smem, size = 0x200, scoped, tag = 'output window, operand 4, single buffered']
    #allocation3 [shape = 's32[1]{0}', space=sflag, size = 0x4, scoped, tag = 'scoped memory for jhgda_forward.19']
    #allocation4 [shape = 'u8[512]{0}', space=smem, size = 0x200, scoped, tag = 'output window, operand 5, single buffered']
    #allocation5 [shape = 's32[1]{0}', space=sflag, size = 0x4, scoped, tag = 'scoped memory for jhgda_forward.19']
    #allocation6 [shape = 'u8[512]{0}', space=smem, size = 0x200, scoped, tag = 'output window, operand 6, single buffered']
    %18 = vsyncpa [#allocation3], 0
    %19 = vsyncpa [#allocation5], 0
    // Predicated region
    $region2: #{jhgda_forward.19} parent=1 // pred_check
      _
    $region3: #{jhgda_forward.19} parent=1 // pred_check_branch
      %21 = sbr.rel (0) target = $region5
    $region4: #{jhgda_forward.19} parent=1 // pred_region
      _
    $region5: #{jhgda_forward.19} parent=1 // pred_fallthru
      _
    // Predicated region
    $region6: #{jhgda_forward.19} parent=1 // pred_check
      _
    $region7: #{jhgda_forward.19} parent=1 // pred_check_branch
      %23 = sbr.rel (0) target = $region9
    $region8: #{jhgda_forward.19} parent=1 // pred_region
      _
    $region9: #{jhgda_forward.19} parent=1 // pred_fallthru
      _
    // Predicated region
    $region10: #{jhgda_forward.19} parent=1 // pred_check
      _
    $region11: #{jhgda_forward.19} parent=1 // pred_check_branch
      %25 = sbr.rel (0) target = $region13
    $region12: #{jhgda_forward.19} parent=1 // pred_region
      _
    $region13: #{jhgda_forward.19} parent=1 // pred_fallthru
      _
    // Predicated region
    $region14: #{jhgda_forward.19} parent=1 // pred_check
      _
    $region15: #{jhgda_forward.19} parent=1 // pred_check_branch
      %27 = sbr.rel (0) target = $region17
    $region16: #{jhgda_forward.19} parent=1 // pred_region
      _
    $region17: #{jhgda_forward.19} parent=1 // pred_fallthru
      _
    // Predicated region
    $region18: #{jhgda_forward.19} parent=1 // pred_check
      _
    $region19: #{jhgda_forward.19} parent=1 // pred_check_branch
      %29 = sbr.rel (0) target = $region21
    $region20: #{jhgda_forward.19} parent=1 // pred_region
      _
    $region21: #{jhgda_forward.19} parent=1 // pred_fallthru
      _
    // Predicated region
    $region22: #{jhgda_forward.19} parent=1 // pred_check
      _
    $region23: #{jhgda_forward.19} parent=1 // pred_check_branch
      %31 = sbr.rel (0) target = $region25
    $region24: #{jhgda_forward.19} parent=1 // pred_region
      _
    $region25: #{jhgda_forward.19} parent=1 // pred_fallthru
      _
    %v33 = vld [vmem:[%s1] sm:$0xff]
    %v34 = vld [vmem:[%s1 + $0x8] sm:$0xff]
    %v35 = vld [vmem:[%s1 + $0x10] sm:$0xff]
    %v36 = vld [vmem:[%s1 + $0x18] sm:$0xff]
    %v37 = vld [vmem:[%s0] sm:$0xff]
    %v38 = vld [vmem:[%s0 + $0x8] sm:$0xff]
    %v39 = vld [vmem:[%s0 + $0x10] sm:$0xff]
    %v40 = vld [vmem:[%s0 + $0x18] sm:$0xff]
    %v41 = vld [vmem:[%s2] sm:$0xff]
    %v42 = vld [vmem:[%s2 + $0x8] sm:$0xff]
    %v43 = vld [vmem:[%s2 + $0x10] sm:$0xff]
    %v44 = vld [vmem:[%s2 + $0x18] sm:$0xff]
    %v45 = vpack.c.bf16 %v38, %v37
    %v46 = vpack.c.bf16 %v40, %v39
    %v47 = vpack.c.bf16 %v42, %v41
    %v48 = vpack.c.bf16 %v44, %v43
    %vm49 = vcmask 261120
    %v51 = vsel %vm49, %v45, 0
    %v54 = vsel %vm49, %v46, 0
    %56 = vmatprep.subr.bf16.mxu0 0
    %57 = vmatpush1.bf16.msra.mxu0 0
    %58 = vmatprep.subr.bf16.mxu0 0
    %59 = vmatpush1.bf16.msra.mxu0 0
    %60 = vmatprep.subr.bf16.mxu0 0
    %61 = vmatpush1.bf16.msra.mxu0 0
    %62 = vmatprep.subr.bf16.mxu0 0
    %63 = vmatpush1.bf16.msra.mxu0 0
    %64 = vmatprep.subr.bf16.mxu0 0
    %65 = vmatpush1.bf16.msra.mxu0 0
    %66 = vmatprep.subr.bf16.mxu0 0
    %67 = vmatpush1.bf16.msra.mxu0 0
    %68 = vmatprep.subr.bf16.mxu0 0
    %69 = vmatpush1.bf16.msra.mxu0 %v48
    %70 = vmatprep.subr.bf16.mxu0 0
    %71 = vmatpush1.bf16.msra.mxu0 %v47
    %72 = vmatprep.subr.bf16.mxu0 0
    %73 = vmatpush2.bf16.msra.mxu0 0
    %74 = vmatprep.subr.bf16.mxu0 0
    %75 = vmatpush2.bf16.msra.mxu0 0
    %76 = vmatprep.subr.bf16.mxu0 0
    %77 = vmatpush2.bf16.msra.mxu0 0
    %78 = vmatprep.subr.bf16.mxu0 0
    %79 = vmatpush2.bf16.msra.mxu0 0
    %80 = vmatprep.subr.bf16.mxu0 0
    %81 = vmatpush2.bf16.msra.mxu0 0
    %82 = vmatprep.subr.bf16.mxu0 0
    %83 = vmatpush2.bf16.msra.mxu0 0
    %84 = vmatprep.subr.bf16.mxu0 0
    %85 = vmatpush2.bf16.msra.mxu0 0
    %86 = vmatprep.subr.bf16.mxu0 0
    %87 = vmatpush2.bf16.msra.mxu0 0
    %88 = vmatprep.mubr.bf16.mxu0 0
    %89 = vmatmul.mubr.bf16.gmra.mxu0 %v51
    %v90 = vpop.f32.mrf.mxu0
    %v91 = vadd.f32 0.0, %v90
    %v92 = vpop.f32.mrf.mxu0
    %v93 = vpop.f32.mrf.mxu0
    %v94 = vadd.f32 0.0, %v93
    %v95 = vpop.f32.mrf.mxu0
    %96 = vmatprep.mubr.bf16.mxu0 0
    %97 = vmatmul.mubr.bf16.gmra.mxu0 %v54
    %v98 = vpop.f32.mrf.mxu0
    %v99 = vadd.f32 0.0, %v98
    %v100 = vpop.f32.mrf.mxu0
    %v101 = vpop.f32.mrf.mxu0
    %v102 = vadd.f32 0.0, %v101
    %v103 = vpop.f32.mrf.mxu0
    %104 = vdwg.mxu0
    %105 = vxpose.xlu0.b32.start [1/16] %v33, 128
    %106 = vxpose.xlu0.b32.cont [2/16] %v34, 128
    %107 = vxpose.xlu0.b32.cont [3/16] %v35, 128
    %108 = vxpose.xlu0.b32.cont [4/16] %v36, 128
    %109 = vxpose.xlu0.b32.cont [5/16] 0.0, 128
    %110 = vxpose.xlu0.b32.cont [6/16] 0.0, 128
    %111 = vxpose.xlu0.b32.cont [7/16] 0.0, 128
    %112 = vxpose.xlu0.b32.cont [8/16] 0.0, 128
    %113 = vxpose.xlu0.b32.cont [9/16] 0.0, 128
    %114 = vxpose.xlu0.b32.cont [10/16] 0.0, 128
    %115 = vxpose.xlu0.b32.cont [11/16] 0.0, 128
    %116 = vxpose.xlu0.b32.cont [12/16] 0.0, 128
    %117 = vxpose.xlu0.b32.cont [13/16] 0.0, 128
    %118 = vxpose.xlu0.b32.cont [14/16] 0.0, 128
    %119 = vxpose.xlu0.b32.cont [15/16] 0.0, 128
    %120 = vxpose.xlu0.b32.end [16/16] 0.0, 128
    %v121 = vpop.trf.xlu0
    %v122 = vpop.trf.xlu0
    %v123 = vpop.trf.xlu0
    %v124 = vpop.trf.xlu0
    %v125 = vpop.trf.xlu0
    %v126 = vpop.trf.xlu0
    %v127 = vpop.trf.xlu0
    %v128 = vpop.trf.xlu0
    %v129 = vpop.trf.xlu0
    %v130 = vpop.trf.xlu0
    %v131 = vpop.trf.xlu0
    %v132 = vpop.trf.xlu0
    %v133 = vpop.trf.xlu0
    %v134 = vpop.trf.xlu0
    %v135 = vpop.trf.xlu0
    %v136 = vpop.trf.xlu0
    %v138 = vsel %vm49, %v121, 0
    %v141 = vsel %vm49, %v122, 0
    %v144 = vsel %vm49, %v123, 0
    %v147 = vsel %vm49, %v124, 0
    %149 = vmatprep.subr.mxu0 0.0
    %150 = vmatpush1.msra.mxu0 0.0
    %151 = vmatprep.subr.mxu0 0.0
    %152 = vmatpush1.msra.mxu0 0.0
    %153 = vmatprep.subr.mxu0 0.0
    %154 = vmatpush1.msra.mxu0 0.0
    %155 = vmatprep.subr.mxu0 0.0
    %156 = vmatpush1.msra.mxu0 0.0
    %157 = vmatprep.subr.mxu0 0.0
    %158 = vmatpush1.msra.mxu0 0.0
    %159 = vmatprep.subr.mxu0 0.0
    %160 = vmatpush1.msra.mxu0 0.0
    %161 = vmatprep.subr.mxu0 0.0
    %162 = vmatpush1.msra.mxu0 0.0
    %163 = vmatprep.subr.mxu0 0.0
    %164 = vmatpush1.msra.mxu0 0.0
    %165 = vmatprep.subr.mxu0 0.0
    %166 = vmatpush1.msra.mxu0 0.0
    %167 = vmatprep.subr.mxu0 0.0
    %168 = vmatpush1.msra.mxu0 0.0
    %169 = vmatprep.subr.mxu0 0.0
    %170 = vmatpush1.msra.mxu0 0.0
    %171 = vmatprep.subr.mxu0 0.0
    %172 = vmatpush1.msra.mxu0 0.0
    %173 = vmatprep.subr.mxu0 0.0
    %174 = vmatpush1.msra.mxu0 1.0
    %175 = vmatprep.subr.mxu0 0.0
    %176 = vmatpush1.msra.mxu0 1.0
    %177 = vmatprep.subr.mxu0 0.0
    %178 = vmatpush1.msra.mxu0 1.0
    %179 = vmatprep.subr.mxu0 0.0
    %180 = vmatpush1.msra.mxu0 1.0
    %181 = vmatprep.subr.mxu0 0.0
    %182 = vmatpush2.msra.mxu0 0.0
    %183 = vmatprep.subr.mxu0 0.0
    %184 = vmatpush2.msra.mxu0 0.0
    %185 = vmatprep.subr.mxu0 0.0
    %186 = vmatpush2.msra.mxu0 0.0
    %187 = vmatprep.subr.mxu0 0.0
    %188 = vmatpush2.msra.mxu0 0.0
    %189 = vmatprep.subr.mxu0 0.0
    %190 = vmatpush2.msra.mxu0 0.0
    %191 = vmatprep.subr.mxu0 0.0
    %192 = vmatpush2.msra.mxu0 0.0
    %193 = vmatprep.subr.mxu0 0.0
    %194 = vmatpush2.msra.mxu0 0.0
    %195 = vmatprep.subr.mxu0 0.0
    %196 = vmatpush2.msra.mxu0 0.0
    %197 = vmatprep.subr.mxu0 0.0
    %198 = vmatpush2.msra.mxu0 0.0
    %199 = vmatprep.subr.mxu0 0.0
    %200 = vmatpush2.msra.mxu0 0.0
    %201 = vmatprep.subr.mxu0 0.0
    %202 = vmatpush2.msra.mxu0 0.0
    %203 = vmatprep.subr.mxu0 0.0
    %204 = vmatpush2.msra.mxu0 0.0
    %205 = vmatprep.subr.mxu0 0.0
    %206 = vmatpush2.msra.mxu0 0.0
    %207 = vmatprep.subr.mxu0 0.0
    %208 = vmatpush2.msra.mxu0 0.0
    %209 = vmatprep.subr.mxu0 0.0
    %210 = vmatpush2.msra.mxu0 0.0
    %211 = vmatprep.subr.mxu0 0.0
    %212 = vmatpush2.msra.mxu0 0.0
    %213 = vmatprep.mubr.f32.mxu0 0.0
    %214 = vmatmul.mubr.f32.gmra.mxu0 %v138
    %v215 = vpop.f32.mrf.mxu0
    %v216 = vadd.f32 0.0, %v215
    %v217 = vpop.f32.mrf.mxu0
    %218 = vmatprep.mubr.f32.mxu0 0.0
    %219 = vmatmul.mubr.f32.gmra.mxu0 %v141
    %v220 = vpop.f32.mrf.mxu0
    %v221 = vadd.f32 0.0, %v220
    %v222 = vpop.f32.mrf.mxu0
    %223 = vmatprep.mubr.f32.mxu0 0.0
    %224 = vmatmul.mubr.f32.gmra.mxu0 %v144
    %v225 = vpop.f32.mrf.mxu0
    %v226 = vadd.f32 0.0, %v225
    %v227 = vpop.f32.mrf.mxu0
    %228 = vmatprep.mubr.f32.mxu0 0.0
    %229 = vmatmul.mubr.f32.gmra.mxu0 %v147
    %v230 = vpop.f32.mrf.mxu0
    %v231 = vadd.f32 0.0, %v230
    %v232 = vpop.f32.mrf.mxu0
    %233 = vdwg.mxu0
    %vm234 = vcmp.gt.f32.partialorder %v216, 0.0
    %vm235 = vcmp.gt.f32.partialorder %v221, 0.0
    %vm236 = vcmp.gt.f32.partialorder %v226, 0.0
    %vm237 = vcmp.gt.f32.partialorder %v231, 0.0
    %v238 = vrsqrt.pop %v216
    %v239 = vrsqrt.pop %v221
    %v240 = vrsqrt.pop %v226
    %v241 = vrsqrt.pop %v231
    %v242 = vsel %vm234, %v238, 0.0
    %v243 = vsel %vm235, %v239, 0.0
    %v244 = vsel %vm236, %v240, 0.0
    %v245 = vsel %vm237, %v241, 0.0
    %247 = vset.pattern.permute.xlu0 0
    %248 = vperm.xlu0 %247, %v242
    %v249 = vpop.permute.xlu0 %248
    %252 = vset.pattern.permute.xlu0 0
    %253 = vperm.xlu0 %252, %v243
    %v254 = vpop.permute.xlu0 %253
    %257 = vset.pattern.permute.xlu0 0
    %258 = vperm.xlu0 %257, %v244
    %v259 = vpop.permute.xlu0 %258
    %262 = vset.pattern.permute.xlu0 0
    %263 = vperm.xlu0 %262, %v245
    %v264 = vpop.permute.xlu0 %263
    %v266 = vmul.f32 %v249, %v91
    %v267 = vmul.f32 %v254, %v94
    %v268 = vmul.f32 %v259, %v99
    %v269 = vmul.f32 %v264, %v102
    %v270 = vpack.c.bf16 %v34, %v33
    %v271 = vpack.c.bf16 %v36, %v35
    %v272 = vpack.c.bf16 %v267, %v266
    %v273 = vpack.c.bf16 %v269, %v268
    %274 = vxpose.xlu0.c.b16.start [1/8] %v270, 128
    %275 = vxpose.xlu0.c.b16.cont [2/8] %v271, 128
    %276 = vxpose.xlu0.c.b16.cont [3/8] 0, 128
    %277 = vxpose.xlu0.c.b16.cont [4/8] 0, 128
    %278 = vxpose.xlu0.c.b16.cont [5/8] 0, 128
    %279 = vxpose.xlu0.c.b16.cont [6/8] 0, 128
    %280 = vxpose.xlu0.c.b16.cont [7/8] 0, 128
    %281 = vxpose.xlu0.c.b16.end [8/8] 0, 128
    %v282 = vpop.trf.xlu0
    %v283 = vpop.trf.xlu0
    %v284 = vpop.trf.xlu0
    %v285 = vpop.trf.xlu0
    %v286 = vpop.trf.xlu0
    %v287 = vpop.trf.xlu0
    %v288 = vpop.trf.xlu0
    %v289 = vpop.trf.xlu0
    %v291 = vsel %vm49, %v282, 0
    %v294 = vsel %vm49, %v283, 0
    %296 = vmatprep.subr.bf16.mxu0 0
    %297 = vmatpush1.bf16.msra.mxu0 0
    %298 = vmatprep.subr.bf16.mxu0 0
    %299 = vmatpush1.bf16.msra.mxu0 0
    %300 = vmatprep.subr.bf16.mxu0 0
    %301 = vmatpush1.bf16.msra.mxu0 0
    %302 = vmatprep.subr.bf16.mxu0 0
    %303 = vmatpush1.bf16.msra.mxu0 0
    %304 = vmatprep.subr.bf16.mxu0 0
    %305 = vmatpush1.bf16.msra.mxu0 0
    %306 = vmatprep.subr.bf16.mxu0 0
    %307 = vmatpush1.bf16.msra.mxu0 0
    %308 = vmatprep.subr.bf16.mxu0 0
    %309 = vmatpush1.bf16.msra.mxu0 %v273
    %310 = vmatprep.subr.bf16.mxu0 0
    %311 = vmatpush1.bf16.msra.mxu0 %v272
    %312 = vmatprep.subr.bf16.mxu0 0
    %313 = vmatpush2.bf16.msra.mxu0 0
    %314 = vmatprep.subr.bf16.mxu0 0
    %315 = vmatpush2.bf16.msra.mxu0 0
    %316 = vmatprep.subr.bf16.mxu0 0
    %317 = vmatpush2.bf16.msra.mxu0 0
    %318 = vmatprep.subr.bf16.mxu0 0
    %319 = vmatpush2.bf16.msra.mxu0 0
    %320 = vmatprep.subr.bf16.mxu0 0
    %321 = vmatpush2.bf16.msra.mxu0 0
    %322 = vmatprep.subr.bf16.mxu0 0
    %323 = vmatpush2.bf16.msra.mxu0 0
    %324 = vmatprep.subr.bf16.mxu0 0
    %325 = vmatpush2.bf16.msra.mxu0 0
    %326 = vmatprep.subr.bf16.mxu0 0
    %327 = vmatpush2.bf16.msra.mxu0 0
    %328 = vmatprep.mubr.bf16.mxu0 0
    %329 = vmatmul.mubr.bf16.gmra.mxu0 %v291
    %v330 = vpop.f32.mrf.mxu0
    %v331 = vadd.f32 0.0, %v330
    %v332 = vpop.f32.mrf.mxu0
    %v333 = vpop.f32.mrf.mxu0
    %v334 = vadd.f32 0.0, %v333
    %v335 = vpop.f32.mrf.mxu0
    %336 = vmatprep.mubr.bf16.mxu0 0
    %337 = vmatmul.mubr.bf16.gmra.mxu0 %v294
    %v338 = vpop.f32.mrf.mxu0
    %v339 = vadd.f32 0.0, %v338
    %v340 = vpop.f32.mrf.mxu0
    %v341 = vpop.f32.mrf.mxu0
    %v342 = vadd.f32 0.0, %v341
    %v343 = vpop.f32.mrf.mxu0
    %344 = vdwg.mxu0
    %v345 = vmul.f32 %v249, %v331
    %v346 = vmul.f32 %v254, %v334
    %v347 = vmul.f32 %v259, %v339
    %v348 = vmul.f32 %v264, %v342
    %v349 = vld [vmem:[%s3] sm:$0x1]
    %v351 = vlaneseq
    %v352 = vshrl.u32 %v351, 7
    %v353 = vsub.s32 0, %v352
    %v354 = vrot.slane %v349, %v353
    %v356 = vadd.f32 %v345, %v354
    %v357 = vadd.f32 %v346, %v354
    %v358 = vadd.f32 %v347, %v354
    %v359 = vadd.f32 %v348, %v354
    %v360 = vmax.f32 %v356, 0.0
    %v361 = vmax.f32 %v357, 0.0
    %v362 = vmax.f32 %v358, 0.0
    %v363 = vmax.f32 %v359, 0.0
    %vm364 = vcmask 130048
    %v365 = vsel %vm364, %v360, -inf
    %366 = vmax.xlane.f32.xlu0 %v365
    %v367 = vpop.xlane.xlu0 %366
    %v368 = vsel %vm364, %v361, -inf
    %369 = vmax.xlane.f32.xlu0 %v368
    %v370 = vpop.xlane.xlu0 %369
    %v371 = vsel %vm364, %v362, -inf
    %372 = vmax.xlane.f32.xlu0 %v371
    %v373 = vpop.xlane.xlu0 %372
    %v374 = vsel %vm364, %v363, -inf
    %375 = vmax.xlane.f32.xlu0 %v374
    %v376 = vpop.xlane.xlu0 %375
    %v377 = vsub.f32 %v360, %v367
    %v378 = vsub.f32 %v361, %v370
    %v379 = vsub.f32 %v362, %v373
    %v380 = vsub.f32 %v363, %v376
    %v381 = vmul.f32 %v377, 1.442695
    %v382 = vpow.pop %v381
    %v383 = vmul.f32 %v378, 1.442695
    %v384 = vpow.pop %v383
    %v385 = vmul.f32 %v379, 1.442695
    %v386 = vpow.pop %v385
    %v387 = vmul.f32 %v380, 1.442695
    %v388 = vpow.pop %v387
    %v389 = vsel %vm364, %v382, 0.0
    %390 = vadd.xlane.f32.xlu0 %v389
    %v391 = vpop.xlane.xlu0 %390
    %v392 = vsel %vm364, %v384, 0.0
    %393 = vadd.xlane.f32.xlu0 %v392
    %v394 = vpop.xlane.xlu0 %393
    %v395 = vsel %vm364, %v386, 0.0
    %396 = vadd.xlane.f32.xlu0 %v395
    %v397 = vpop.xlane.xlu0 %396
    %v398 = vsel %vm364, %v388, 0.0
    %399 = vadd.xlane.f32.xlu0 %v398
    %v400 = vpop.xlane.xlu0 %399
    %v401 = vrcp.pop %v391
    %v402 = vmul.f32 %v382, %v401
    %v403 = vrcp.pop %v394
    %v404 = vmul.f32 %v384, %v403
    %v405 = vrcp.pop %v397
    %v406 = vmul.f32 %v386, %v405
    %v407 = vrcp.pop %v400
    %v408 = vmul.f32 %v388, %v407
    %v409 = vlog2.pop %v391
    %v410 = vmul.f32 %v409, 0.6931472
    %v411 = vlog2.pop %v394
    %v412 = vmul.f32 %v411, 0.6931472
    %v413 = vlog2.pop %v397
    %v414 = vmul.f32 %v413, 0.6931472
    %v415 = vlog2.pop %v400
    %v416 = vmul.f32 %v415, 0.6931472
    %v417 = vmul.f32 %v402, %v377
    %v418 = vmul.f32 %v404, %v378
    %v419 = vmul.f32 %v406, %v379
    %v420 = vmul.f32 %v408, %v380
    %v421 = vsel %vm364, %v417, 0.0
    %422 = vadd.xlane.f32.xlu0 %v421
    %v423 = vpop.xlane.xlu0 %422
    %v424 = vsel %vm364, %v418, 0.0
    %425 = vadd.xlane.f32.xlu0 %v424
    %v426 = vpop.xlane.xlu0 %425
    %v427 = vsel %vm364, %v419, 0.0
    %428 = vadd.xlane.f32.xlu0 %v427
    %v429 = vpop.xlane.xlu0 %428
    %v430 = vsel %vm364, %v420, 0.0
    %431 = vadd.xlane.f32.xlu0 %v430
    %v432 = vpop.xlane.xlu0 %431
    %v433 = vsub.f32 %v410, %v423
    %v434 = vsub.f32 %v412, %v426
    %v435 = vsub.f32 %v414, %v429
    %v436 = vsub.f32 %v416, %v432
    %vm437 = vcmask 7168
    %v438 = vsel %vm437, %v433, 0.0
    %v439 = vsel %vm437, %v434, 0.0
    %v440 = vadd.f32 %v438, %v439
    %v441 = vsel %vm437, %v435, 0.0
    %v442 = vadd.f32 %v440, %v441
    %v443 = vsel %vm437, %v436, 0.0
    %v444 = vadd.f32 %v442, %v443
    %445 = vadd.xlane.f32.xlu0 %v444
    %v446 = vpop.xlane.xlu0 %445
    %v447 = vrot.slane %v446, 4
    %v448 = vadd.f32 %v446, %v447
    %v449 = vrot.slane %v448, 2
    %v450 = vadd.f32 %v448, %v449
    %v451 = vrot.slane %v450, 1
    %v452 = vadd.f32 %v450, %v451
    %s453 = vtos %v452
    %v454 = vrcp.pop 32.0
    %s455 = vtos %v454
    %s456 = smul.f32 %s453, %s455
    %457 = vst.msk [vmem:[%s6] sm:$0xff] %vm364, %v402
    %458 = vst.msk [vmem:[%s6 + $0x8] sm:$0xff] %vm364, %v404
    %459 = vst.msk [vmem:[%s6 + $0x10] sm:$0xff] %vm364, %v406
    %460 = vst.msk [vmem:[%s6 + $0x18] sm:$0xff] %vm364, %v408
    %s461 = scalar_lea.smem [#allocation2], 0
    %462 = sst [smem:[%s461]] %s456
    %v463 = vld [vmem:[%s4] sm:$0xff]
    %v464 = vld [vmem:[%s4 + $0x8] sm:$0xff]
    %v465 = vld [vmem:[%s4 + $0x10] sm:$0xff]
    %v466 = vld [vmem:[%s4 + $0x18] sm:$0xff]
    %v467 = vpack.c.bf16 %v404, %v402
    %v468 = vpack.c.bf16 %v408, %v406
    %v469 = vpack.c.bf16 %v464, %v463
    %v470 = vpack.c.bf16 %v466, %v465
    %471 = vxpose.xlu0.c.b16.start [1/8] %v467, 128
    %472 = vxpose.xlu0.c.b16.cont [2/8] %v468, 128
    %473 = vxpose.xlu0.c.b16.cont [3/8] 0, 128
    %474 = vxpose.xlu0.c.b16.cont [4/8] 0, 128
    %475 = vxpose.xlu0.c.b16.cont [5/8] 0, 128
    %476 = vxpose.xlu0.c.b16.cont [6/8] 0, 128
    %477 = vxpose.xlu0.c.b16.cont [7/8] 0, 128
    %478 = vxpose.xlu0.c.b16.end [8/8] 0, 128
    %v479 = vpop.trf.xlu0
    %v480 = vpop.trf.xlu0
    %v481 = vpop.trf.xlu0
    %v482 = vpop.trf.xlu0
    %v483 = vpop.trf.xlu0
    %v484 = vpop.trf.xlu0
    %v485 = vpop.trf.xlu0
    %v486 = vpop.trf.xlu0
    %v488 = vsel %vm49, %v479, 0
    %490 = vmatprep.subr.bf16.mxu0 0
    %491 = vmatpush1.bf16.msra.mxu0 0
    %492 = vmatprep.subr.bf16.mxu0 0
    %493 = vmatpush1.bf16.msra.mxu0 0
    %494 = vmatprep.subr.bf16.mxu0 0
    %495 = vmatpush1.bf16.msra.mxu0 0
    %496 = vmatprep.subr.bf16.mxu0 0
    %497 = vmatpush1.bf16.msra.mxu0 0
    %498 = vmatprep.subr.bf16.mxu0 0
    %499 = vmatpush1.bf16.msra.mxu0 0
    %500 = vmatprep.subr.bf16.mxu0 0
    %501 = vmatpush1.bf16.msra.mxu0 0
    %502 = vmatprep.subr.bf16.mxu0 0
    %503 = vmatpush1.bf16.msra.mxu0 %v470
    %504 = vmatprep.subr.bf16.mxu0 0
    %505 = vmatpush1.bf16.msra.mxu0 %v469
    %506 = vmatprep.subr.bf16.mxu0 0
    %507 = vmatpush2.bf16.msra.mxu0 0
    %508 = vmatprep.subr.bf16.mxu0 0
    %509 = vmatpush2.bf16.msra.mxu0 0
    %510 = vmatprep.subr.bf16.mxu0 0
    %511 = vmatpush2.bf16.msra.mxu0 0
    %512 = vmatprep.subr.bf16.mxu0 0
    %513 = vmatpush2.bf16.msra.mxu0 0
    %514 = vmatprep.subr.bf16.mxu0 0
    %515 = vmatpush2.bf16.msra.mxu0 0
    %516 = vmatprep.subr.bf16.mxu0 0
    %517 = vmatpush2.bf16.msra.mxu0 0
    %518 = vmatprep.subr.bf16.mxu0 0
    %519 = vmatpush2.bf16.msra.mxu0 0
    %520 = vmatprep.subr.bf16.mxu0 0
    %521 = vmatpush2.bf16.msra.mxu0 0
    %522 = vmatprep.mubr.bf16.mxu0 0
    %523 = vmatmul.mubr.bf16.gmra.mxu0 %v488
    %v524 = vpop.f32.mrf.mxu0
    %v525 = vadd.f32 0.0, %v524
    %v526 = vpop.f32.mrf.mxu0
    %v527 = vpop.f32.mrf.mxu0
    %v528 = vadd.f32 0.0, %v527
    %v529 = vpop.f32.mrf.mxu0
    %530 = vdwg.mxu0
    %531 = vst.msk [vmem:[%s7] sm:$0xff] %vm49, %v525
    %532 = vst.msk [vmem:[%s7 + $0x8] sm:$0xff] %vm49, %v528
    %v533 = vld [vmem:[%s5] sm:$0xff]
    %v534 = vld [vmem:[%s5 + $0x8] sm:$0xff]
    %v535 = vld [vmem:[%s5 + $0x10] sm:$0xff]
    %v536 = vld [vmem:[%s5 + $0x18] sm:$0xff]
    %v537 = vpack.c.bf16 %v534, %v533
    %v538 = vpack.c.bf16 %v536, %v535
    %539 = vmatprep.subr.bf16.mxu0 0
    %540 = vmatpush1.bf16.msra.mxu0 0
    %541 = vmatprep.subr.bf16.mxu0 0
    %542 = vmatpush1.bf16.msra.mxu0 0
    %543 = vmatprep.subr.bf16.mxu0 0
    %544 = vmatpush1.bf16.msra.mxu0 0
    %545 = vmatprep.subr.bf16.mxu0 0
    %546 = vmatpush1.bf16.msra.mxu0 0
    %547 = vmatprep.subr.bf16.mxu0 0
    %548 = vmatpush1.bf16.msra.mxu0 0
    %549 = vmatprep.subr.bf16.mxu0 0
    %550 = vmatpush1.bf16.msra.mxu0 0
    %551 = vmatprep.subr.bf16.mxu0 0
    %552 = vmatpush1.bf16.msra.mxu0 %v538
    %553 = vmatprep.subr.bf16.mxu0 0
    %554 = vmatpush1.bf16.msra.mxu0 %v537
    %555 = vmatprep.subr.bf16.mxu0 0
    %556 = vmatpush2.bf16.msra.mxu0 0
    %557 = vmatprep.subr.bf16.mxu0 0
    %558 = vmatpush2.bf16.msra.mxu0 0
    %559 = vmatprep.subr.bf16.mxu0 0
    %560 = vmatpush2.bf16.msra.mxu0 0
    %561 = vmatprep.subr.bf16.mxu0 0
    %562 = vmatpush2.bf16.msra.mxu0 0
    %563 = vmatprep.subr.bf16.mxu0 0
    %564 = vmatpush2.bf16.msra.mxu0 0
    %565 = vmatprep.subr.bf16.mxu0 0
    %566 = vmatpush2.bf16.msra.mxu0 0
    %567 = vmatprep.subr.bf16.mxu0 0
    %568 = vmatpush2.bf16.msra.mxu0 0
    %569 = vmatprep.subr.bf16.mxu0 0
    %570 = vmatpush2.bf16.msra.mxu0 0
    %571 = vmatprep.mubr.bf16.mxu0 0
    %572 = vmatmul.mubr.bf16.gmra.mxu0 %v488
    %v573 = vpop.f32.mrf.mxu0
    %v574 = vadd.f32 0.0, %v573
    %v575 = vpop.f32.mrf.mxu0
    %v576 = vpop.f32.mrf.mxu0
    %v577 = vadd.f32 0.0, %v576
    %v578 = vpop.f32.mrf.mxu0
    %579 = vdwg.mxu0
    %vm580 = vcmask 64512
    %v581 = vsel %vm580, %v574, -inf
    %582 = vmax.xlane.f32.xlu0 %v581
    %v583 = vpop.xlane.xlu0 %582
    %v584 = vsel %vm580, %v577, -inf
    %585 = vmax.xlane.f32.xlu0 %v584
    %v586 = vpop.xlane.xlu0 %585
    %v587 = vsub.f32 %v574, %v583
    %v588 = vsub.f32 %v577, %v586
    %v589 = vmul.f32 %v587, 1.442695
    %v590 = vpow.pop %v589
    %v591 = vmul.f32 %v588, 1.442695
    %v592 = vpow.pop %v591
    %v593 = vsel %vm580, %v590, 0.0
    %594 = vadd.xlane.f32.xlu0 %v593
    %v595 = vpop.xlane.xlu0 %594
    %v596 = vsel %vm580, %v592, 0.0
    %597 = vadd.xlane.f32.xlu0 %v596
    %v598 = vpop.xlane.xlu0 %597
    %v599 = vrcp.pop %v595
    %v600 = vmul.f32 %v590, %v599
    %v601 = vrcp.pop %v598
    %v602 = vmul.f32 %v592, %v601
    %v603 = vlog2.pop %v595
    %v604 = vmul.f32 %v603, 0.6931472
    %v605 = vlog2.pop %v598
    %v606 = vmul.f32 %v605, 0.6931472
    %v607 = vmul.f32 %v600, %v587
    %v608 = vmul.f32 %v602, %v588
    %v609 = vsel %vm580, %v607, 0.0
    %610 = vadd.xlane.f32.xlu0 %v609
    %v611 = vpop.xlane.xlu0 %610
    %v612 = vsel %vm580, %v608, 0.0
    %613 = vadd.xlane.f32.xlu0 %v612
    %v614 = vpop.xlane.xlu0 %613
    %v615 = vsub.f32 %v604, %v611
    %v616 = vsub.f32 %v606, %v614
    %v617 = vsel %vm437, %v615, 0.0
    %v618 = vsel %vm437, %v616, 0.0
    %v619 = vadd.f32 %v617, %v618
    %620 = vadd.xlane.f32.xlu0 %v619
    %v621 = vpop.xlane.xlu0 %620
    %v622 = vrot.slane %v621, 4
    %v623 = vadd.f32 %v621, %v622
    %v624 = vrot.slane %v623, 2
    %v625 = vadd.f32 %v623, %v624
    %v626 = vrot.slane %v625, 1
    %v627 = vadd.f32 %v625, %v626
    %s628 = vtos %v627
    %v629 = vrcp.pop 16.0
    %s630 = vtos %v629
    %s631 = smul.f32 %s628, %s630
    %632 = vst.msk [vmem:[%s9] sm:$0xff] %vm580, %v600
    %633 = vst.msk [vmem:[%s9 + $0x8] sm:$0xff] %vm580, %v602
    %s634 = scalar_lea.smem [#allocation4], 0
    %635 = sst [smem:[%s634]] %s631
    %v636 = vld [vmem:[%s1] sm:$0xff]
    %v637 = vld [vmem:[%s1 + $0x8] sm:$0xff]
    %v638 = vld [vmem:[%s1 + $0x10] sm:$0xff]
    %v639 = vld [vmem:[%s1 + $0x18] sm:$0xff]
    %v640 = vpack.c.bf16 %v637, %v636
    %v641 = vpack.c.bf16 %v639, %v638
    %642 = vmatprep.subr.bf16.mxu0 0
    %643 = vmatpush1.bf16.msra.mxu0 0
    %644 = vmatprep.subr.bf16.mxu0 0
    %645 = vmatpush1.bf16.msra.mxu0 0
    %646 = vmatprep.subr.bf16.mxu0 0
    %647 = vmatpush1.bf16.msra.mxu0 0
    %648 = vmatprep.subr.bf16.mxu0 0
    %649 = vmatpush1.bf16.msra.mxu0 0
    %650 = vmatprep.subr.bf16.mxu0 0
    %651 = vmatpush1.bf16.msra.mxu0 0
    %652 = vmatprep.subr.bf16.mxu0 0
    %653 = vmatpush1.bf16.msra.mxu0 0
    %654 = vmatprep.subr.bf16.mxu0 0
    %655 = vmatpush1.bf16.msra.mxu0 %v641
    %656 = vmatprep.subr.bf16.mxu0 0
    %657 = vmatpush1.bf16.msra.mxu0 %v640
    %658 = vmatprep.subr.bf16.mxu0 0
    %659 = vmatpush2.bf16.msra.mxu0 0
    %660 = vmatprep.subr.bf16.mxu0 0
    %661 = vmatpush2.bf16.msra.mxu0 0
    %662 = vmatprep.subr.bf16.mxu0 0
    %663 = vmatpush2.bf16.msra.mxu0 0
    %664 = vmatprep.subr.bf16.mxu0 0
    %665 = vmatpush2.bf16.msra.mxu0 0
    %666 = vmatprep.subr.bf16.mxu0 0
    %667 = vmatpush2.bf16.msra.mxu0 0
    %668 = vmatprep.subr.bf16.mxu0 0
    %669 = vmatpush2.bf16.msra.mxu0 0
    %670 = vmatprep.subr.bf16.mxu0 0
    %671 = vmatpush2.bf16.msra.mxu0 0
    %672 = vmatprep.subr.bf16.mxu0 0
    %673 = vmatpush2.bf16.msra.mxu0 0
    %674 = vmatprep.mubr.bf16.mxu0 0
    %675 = vmatmul.mubr.bf16.gmra.mxu0 %v488
    %v676 = vpop.f32.mrf.mxu0
    %v677 = vadd.f32 0.0, %v676
    %v678 = vpop.f32.mrf.mxu0
    %v679 = vpop.f32.mrf.mxu0
    %v680 = vadd.f32 0.0, %v679
    %v681 = vpop.f32.mrf.mxu0
    %682 = vdwg.mxu0
    %v683 = vpack.c.bf16 %v680, %v677
    %v685 = vsel %vm49, %v683, 0
    %687 = vmatprep.subr.bf16.mxu0 0
    %688 = vmatpush1.bf16.msra.mxu0 0
    %689 = vmatprep.subr.bf16.mxu0 0
    %690 = vmatpush1.bf16.msra.mxu0 0
    %691 = vmatprep.subr.bf16.mxu0 0
    %692 = vmatpush1.bf16.msra.mxu0 0
    %693 = vmatprep.subr.bf16.mxu0 0
    %694 = vmatpush1.bf16.msra.mxu0 0
    %695 = vmatprep.subr.bf16.mxu0 0
    %696 = vmatpush1.bf16.msra.mxu0 0
    %697 = vmatprep.subr.bf16.mxu0 0
    %698 = vmatpush1.bf16.msra.mxu0 0
    %699 = vmatprep.subr.bf16.mxu0 0
    %700 = vmatpush1.bf16.msra.mxu0 %v468
    %701 = vmatprep.subr.bf16.mxu0 0
    %702 = vmatpush1.bf16.msra.mxu0 %v467
    %703 = vmatprep.subr.bf16.mxu0 0
    %704 = vmatpush2.bf16.msra.mxu0 0
    %705 = vmatprep.subr.bf16.mxu0 0
    %706 = vmatpush2.bf16.msra.mxu0 0
    %707 = vmatprep.subr.bf16.mxu0 0
    %708 = vmatpush2.bf16.msra.mxu0 0
    %709 = vmatprep.subr.bf16.mxu0 0
    %710 = vmatpush2.bf16.msra.mxu0 0
    %711 = vmatprep.subr.bf16.mxu0 0
    %712 = vmatpush2.bf16.msra.mxu0 0
    %713 = vmatprep.subr.bf16.mxu0 0
    %714 = vmatpush2.bf16.msra.mxu0 0
    %715 = vmatprep.subr.bf16.mxu0 0
    %716 = vmatpush2.bf16.msra.mxu0 0
    %717 = vmatprep.subr.bf16.mxu0 0
    %718 = vmatpush2.bf16.msra.mxu0 0
    %719 = vmatprep.mubr.bf16.mxu0 0
    %720 = vmatmul.mubr.bf16.gmra.mxu0 %v685
    %v721 = vpop.f32.mrf.mxu0
    %v722 = vadd.f32 0.0, %v721
    %v723 = vpop.f32.mrf.mxu0
    %v724 = vpop.f32.mrf.mxu0
    %v725 = vadd.f32 0.0, %v724
    %v726 = vpop.f32.mrf.mxu0
    %727 = vdwg.mxu0
    %728 = vst.msk [vmem:[%s8] sm:$0xff] %vm364, %v722
    %729 = vst.msk [vmem:[%s8 + $0x8] sm:$0xff] %vm364, %v725
    %v730 = vld [vmem:[%s6] sm:$0xff]
    %v731 = vld [vmem:[%s6 + $0x8] sm:$0xff]
    %v732 = vld [vmem:[%s6 + $0x10] sm:$0xff]
    %v733 = vld [vmem:[%s6 + $0x18] sm:$0xff]
    %v734 = vpack.c.bf16 %v731, %v730
    %v735 = vpack.c.bf16 %v733, %v732
    %v736 = vld [vmem:[%s1] sm:$0xff]
    %v737 = vld [vmem:[%s1 + $0x8] sm:$0xff]
    %v738 = vld [vmem:[%s1 + $0x10] sm:$0xff]
    %v739 = vld [vmem:[%s1 + $0x18] sm:$0xff]
    %v741 = vsel %vm364, %v734, 0
    %v744 = vsel %vm364, %v735, 0
    %746 = vmatprep.subr.bf16.mxu0 0
    %747 = vmatpush1.bf16.xpose.msra.mxu0 0
    %748 = vmatprep.subr.bf16.mxu0 0
    %749 = vmatpush1.bf16.xpose.msra.mxu0 0
    %750 = vmatprep.subr.bf16.mxu0 0
    %751 = vmatpush1.bf16.xpose.msra.mxu0 0
    %752 = vmatprep.subr.bf16.mxu0 0
    %753 = vmatpush1.bf16.xpose.msra.mxu0 0
    %754 = vmatprep.subr.bf16.mxu0 0
    %755 = vmatpush1.bf16.xpose.msra.mxu0 0
    %756 = vmatprep.subr.bf16.mxu0 0
    %757 = vmatpush1.bf16.xpose.msra.mxu0 0
    %758 = vmatprep.subr.bf16.mxu0 0
    %759 = vmatpush1.bf16.xpose.msra.mxu0 %v744
    %760 = vmatprep.subr.bf16.mxu0 0
    %761 = vmatpush1.bf16.xpose.msra.mxu0 %v741
    %762 = vmatprep.subr.bf16.mxu0 0
    %763 = vmatpush2.bf16.xpose.msra.mxu0 0
    %764 = vmatprep.subr.bf16.mxu0 0
    %765 = vmatpush2.bf16.xpose.msra.mxu0 0
    %766 = vmatprep.subr.bf16.mxu0 0
    %767 = vmatpush2.bf16.xpose.msra.mxu0 0
    %768 = vmatprep.subr.bf16.mxu0 0
    %769 = vmatpush2.bf16.xpose.msra.mxu0 0
    %770 = vmatprep.subr.bf16.mxu0 0
    %771 = vmatpush2.bf16.xpose.msra.mxu0 0
    %772 = vmatprep.subr.bf16.mxu0 0
    %773 = vmatpush2.bf16.xpose.msra.mxu0 0
    %774 = vmatprep.subr.bf16.mxu0 0
    %775 = vmatpush2.bf16.xpose.msra.mxu0 0
    %776 = vmatprep.subr.bf16.mxu0 0
    %777 = vmatpush2.bf16.xpose.msra.mxu0 0
    %778 = vmatprep.mubr.bf16.mxu0 0
    %779 = vmatmul.mubr.bf16.gmra.mxu0 %v741
    %v780 = vpop.f32.mrf.mxu0
    %v781 = vadd.f32 0.0, %v780
    %v782 = vpop.f32.mrf.mxu0
    %v783 = vpop.f32.mrf.mxu0
    %v784 = vadd.f32 0.0, %v783
    %v785 = vpop.f32.mrf.mxu0
    %786 = vmatprep.mubr.bf16.mxu0 0
    %787 = vmatmul.mubr.bf16.gmra.mxu0 %v744
    %v788 = vpop.f32.mrf.mxu0
    %v789 = vadd.f32 0.0, %v788
    %v790 = vpop.f32.mrf.mxu0
    %v791 = vpop.f32.mrf.mxu0
    %v792 = vadd.f32 0.0, %v791
    %v793 = vpop.f32.mrf.mxu0
    %794 = vdwg.mxu0
    %v795 = vmin.f32 %v781, 1.0
    %v796 = vmin.f32 %v784, 1.0
    %v797 = vmin.f32 %v789, 1.0
    %v798 = vmin.f32 %v792, 1.0
    %v799 = vadd.f32 %v795, 1e-07
    %v800 = vadd.f32 %v796, 1e-07
    %v801 = vadd.f32 %v797, 1e-07
    %v802 = vadd.f32 %v798, 1e-07
    %v803 = vlog2.pop %v799
    %v804 = vmul.f32 %v803, 0.6931472
    %v805 = vlog2.pop %v800
    %v806 = vmul.f32 %v805, 0.6931472
    %v807 = vlog2.pop %v801
    %v808 = vmul.f32 %v807, 0.6931472
    %v809 = vlog2.pop %v802
    %v810 = vmul.f32 %v809, 0.6931472
    %v811 = vsub.f32 1.0, %v795
    %v812 = vsub.f32 1.0, %v796
    %v813 = vsub.f32 1.0, %v797
    %v814 = vsub.f32 1.0, %v798
    %v815 = vadd.f32 %v811, 1e-07
    %v816 = vadd.f32 %v812, 1e-07
    %v817 = vadd.f32 %v813, 1e-07
    %v818 = vadd.f32 %v814, 1e-07
    %v819 = vlog2.pop %v815
    %v820 = vmul.f32 %v819, 0.6931472
    %v821 = vlog2.pop %v816
    %v822 = vmul.f32 %v821, 0.6931472
    %v823 = vlog2.pop %v817
    %v824 = vmul.f32 %v823, 0.6931472
    %v825 = vlog2.pop %v818
    %v826 = vmul.f32 %v825, 0.6931472
    %v827 = vmul.f32 %v736, %v804
    %v828 = vmul.f32 %v737, %v806
    %v829 = vmul.f32 %v738, %v808
    %v830 = vmul.f32 %v739, %v810
    %v831 = vsel %vm49, %v827, 0.0
    %v832 = vsel %vm49, %v828, 0.0
    %v833 = vadd.f32 %v831, %v832
    %v834 = vsel %vm49, %v829, 0.0
    %v835 = vadd.f32 %v833, %v834
    %v836 = vsel %vm49, %v830, 0.0
    %v837 = vadd.f32 %v835, %v836
    %838 = vadd.xlane.f32.xlu0 %v837
    %v839 = vpop.xlane.xlu0 %838
    %v840 = vrot.slane %v839, 4
    %v841 = vadd.f32 %v839, %v840
    %v842 = vrot.slane %v841, 2
    %v843 = vadd.f32 %v841, %v842
    %v844 = vrot.slane %v843, 1
    %v845 = vadd.f32 %v843, %v844
    %s846 = vtos %v845
    %s847 = ssub.f32 0.0, %s846
    %v848 = vsel %vm49, %v820, 0.0
    %v849 = vsel %vm49, %v822, 0.0
    %v850 = vadd.f32 %v848, %v849
    %v851 = vsel %vm49, %v824, 0.0
    %v852 = vadd.f32 %v850, %v851
    %v853 = vsel %vm49, %v826, 0.0
    %v854 = vadd.f32 %v852, %v853
    %855 = vadd.xlane.f32.xlu0 %v854
    %v856 = vpop.xlane.xlu0 %855
    %v857 = vrot.slane %v856, 4
    %v858 = vadd.f32 %v856, %v857
    %v859 = vrot.slane %v858, 2
    %v860 = vadd.f32 %v858, %v859
    %v861 = vrot.slane %v860, 1
    %v862 = vadd.f32 %v860, %v861
    %s863 = vtos %v862
    %s864 = ssub.f32 %s847, %s863
    %v865 = vmul.f32 %v736, %v820
    %v866 = vmul.f32 %v737, %v822
    %v867 = vmul.f32 %v738, %v824
    %v868 = vmul.f32 %v739, %v826
    %v869 = vsel %vm49, %v865, 0.0
    %v870 = vsel %vm49, %v866, 0.0
    %v871 = vadd.f32 %v869, %v870
    %v872 = vsel %vm49, %v867, 0.0
    %v873 = vadd.f32 %v871, %v872
    %v874 = vsel %vm49, %v868, 0.0
    %v875 = vadd.f32 %v873, %v874
    %876 = vadd.xlane.f32.xlu0 %v875
    %v877 = vpop.xlane.xlu0 %876
    %v878 = vrot.slane %v877, 4
    %v879 = vadd.f32 %v877, %v878
    %v880 = vrot.slane %v879, 2
    %v881 = vadd.f32 %v879, %v880
    %v882 = vrot.slane %v881, 1
    %v883 = vadd.f32 %v881, %v882
    %s884 = vtos %v883
    %s885 = sadd.f32 %s864, %s884
    %v886 = vrcp.pop 1024.0
    %s887 = vtos %v886
    %s888 = smul.f32 %s885, %s887
    %s889 = scalar_lea.smem [#allocation6], 0
    %890 = sst [smem:[%s889]] %s888
    // Predicated region
    $region26: #{jhgda_forward.19} parent=1 // pred_check
      _
    $region27: #{jhgda_forward.19} parent=1 // pred_check_branch
      %892 = sbr.rel (0) target = $region29
    $region28: #{jhgda_forward.19} parent=1 // pred_region
      _
    $region29: #{jhgda_forward.19} parent=1 // pred_fallthru
      _
    // Predicated region
    $region30: #{jhgda_forward.19} parent=1 // pred_check
      _
    $region31: #{jhgda_forward.19} parent=1 // pred_check_branch
      %894 = sbr.rel (0) target = $region33
    $region32: #{jhgda_forward.19} parent=1 // pred_region
      _
    $region33: #{jhgda_forward.19} parent=1 // pred_fallthru
      _
    // Predicated region
    $region34: #{jhgda_forward.19} parent=1 // pred_check
      _
    $region35: #{jhgda_forward.19} parent=1 // pred_check_branch
      %896 = sbr.rel (0) target = $region37
    $region36: #{jhgda_forward.19} parent=1 // pred_region
      _
    $region37: #{jhgda_forward.19} parent=1 // pred_fallthru
      _
    // Predicated region
    $region38: #{jhgda_forward.19} parent=1 // pred_check
      _
    $region39: #{jhgda_forward.19} parent=1 // pred_check_branch
      %898 = sbr.rel (0) target = $region41
    $region40: #{jhgda_forward.19} parent=1 // pred_region
      _
    $region41: #{jhgda_forward.19} parent=1 // pred_fallthru
      _
    // Predicated region
    $region42: #{jhgda_forward.19} parent=1 // pred_check
      _
    $region43: #{jhgda_forward.19} parent=1 // pred_check_branch
      %900 = sbr.rel (0) target = $region45
    $region44: #{jhgda_forward.19} parent=1 // pred_region
      %s902 = ssub.s32 16, 16
      %903 = vsyncadd [#allocation3], %s902
      %906 = dma.smem_to_hbm [#allocation2], 16, %s10, [#allocation3]
    $region45: #{jhgda_forward.19} parent=1 // pred_fallthru
      _
    // Predicated region
    $region46: #{jhgda_forward.19} parent=1 // pred_check
      _
    $region47: #{jhgda_forward.19} parent=1 // pred_check_branch
      %908 = sbr.rel (0) target = $region49
    $region48: #{jhgda_forward.19} parent=1 // pred_region
      %s910 = ssub.s32 16, 16
      %911 = vsyncadd [#allocation5], %s910
      %914 = dma.smem_to_hbm [#allocation4], 16, %s11, [#allocation5]
    $region49: #{jhgda_forward.19} parent=1 // pred_fallthru
      _
    // Predicated region
    $region50: #{jhgda_forward.19} parent=1 // pred_check
      _
    $region51: #{jhgda_forward.19} parent=1 // pred_check_branch
      %916 = sbr.rel (0) target = $region53
    $region52: #{jhgda_forward.19} parent=1 // pred_region
      %s918 = ssub.s32 16, 16
      %919 = vsyncadd [#allocation5], %s918
      %922 = dma.smem_to_hbm [#allocation6], 16, %s12, [#allocation5]
    $region53: #{jhgda_forward.19} parent=1 // pred_fallthru
      _
    // Predicated region
    $region54: #{jhgda_forward.19} parent=1 // pred_check
      _
    $region55: #{jhgda_forward.19} parent=1 // pred_check_branch
      %924 = sbr.rel (0) target = $region57
    $region56: #{jhgda_forward.19} parent=1 // pred_region
      _
    $region57: #{jhgda_forward.19} parent=1 // pred_fallthru
      _
    // Predicated region
    $region58: #{jhgda_forward.19} parent=1 // pred_check
      _
    $region59: #{jhgda_forward.19} parent=1 // pred_check_branch
      %926 = sbr.rel (0) target = $region61
    $region60: #{jhgda_forward.19} parent=1 // pred_region
      _
    $region61: #{jhgda_forward.19} parent=1 // pred_fallthru
      _
    // Predicated region
    $region62: #{jhgda_forward.19} parent=1 // pred_check
      _
    $region63: #{jhgda_forward.19} parent=1 // pred_check_branch
      %928 = sbr.rel (0) target = $region65
    $region64: #{jhgda_forward.19} parent=1 // pred_region
      _
    $region65: #{jhgda_forward.19} parent=1 // pred_fallthru
      _
    // Predicated region
    $region66: #{jhgda_forward.19} parent=1 // pred_check
      _
    $region67: #{jhgda_forward.19} parent=1 // pred_check_branch
      %930 = sbr.rel (0) target = $region69
    $region68: #{jhgda_forward.19} parent=1 // pred_region
      _
    $region69: #{jhgda_forward.19} parent=1 // pred_fallthru
      _
    // Predicated region
    $region70: #{jhgda_forward.19} parent=1 // pred_check
      _
    $region71: #{jhgda_forward.19} parent=1 // pred_check_branch
      %932 = sbr.rel (0) target = $region73
    $region72: #{jhgda_forward.19} parent=1 // pred_region
      %933 = dma.done [#allocation3], 16
    $region73: #{jhgda_forward.19} parent=1 // pred_fallthru
      _
    // Predicated region
    $region74: #{jhgda_forward.19} parent=1 // pred_check
      _
    $region75: #{jhgda_forward.19} parent=1 // pred_check_branch
      %935 = sbr.rel (0) target = $region77
    $region76: #{jhgda_forward.19} parent=1 // pred_region
      %936 = dma.done [#allocation5], 16
    $region77: #{jhgda_forward.19} parent=1 // pred_fallthru
      _
    // Predicated region
    $region78: #{jhgda_forward.19} parent=1 // pred_check
      _
    $region79: #{jhgda_forward.19} parent=1 // pred_check_branch
      %938 = sbr.rel (0) target = $region81
    $region80: #{jhgda_forward.19} parent=1 // pred_region
      %939 = dma.done [#allocation5], 16
    $region81: #{jhgda_forward.19} parent=1 // pred_fallthru
      _
    %940 = sfence
    %941 = vsyncpa [#allocation3], 1
    %942 = vsyncpa [#allocation5], 1

// kernel: jhgda_forward.21
$region0: #{jhgda_forward.21}
  #allocation0 [shape = 'u32[]', space=smem, size = 0x4, offset = 0x4, fixed_abs, tag = 'smem constant byte address 0x4 - core index']
  #allocation1 [shape = 'u32[144,128]{1,0:T(1,128)}', space=vmem, size = 0x12000, scoped, tag = 'internal scratch']
  %s0 = inlined_call_operand.vmem [shape: f32[16,32], index: 0, kind: input, shape index: {}]
  %s1 = inlined_call_operand.vmem [shape: f32[16,16], index: 1, kind: input, shape index: {}]
  %s2 = inlined_call_operand.vmem [shape: f32[32,32], index: 2, kind: input, shape index: {}]
  %s3 = inlined_call_operand.vmem [shape: f32[1,32], index: 3, kind: input, shape index: {}]
  %s4 = inlined_call_operand.vmem [shape: f32[16,32], index: 4, kind: output, shape index: {}]
  %s5 = sld [smem:[#allocation0]]
  $region26: #{jhgda_forward.21} parent=0
    _
  %s7 = ssub.s32 1, %s5
  %s8 = scalar_select 0, %s7, %s5
  // Predicated region
  $region2: #{jhgda_forward.21} parent=0 // pred_check
    _
  $region3: #{jhgda_forward.21} parent=0 // pred_check_branch
    %10 = sbr.rel (0) target = $region5
  $region4: #{jhgda_forward.21} parent=0 // pred_region
    _
  $region5: #{jhgda_forward.21} parent=0 // pred_fallthru
    _
  // Predicated region
  $region6: #{jhgda_forward.21} parent=0 // pred_check
    _
  $region7: #{jhgda_forward.21} parent=0 // pred_check_branch
    %12 = sbr.rel (0) target = $region9
  $region8: #{jhgda_forward.21} parent=0 // pred_region
    _
  $region9: #{jhgda_forward.21} parent=0 // pred_fallthru
    _
  // Predicated region
  $region10: #{jhgda_forward.21} parent=0 // pred_check
    _
  $region11: #{jhgda_forward.21} parent=0 // pred_check_branch
    %14 = sbr.rel (0) target = $region13
  $region12: #{jhgda_forward.21} parent=0 // pred_region
    _
  $region13: #{jhgda_forward.21} parent=0 // pred_fallthru
    _
  // Predicated region
  $region14: #{jhgda_forward.21} parent=0 // pred_check
    _
  $region15: #{jhgda_forward.21} parent=0 // pred_check_branch
    %16 = sbr.rel (0) target = $region17
  $region16: #{jhgda_forward.21} parent=0 // pred_region
    _
  $region17: #{jhgda_forward.21} parent=0 // pred_fallthru
    _
  %v18 = vld [vmem:[%s1] sm:$0xff]
  %v19 = vld [vmem:[%s1 + $0x8] sm:$0xff]
  %v20 = vld [vmem:[%s0] sm:$0xff]
  %v21 = vld [vmem:[%s0 + $0x8] sm:$0xff]
  %v22 = vld [vmem:[%s2] sm:$0xff]
  %v23 = vld [vmem:[%s2 + $0x8] sm:$0xff]
  %v24 = vld [vmem:[%s2 + $0x10] sm:$0xff]
  %v25 = vld [vmem:[%s2 + $0x18] sm:$0xff]
  %v26 = vpack.c.bf16 %v21, %v20
  %v27 = vpack.c.bf16 %v23, %v22
  %v28 = vpack.c.bf16 %v25, %v24
  %vm29 = vcmask 261120
  %v31 = vsel %vm29, %v26, 0
  %33 = vmatprep.subr.bf16.mxu0 0
  %34 = vmatpush1.bf16.msra.mxu0 0
  %35 = vmatprep.subr.bf16.mxu0 0
  %36 = vmatpush1.bf16.msra.mxu0 0
  %37 = vmatprep.subr.bf16.mxu0 0
  %38 = vmatpush1.bf16.msra.mxu0 0
  %39 = vmatprep.subr.bf16.mxu0 0
  %40 = vmatpush1.bf16.msra.mxu0 0
  %41 = vmatprep.subr.bf16.mxu0 0
  %42 = vmatpush1.bf16.msra.mxu0 0
  %43 = vmatprep.subr.bf16.mxu0 0
  %44 = vmatpush1.bf16.msra.mxu0 0
  %45 = vmatprep.subr.bf16.mxu0 0
  %46 = vmatpush1.bf16.msra.mxu0 %v28
  %47 = vmatprep.subr.bf16.mxu0 0
  %48 = vmatpush1.bf16.msra.mxu0 %v27
  %49 = vmatprep.subr.bf16.mxu0 0
  %50 = vmatpush2.bf16.msra.mxu0 0
  %51 = vmatprep.subr.bf16.mxu0 0
  %52 = vmatpush2.bf16.msra.mxu0 0
  %53 = vmatprep.subr.bf16.mxu0 0
  %54 = vmatpush2.bf16.msra.mxu0 0
  %55 = vmatprep.subr.bf16.mxu0 0
  %56 = vmatpush2.bf16.msra.mxu0 0
  %57 = vmatprep.subr.bf16.mxu0 0
  %58 = vmatpush2.bf16.msra.mxu0 0
  %59 = vmatprep.subr.bf16.mxu0 0
  %60 = vmatpush2.bf16.msra.mxu0 0
  %61 = vmatprep.subr.bf16.mxu0 0
  %62 = vmatpush2.bf16.msra.mxu0 0
  %63 = vmatprep.subr.bf16.mxu0 0
  %64 = vmatpush2.bf16.msra.mxu0 0
  %65 = vmatprep.mubr.bf16.mxu0 0
  %66 = vmatmul.mubr.bf16.gmra.mxu0 %v31
  %v67 = vpop.f32.mrf.mxu0
  %v68 = vadd.f32 0.0, %v67
  %v69 = vpop.f32.mrf.mxu0
  %v70 = vpop.f32.mrf.mxu0
  %v71 = vadd.f32 0.0, %v70
  %v72 = vpop.f32.mrf.mxu0
  %73 = vdwg.mxu0
  %74 = vxpose.xlu0.b32.start [1/16] %v18, 128
  %75 = vxpose.xlu0.b32.cont [2/16] %v19, 128
  %76 = vxpose.xlu0.b32.cont [3/16] 0.0, 128
  %77 = vxpose.xlu0.b32.cont [4/16] 0.0, 128
  %78 = vxpose.xlu0.b32.cont [5/16] 0.0, 128
  %79 = vxpose.xlu0.b32.cont [6/16] 0.0, 128
  %80 = vxpose.xlu0.b32.cont [7/16] 0.0, 128
  %81 = vxpose.xlu0.b32.cont [8/16] 0.0, 128
  %82 = vxpose.xlu0.b32.cont [9/16] 0.0, 128
  %83 = vxpose.xlu0.b32.cont [10/16] 0.0, 128
  %84 = vxpose.xlu0.b32.cont [11/16] 0.0, 128
  %85 = vxpose.xlu0.b32.cont [12/16] 0.0, 128
  %86 = vxpose.xlu0.b32.cont [13/16] 0.0, 128
  %87 = vxpose.xlu0.b32.cont [14/16] 0.0, 128
  %88 = vxpose.xlu0.b32.cont [15/16] 0.0, 128
  %89 = vxpose.xlu0.b32.end [16/16] 0.0, 128
  %v90 = vpop.trf.xlu0
  %v91 = vpop.trf.xlu0
  %v92 = vpop.trf.xlu0
  %v93 = vpop.trf.xlu0
  %v94 = vpop.trf.xlu0
  %v95 = vpop.trf.xlu0
  %v96 = vpop.trf.xlu0
  %v97 = vpop.trf.xlu0
  %v98 = vpop.trf.xlu0
  %v99 = vpop.trf.xlu0
  %v100 = vpop.trf.xlu0
  %v101 = vpop.trf.xlu0
  %v102 = vpop.trf.xlu0
  %v103 = vpop.trf.xlu0
  %v104 = vpop.trf.xlu0
  %v105 = vpop.trf.xlu0
  %vm106 = vcmask 130048
  %v108 = vsel %vm106, %v90, 0
  %v111 = vsel %vm106, %v91, 0
  %113 = vmatprep.subr.mxu0 0.0
  %114 = vmatpush1.msra.mxu0 0.0
  %115 = vmatprep.subr.mxu0 0.0
  %116 = vmatpush1.msra.mxu0 0.0
  %117 = vmatprep.subr.mxu0 0.0
  %118 = vmatpush1.msra.mxu0 0.0
  %119 = vmatprep.subr.mxu0 0.0
  %120 = vmatpush1.msra.mxu0 0.0
  %121 = vmatprep.subr.mxu0 0.0
  %122 = vmatpush1.msra.mxu0 0.0
  %123 = vmatprep.subr.mxu0 0.0
  %124 = vmatpush1.msra.mxu0 0.0
  %125 = vmatprep.subr.mxu0 0.0
  %126 = vmatpush1.msra.mxu0 0.0
  %127 = vmatprep.subr.mxu0 0.0
  %128 = vmatpush1.msra.mxu0 0.0
  %129 = vmatprep.subr.mxu0 0.0
  %130 = vmatpush1.msra.mxu0 0.0
  %131 = vmatprep.subr.mxu0 0.0
  %132 = vmatpush1.msra.mxu0 0.0
  %133 = vmatprep.subr.mxu0 0.0
  %134 = vmatpush1.msra.mxu0 0.0
  %135 = vmatprep.subr.mxu0 0.0
  %136 = vmatpush1.msra.mxu0 0.0
  %137 = vmatprep.subr.mxu0 0.0
  %138 = vmatpush1.msra.mxu0 0.0
  %139 = vmatprep.subr.mxu0 0.0
  %140 = vmatpush1.msra.mxu0 0.0
  %141 = vmatprep.subr.mxu0 0.0
  %142 = vmatpush1.msra.mxu0 1.0
  %143 = vmatprep.subr.mxu0 0.0
  %144 = vmatpush1.msra.mxu0 1.0
  %145 = vmatprep.subr.mxu0 0.0
  %146 = vmatpush2.msra.mxu0 0.0
  %147 = vmatprep.subr.mxu0 0.0
  %148 = vmatpush2.msra.mxu0 0.0
  %149 = vmatprep.subr.mxu0 0.0
  %150 = vmatpush2.msra.mxu0 0.0
  %151 = vmatprep.subr.mxu0 0.0
  %152 = vmatpush2.msra.mxu0 0.0
  %153 = vmatprep.subr.mxu0 0.0
  %154 = vmatpush2.msra.mxu0 0.0
  %155 = vmatprep.subr.mxu0 0.0
  %156 = vmatpush2.msra.mxu0 0.0
  %157 = vmatprep.subr.mxu0 0.0
  %158 = vmatpush2.msra.mxu0 0.0
  %159 = vmatprep.subr.mxu0 0.0
  %160 = vmatpush2.msra.mxu0 0.0
  %161 = vmatprep.subr.mxu0 0.0
  %162 = vmatpush2.msra.mxu0 0.0
  %163 = vmatprep.subr.mxu0 0.0
  %164 = vmatpush2.msra.mxu0 0.0
  %165 = vmatprep.subr.mxu0 0.0
  %166 = vmatpush2.msra.mxu0 0.0
  %167 = vmatprep.subr.mxu0 0.0
  %168 = vmatpush2.msra.mxu0 0.0
  %169 = vmatprep.subr.mxu0 0.0
  %170 = vmatpush2.msra.mxu0 0.0
  %171 = vmatprep.subr.mxu0 0.0
  %172 = vmatpush2.msra.mxu0 0.0
  %173 = vmatprep.subr.mxu0 0.0
  %174 = vmatpush2.msra.mxu0 0.0
  %175 = vmatprep.subr.mxu0 0.0
  %176 = vmatpush2.msra.mxu0 0.0
  %177 = vmatprep.mubr.f32.mxu0 0.0
  %178 = vmatmul.mubr.f32.gmra.mxu0 %v108
  %v179 = vpop.f32.mrf.mxu0
  %v180 = vadd.f32 0.0, %v179
  %v181 = vpop.f32.mrf.mxu0
  %182 = vmatprep.mubr.f32.mxu0 0.0
  %183 = vmatmul.mubr.f32.gmra.mxu0 %v111
  %v184 = vpop.f32.mrf.mxu0
  %v185 = vadd.f32 0.0, %v184
  %v186 = vpop.f32.mrf.mxu0
  %187 = vdwg.mxu0
  %vm188 = vcmp.gt.f32.partialorder %v180, 0.0
  %vm189 = vcmp.gt.f32.partialorder %v185, 0.0
  %v190 = vrsqrt.pop %v180
  %v191 = vrsqrt.pop %v185
  %v192 = vsel %vm188, %v190, 0.0
  %v193 = vsel %vm189, %v191, 0.0
  %195 = vset.pattern.permute.xlu0 0
  %196 = vperm.xlu0 %195, %v192
  %v197 = vpop.permute.xlu0 %196
  %200 = vset.pattern.permute.xlu0 0
  %201 = vperm.xlu0 %200, %v193
  %v202 = vpop.permute.xlu0 %201
  %v204 = vmul.f32 %v197, %v68
  %v205 = vmul.f32 %v202, %v71
  %v206 = vpack.c.bf16 %v19, %v18
  %v207 = vpack.c.bf16 %v205, %v204
  %208 = vxpose.xlu0.c.b16.start [1/8] %v206, 128
  %209 = vxpose.xlu0.c.b16.cont [2/8] 0, 128
  %210 = vxpose.xlu0.c.b16.cont [3/8] 0, 128
  %211 = vxpose.xlu0.c.b16.cont [4/8] 0, 128
  %212 = vxpose.xlu0.c.b16.cont [5/8] 0, 128
  %213 = vxpose.xlu0.c.b16.cont [6/8] 0, 128
  %214 = vxpose.xlu0.c.b16.cont [7/8] 0, 128
  %215 = vxpose.xlu0.c.b16.end [8/8] 0, 128
  %v216 = vpop.trf.xlu0
  %v217 = vpop.trf.xlu0
  %v218 = vpop.trf.xlu0
  %v219 = vpop.trf.xlu0
  %v220 = vpop.trf.xlu0
  %v221 = vpop.trf.xlu0
  %v222 = vpop.trf.xlu0
  %v223 = vpop.trf.xlu0
  %v225 = vsel %vm106, %v216, 0
  %227 = vmatprep.subr.bf16.mxu0 0
  %228 = vmatpush1.bf16.msra.mxu0 0
  %229 = vmatprep.subr.bf16.mxu0 0
  %230 = vmatpush1.bf16.msra.mxu0 0
  %231 = vmatprep.subr.bf16.mxu0 0
  %232 = vmatpush1.bf16.msra.mxu0 0
  %233 = vmatprep.subr.bf16.mxu0 0
  %234 = vmatpush1.bf16.msra.mxu0 0
  %235 = vmatprep.subr.bf16.mxu0 0
  %236 = vmatpush1.bf16.msra.mxu0 0
  %237 = vmatprep.subr.bf16.mxu0 0
  %238 = vmatpush1.bf16.msra.mxu0 0
  %239 = vmatprep.subr.bf16.mxu0 0
  %240 = vmatpush1.bf16.msra.mxu0 0
  %241 = vmatprep.subr.bf16.mxu0 0
  %242 = vmatpush1.bf16.msra.mxu0 %v207
  %243 = vmatprep.subr.bf16.mxu0 0
  %244 = vmatpush2.bf16.msra.mxu0 0
  %245 = vmatprep.subr.bf16.mxu0 0
  %246 = vmatpush2.bf16.msra.mxu0 0
  %247 = vmatprep.subr.bf16.mxu0 0
  %248 = vmatpush2.bf16.msra.mxu0 0
  %249 = vmatprep.subr.bf16.mxu0 0
  %250 = vmatpush2.bf16.msra.mxu0 0
  %251 = vmatprep.subr.bf16.mxu0 0
  %252 = vmatpush2.bf16.msra.mxu0 0
  %253 = vmatprep.subr.bf16.mxu0 0
  %254 = vmatpush2.bf16.msra.mxu0 0
  %255 = vmatprep.subr.bf16.mxu0 0
  %256 = vmatpush2.bf16.msra.mxu0 0
  %257 = vmatprep.subr.bf16.mxu0 0
  %258 = vmatpush2.bf16.msra.mxu0 0
  %259 = vmatprep.mubr.bf16.mxu0 0
  %260 = vmatmul.mubr.bf16.gmra.mxu0 %v225
  %v261 = vpop.f32.mrf.mxu0
  %v262 = vadd.f32 0.0, %v261
  %v263 = vpop.f32.mrf.mxu0
  %v264 = vpop.f32.mrf.mxu0
  %v265 = vadd.f32 0.0, %v264
  %v266 = vpop.f32.mrf.mxu0
  %267 = vdwg.mxu0
  %v268 = vmul.f32 %v197, %v262
  %v269 = vmul.f32 %v202, %v265
  %v270 = vld [vmem:[%s3] sm:$0x1]
  %v272 = vlaneseq
  %v273 = vshrl.u32 %v272, 7
  %v274 = vsub.s32 0, %v273
  %v275 = vrot.slane %v270, %v274
  %v277 = vadd.f32 %v268, %v275
  %v278 = vadd.f32 %v269, %v275
  %v279 = vmax.f32 %v277, 0.0
  %v280 = vmax.f32 %v278, 0.0
  %281 = vst.msk [vmem:[%s4] sm:$0xff] %vm29, %v279
  %282 = vst.msk [vmem:[%s4 + $0x8] sm:$0xff] %vm29, %v280
  // Predicated region
  $region18: #{jhgda_forward.21} parent=0 // pred_check
    _
  $region19: #{jhgda_forward.21} parent=0 // pred_check_branch
    %284 = sbr.rel (0) target = $region21
  $region20: #{jhgda_forward.21} parent=0 // pred_region
    _
  $region21: #{jhgda_forward.21} parent=0 // pred_fallthru
    _
  // Predicated region
  $region22: #{jhgda_forward.21} parent=0 // pred_check
    _
  $region23: #{jhgda_forward.21} parent=0 // pred_check_branch
    %286 = sbr.rel (0) target = $region25
  $region24: #{jhgda_forward.21} parent=0 // pred_region
    _
  $region25: #{jhgda_forward.21} parent=0 // pred_fallthru
    _

// kernel: jhgda_forward.23
$region0: #{jhgda_forward.23}
  #allocation0 [shape = 'u32[]', space=smem, size = 0x4, offset = 0x4, fixed_abs, tag = 'smem constant byte address 0x4 - core index']
  #allocation1 [shape = 'u32[144,128]{1,0:T(1,128)}', space=vmem, size = 0x12000, scoped, tag = 'internal scratch']
  %s0 = inlined_call_operand.vmem [shape: f32[16,32], index: 0, kind: input, shape index: {}]
  %s1 = inlined_call_operand.vmem [shape: f32[16,16], index: 1, kind: input, shape index: {}]
  %s2 = inlined_call_operand.vmem [shape: f32[32,8], index: 2, kind: input, shape index: {}]
  %s3 = inlined_call_operand.vmem [shape: f32[1,8], index: 3, kind: input, shape index: {}]
  %s4 = inlined_call_operand.vmem [shape: f32[16,32], index: 4, kind: input, shape index: {}]
  %s5 = inlined_call_operand.vmem [shape: f32[16,8], index: 5, kind: input, shape index: {}]
  %s6 = inlined_call_operand.vmem [shape: f32[16,8], index: 6, kind: output, shape index: {0}]
  %s7 = inlined_call_operand.hbm [shape: f32[8,32], index: 7, kind: output, shape index: {1}]
  %s8 = inlined_call_operand.hbm [shape: f32[8,8], index: 8, kind: output, shape index: {2}]
  %s9 = inlined_call_operand.vmem [shape: f32[8,8], index: 9, kind: output, shape index: {3}]
  %s10 = inlined_call_operand.hbm [shape: f32[1,1], index: 10, kind: output, shape index: {4}]
  %s11 = inlined_call_operand.hbm [shape: f32[1,1], index: 11, kind: output, shape index: {5}]
  %s12 = inlined_call_operand.hbm [shape: f32[1,1], index: 12, kind: output, shape index: {6}]
  %13 = xla_tuple %s6, %s7, %s8, %s9, %s10, %s11, %s12
  %s14 = sld [smem:[#allocation0]]
  $region82: #{jhgda_forward.23} parent=0
    _
  %s16 = ssub.s32 1, %s14
  %s17 = scalar_select 0, %s16, %s14
  $region1: #{jhgda_forward.23} parent=0
    #allocation2 [shape = 'u8[4096]{0}', space=vmem, size = 0x1000, scoped, tag = 'output window, operand 1, single buffered']
    #allocation3 [shape = 's32[1]{0}', space=sflag, size = 0x4, scoped, tag = 'scoped memory for jhgda_forward.23']
    #allocation4 [shape = 's32[1]{0}', space=sflag, size = 0x4, scoped, tag = 'scoped memory for jhgda_forward.23']
    #allocation5 [shape = 'u8[4096]{0}', space=vmem, size = 0x1000, scoped, tag = 'output window, operand 2, single buffered']
    #allocation6 [shape = 's32[1]{0}', space=sflag, size = 0x4, scoped, tag = 'scoped memory for jhgda_forward.23']
    #allocation7 [shape = 'u8[512]{0}', space=smem, size = 0x200, scoped, tag = 'output window, operand 4, single buffered']
    #allocation8 [shape = 'u8[512]{0}', space=smem, size = 0x200, scoped, tag = 'output window, operand 5, single buffered']
    #allocation9 [shape = 's32[1]{0}', space=sflag, size = 0x4, scoped, tag = 'scoped memory for jhgda_forward.23']
    #allocation10 [shape = 'u8[512]{0}', space=smem, size = 0x200, scoped, tag = 'output window, operand 6, single buffered']
    %18 = vsyncpa [#allocation3], 0
    %19 = vsyncpa [#allocation6], 0
    %20 = vsyncpa [#allocation4], 0
    %21 = vsyncpa [#allocation9], 0
    // Predicated region
    $region2: #{jhgda_forward.23} parent=1 // pred_check
      _
    $region3: #{jhgda_forward.23} parent=1 // pred_check_branch
      %23 = sbr.rel (0) target = $region5
    $region4: #{jhgda_forward.23} parent=1 // pred_region
      _
    $region5: #{jhgda_forward.23} parent=1 // pred_fallthru
      _
    // Predicated region
    $region6: #{jhgda_forward.23} parent=1 // pred_check
      _
    $region7: #{jhgda_forward.23} parent=1 // pred_check_branch
      %25 = sbr.rel (0) target = $region9
    $region8: #{jhgda_forward.23} parent=1 // pred_region
      _
    $region9: #{jhgda_forward.23} parent=1 // pred_fallthru
      _
    // Predicated region
    $region10: #{jhgda_forward.23} parent=1 // pred_check
      _
    $region11: #{jhgda_forward.23} parent=1 // pred_check_branch
      %27 = sbr.rel (0) target = $region13
    $region12: #{jhgda_forward.23} parent=1 // pred_region
      _
    $region13: #{jhgda_forward.23} parent=1 // pred_fallthru
      _
    // Predicated region
    $region14: #{jhgda_forward.23} parent=1 // pred_check
      _
    $region15: #{jhgda_forward.23} parent=1 // pred_check_branch
      %29 = sbr.rel (0) target = $region17
    $region16: #{jhgda_forward.23} parent=1 // pred_region
      _
    $region17: #{jhgda_forward.23} parent=1 // pred_fallthru
      _
    // Predicated region
    $region18: #{jhgda_forward.23} parent=1 // pred_check
      _
    $region19: #{jhgda_forward.23} parent=1 // pred_check_branch
      %31 = sbr.rel (0) target = $region21
    $region20: #{jhgda_forward.23} parent=1 // pred_region
      _
    $region21: #{jhgda_forward.23} parent=1 // pred_fallthru
      _
    // Predicated region
    $region22: #{jhgda_forward.23} parent=1 // pred_check
      _
    $region23: #{jhgda_forward.23} parent=1 // pred_check_branch
      %33 = sbr.rel (0) target = $region25
    $region24: #{jhgda_forward.23} parent=1 // pred_region
      _
    $region25: #{jhgda_forward.23} parent=1 // pred_fallthru
      _
    %v35 = vld [vmem:[%s1] sm:$0xff]
    %v36 = vld [vmem:[%s1 + $0x8] sm:$0xff]
    %v37 = vld [vmem:[%s0] sm:$0xff]
    %v38 = vld [vmem:[%s0 + $0x8] sm:$0xff]
    %v39 = vld [vmem:[%s2] sm:$0xff]
    %v40 = vld [vmem:[%s2 + $0x8] sm:$0xff]
    %v41 = vld [vmem:[%s2 + $0x10] sm:$0xff]
    %v42 = vld [vmem:[%s2 + $0x18] sm:$0xff]
    %v43 = vpack.c.bf16 %v38, %v37
    %v44 = vpack.c.bf16 %v40, %v39
    %v45 = vpack.c.bf16 %v42, %v41
    %vm46 = vcmask 261120
    %v48 = vsel %vm46, %v43, 0
    %50 = vmatprep.subr.bf16.mxu0 0
    %51 = vmatpush1.bf16.msra.mxu0 0
    %52 = vmatprep.subr.bf16.mxu0 0
    %53 = vmatpush1.bf16.msra.mxu0 0
    %54 = vmatprep.subr.bf16.mxu0 0
    %55 = vmatpush1.bf16.msra.mxu0 0
    %56 = vmatprep.subr.bf16.mxu0 0
    %57 = vmatpush1.bf16.msra.mxu0 0
    %58 = vmatprep.subr.bf16.mxu0 0
    %59 = vmatpush1.bf16.msra.mxu0 0
    %60 = vmatprep.subr.bf16.mxu0 0
    %61 = vmatpush1.bf16.msra.mxu0 0
    %62 = vmatprep.subr.bf16.mxu0 0
    %63 = vmatpush1.bf16.msra.mxu0 %v45
    %64 = vmatprep.subr.bf16.mxu0 0
    %65 = vmatpush1.bf16.msra.mxu0 %v44
    %66 = vmatprep.subr.bf16.mxu0 0
    %67 = vmatpush2.bf16.msra.mxu0 0
    %68 = vmatprep.subr.bf16.mxu0 0
    %69 = vmatpush2.bf16.msra.mxu0 0
    %70 = vmatprep.subr.bf16.mxu0 0
    %71 = vmatpush2.bf16.msra.mxu0 0
    %72 = vmatprep.subr.bf16.mxu0 0
    %73 = vmatpush2.bf16.msra.mxu0 0
    %74 = vmatprep.subr.bf16.mxu0 0
    %75 = vmatpush2.bf16.msra.mxu0 0
    %76 = vmatprep.subr.bf16.mxu0 0
    %77 = vmatpush2.bf16.msra.mxu0 0
    %78 = vmatprep.subr.bf16.mxu0 0
    %79 = vmatpush2.bf16.msra.mxu0 0
    %80 = vmatprep.subr.bf16.mxu0 0
    %81 = vmatpush2.bf16.msra.mxu0 0
    %82 = vmatprep.mubr.bf16.mxu0 0
    %83 = vmatmul.mubr.bf16.gmra.mxu0 %v48
    %v84 = vpop.f32.mrf.mxu0
    %v85 = vadd.f32 0.0, %v84
    %v86 = vpop.f32.mrf.mxu0
    %v87 = vpop.f32.mrf.mxu0
    %v88 = vadd.f32 0.0, %v87
    %v89 = vpop.f32.mrf.mxu0
    %90 = vdwg.mxu0
    %91 = vxpose.xlu0.b32.start [1/16] %v35, 128
    %92 = vxpose.xlu0.b32.cont [2/16] %v36, 128
    %93 = vxpose.xlu0.b32.cont [3/16] 0.0, 128
    %94 = vxpose.xlu0.b32.cont [4/16] 0.0, 128
    %95 = vxpose.xlu0.b32.cont [5/16] 0.0, 128
    %96 = vxpose.xlu0.b32.cont [6/16] 0.0, 128
    %97 = vxpose.xlu0.b32.cont [7/16] 0.0, 128
    %98 = vxpose.xlu0.b32.cont [8/16] 0.0, 128
    %99 = vxpose.xlu0.b32.cont [9/16] 0.0, 128
    %100 = vxpose.xlu0.b32.cont [10/16] 0.0, 128
    %101 = vxpose.xlu0.b32.cont [11/16] 0.0, 128
    %102 = vxpose.xlu0.b32.cont [12/16] 0.0, 128
    %103 = vxpose.xlu0.b32.cont [13/16] 0.0, 128
    %104 = vxpose.xlu0.b32.cont [14/16] 0.0, 128
    %105 = vxpose.xlu0.b32.cont [15/16] 0.0, 128
    %106 = vxpose.xlu0.b32.end [16/16] 0.0, 128
    %v107 = vpop.trf.xlu0
    %v108 = vpop.trf.xlu0
    %v109 = vpop.trf.xlu0
    %v110 = vpop.trf.xlu0
    %v111 = vpop.trf.xlu0
    %v112 = vpop.trf.xlu0
    %v113 = vpop.trf.xlu0
    %v114 = vpop.trf.xlu0
    %v115 = vpop.trf.xlu0
    %v116 = vpop.trf.xlu0
    %v117 = vpop.trf.xlu0
    %v118 = vpop.trf.xlu0
    %v119 = vpop.trf.xlu0
    %v120 = vpop.trf.xlu0
    %v121 = vpop.trf.xlu0
    %v122 = vpop.trf.xlu0
    %vm123 = vcmask 130048
    %v125 = vsel %vm123, %v107, 0
    %v128 = vsel %vm123, %v108, 0
    %130 = vmatprep.subr.mxu0 0.0
    %131 = vmatpush1.msra.mxu0 0.0
    %132 = vmatprep.subr.mxu0 0.0
    %133 = vmatpush1.msra.mxu0 0.0
    %134 = vmatprep.subr.mxu0 0.0
    %135 = vmatpush1.msra.mxu0 0.0
    %136 = vmatprep.subr.mxu0 0.0
    %137 = vmatpush1.msra.mxu0 0.0
    %138 = vmatprep.subr.mxu0 0.0
    %139 = vmatpush1.msra.mxu0 0.0
    %140 = vmatprep.subr.mxu0 0.0
    %141 = vmatpush1.msra.mxu0 0.0
    %142 = vmatprep.subr.mxu0 0.0
    %143 = vmatpush1.msra.mxu0 0.0
    %144 = vmatprep.subr.mxu0 0.0
    %145 = vmatpush1.msra.mxu0 0.0
    %146 = vmatprep.subr.mxu0 0.0
    %147 = vmatpush1.msra.mxu0 0.0
    %148 = vmatprep.subr.mxu0 0.0
    %149 = vmatpush1.msra.mxu0 0.0
    %150 = vmatprep.subr.mxu0 0.0
    %151 = vmatpush1.msra.mxu0 0.0
    %152 = vmatprep.subr.mxu0 0.0
    %153 = vmatpush1.msra.mxu0 0.0
    %154 = vmatprep.subr.mxu0 0.0
    %155 = vmatpush1.msra.mxu0 0.0
    %156 = vmatprep.subr.mxu0 0.0
    %157 = vmatpush1.msra.mxu0 0.0
    %158 = vmatprep.subr.mxu0 0.0
    %159 = vmatpush1.msra.mxu0 1.0
    %160 = vmatprep.subr.mxu0 0.0
    %161 = vmatpush1.msra.mxu0 1.0
    %162 = vmatprep.subr.mxu0 0.0
    %163 = vmatpush2.msra.mxu0 0.0
    %164 = vmatprep.subr.mxu0 0.0
    %165 = vmatpush2.msra.mxu0 0.0
    %166 = vmatprep.subr.mxu0 0.0
    %167 = vmatpush2.msra.mxu0 0.0
    %168 = vmatprep.subr.mxu0 0.0
    %169 = vmatpush2.msra.mxu0 0.0
    %170 = vmatprep.subr.mxu0 0.0
    %171 = vmatpush2.msra.mxu0 0.0
    %172 = vmatprep.subr.mxu0 0.0
    %173 = vmatpush2.msra.mxu0 0.0
    %174 = vmatprep.subr.mxu0 0.0
    %175 = vmatpush2.msra.mxu0 0.0
    %176 = vmatprep.subr.mxu0 0.0
    %177 = vmatpush2.msra.mxu0 0.0
    %178 = vmatprep.subr.mxu0 0.0
    %179 = vmatpush2.msra.mxu0 0.0
    %180 = vmatprep.subr.mxu0 0.0
    %181 = vmatpush2.msra.mxu0 0.0
    %182 = vmatprep.subr.mxu0 0.0
    %183 = vmatpush2.msra.mxu0 0.0
    %184 = vmatprep.subr.mxu0 0.0
    %185 = vmatpush2.msra.mxu0 0.0
    %186 = vmatprep.subr.mxu0 0.0
    %187 = vmatpush2.msra.mxu0 0.0
    %188 = vmatprep.subr.mxu0 0.0
    %189 = vmatpush2.msra.mxu0 0.0
    %190 = vmatprep.subr.mxu0 0.0
    %191 = vmatpush2.msra.mxu0 0.0
    %192 = vmatprep.subr.mxu0 0.0
    %193 = vmatpush2.msra.mxu0 0.0
    %194 = vmatprep.mubr.f32.mxu0 0.0
    %195 = vmatmul.mubr.f32.gmra.mxu0 %v125
    %v196 = vpop.f32.mrf.mxu0
    %v197 = vadd.f32 0.0, %v196
    %v198 = vpop.f32.mrf.mxu0
    %199 = vmatprep.mubr.f32.mxu0 0.0
    %200 = vmatmul.mubr.f32.gmra.mxu0 %v128
    %v201 = vpop.f32.mrf.mxu0
    %v202 = vadd.f32 0.0, %v201
    %v203 = vpop.f32.mrf.mxu0
    %204 = vdwg.mxu0
    %vm205 = vcmp.gt.f32.partialorder %v197, 0.0
    %vm206 = vcmp.gt.f32.partialorder %v202, 0.0
    %v207 = vrsqrt.pop %v197
    %v208 = vrsqrt.pop %v202
    %v209 = vsel %vm205, %v207, 0.0
    %v210 = vsel %vm206, %v208, 0.0
    %212 = vset.pattern.permute.xlu0 0
    %213 = vperm.xlu0 %212, %v209
    %v214 = vpop.permute.xlu0 %213
    %217 = vset.pattern.permute.xlu0 0
    %218 = vperm.xlu0 %217, %v210
    %v219 = vpop.permute.xlu0 %218
    %v221 = vmul.f32 %v214, %v85
    %v222 = vmul.f32 %v219, %v88
    %v223 = vpack.c.bf16 %v36, %v35
    %v224 = vpack.c.bf16 %v222, %v221
    %225 = vxpose.xlu0.c.b16.start [1/8] %v223, 128
    %226 = vxpose.xlu0.c.b16.cont [2/8] 0, 128
    %227 = vxpose.xlu0.c.b16.cont [3/8] 0, 128
    %228 = vxpose.xlu0.c.b16.cont [4/8] 0, 128
    %229 = vxpose.xlu0.c.b16.cont [5/8] 0, 128
    %230 = vxpose.xlu0.c.b16.cont [6/8] 0, 128
    %231 = vxpose.xlu0.c.b16.cont [7/8] 0, 128
    %232 = vxpose.xlu0.c.b16.end [8/8] 0, 128
    %v233 = vpop.trf.xlu0
    %v234 = vpop.trf.xlu0
    %v235 = vpop.trf.xlu0
    %v236 = vpop.trf.xlu0
    %v237 = vpop.trf.xlu0
    %v238 = vpop.trf.xlu0
    %v239 = vpop.trf.xlu0
    %v240 = vpop.trf.xlu0
    %v242 = vsel %vm123, %v233, 0
    %244 = vmatprep.subr.bf16.mxu0 0
    %245 = vmatpush1.bf16.msra.mxu0 0
    %246 = vmatprep.subr.bf16.mxu0 0
    %247 = vmatpush1.bf16.msra.mxu0 0
    %248 = vmatprep.subr.bf16.mxu0 0
    %249 = vmatpush1.bf16.msra.mxu0 0
    %250 = vmatprep.subr.bf16.mxu0 0
    %251 = vmatpush1.bf16.msra.mxu0 0
    %252 = vmatprep.subr.bf16.mxu0 0
    %253 = vmatpush1.bf16.msra.mxu0 0
    %254 = vmatprep.subr.bf16.mxu0 0
    %255 = vmatpush1.bf16.msra.mxu0 0
    %256 = vmatprep.subr.bf16.mxu0 0
    %257 = vmatpush1.bf16.msra.mxu0 0
    %258 = vmatprep.subr.bf16.mxu0 0
    %259 = vmatpush1.bf16.msra.mxu0 %v224
    %260 = vmatprep.subr.bf16.mxu0 0
    %261 = vmatpush2.bf16.msra.mxu0 0
    %262 = vmatprep.subr.bf16.mxu0 0
    %263 = vmatpush2.bf16.msra.mxu0 0
    %264 = vmatprep.subr.bf16.mxu0 0
    %265 = vmatpush2.bf16.msra.mxu0 0
    %266 = vmatprep.subr.bf16.mxu0 0
    %267 = vmatpush2.bf16.msra.mxu0 0
    %268 = vmatprep.subr.bf16.mxu0 0
    %269 = vmatpush2.bf16.msra.mxu0 0
    %270 = vmatprep.subr.bf16.mxu0 0
    %271 = vmatpush2.bf16.msra.mxu0 0
    %272 = vmatprep.subr.bf16.mxu0 0
    %273 = vmatpush2.bf16.msra.mxu0 0
    %274 = vmatprep.subr.bf16.mxu0 0
    %275 = vmatpush2.bf16.msra.mxu0 0
    %276 = vmatprep.mubr.bf16.mxu0 0
    %277 = vmatmul.mubr.bf16.gmra.mxu0 %v242
    %v278 = vpop.f32.mrf.mxu0
    %v279 = vadd.f32 0.0, %v278
    %v280 = vpop.f32.mrf.mxu0
    %v281 = vpop.f32.mrf.mxu0
    %v282 = vadd.f32 0.0, %v281
    %v283 = vpop.f32.mrf.mxu0
    %284 = vdwg.mxu0
    %v285 = vmul.f32 %v214, %v279
    %v286 = vmul.f32 %v219, %v282
    %v287 = vld [vmem:[%s3] sm:$0x1]
    %v289 = vlaneseq
    %v290 = vshrl.u32 %v289, 7
    %v291 = vsub.s32 0, %v290
    %v292 = vrot.slane %v287, %v291
    %v294 = vadd.f32 %v285, %v292
    %v295 = vadd.f32 %v286, %v292
    %v296 = vmax.f32 %v294, 0.0
    %v297 = vmax.f32 %v295, 0.0
    %vm298 = vcmask 64512
    %v299 = vsel %vm298, %v296, -inf
    %300 = vmax.xlane.f32.xlu0 %v299
    %v301 = vpop.xlane.xlu0 %300
    %v302 = vsel %vm298, %v297, -inf
    %303 = vmax.xlane.f32.xlu0 %v302
    %v304 = vpop.xlane.xlu0 %303
    %v305 = vsub.f32 %v296, %v301
    %v306 = vsub.f32 %v297, %v304
    %v307 = vmul.f32 %v305, 1.442695
    %v308 = vpow.pop %v307
    %v309 = vmul.f32 %v306, 1.442695
    %v310 = vpow.pop %v309
    %v311 = vsel %vm298, %v308, 0.0
    %312 = vadd.xlane.f32.xlu0 %v311
    %v313 = vpop.xlane.xlu0 %312
    %v314 = vsel %vm298, %v310, 0.0
    %315 = vadd.xlane.f32.xlu0 %v314
    %v316 = vpop.xlane.xlu0 %315
    %v317 = vrcp.pop %v313
    %v318 = vmul.f32 %v308, %v317
    %v319 = vrcp.pop %v316
    %v320 = vmul.f32 %v310, %v319
    %v321 = vlog2.pop %v313
    %v322 = vmul.f32 %v321, 0.6931472
    %v323 = vlog2.pop %v316
    %v324 = vmul.f32 %v323, 0.6931472
    %v325 = vmul.f32 %v318, %v305
    %v326 = vmul.f32 %v320, %v306
    %v327 = vsel %vm298, %v325, 0.0
    %328 = vadd.xlane.f32.xlu0 %v327
    %v329 = vpop.xlane.xlu0 %328
    %v330 = vsel %vm298, %v326, 0.0
    %331 = vadd.xlane.f32.xlu0 %v330
    %v332 = vpop.xlane.xlu0 %331
    %v333 = vsub.f32 %v322, %v329
    %v334 = vsub.f32 %v324, %v332
    %vm335 = vcmask 7168
    %v336 = vsel %vm335, %v333, 0.0
    %v337 = vsel %vm335, %v334, 0.0
    %v338 = vadd.f32 %v336, %v337
    %339 = vadd.xlane.f32.xlu0 %v338
    %v340 = vpop.xlane.xlu0 %339
    %v341 = vrot.slane %v340, 4
    %v342 = vadd.f32 %v340, %v341
    %v343 = vrot.slane %v342, 2
    %v344 = vadd.f32 %v342, %v343
    %v345 = vrot.slane %v344, 1
    %v346 = vadd.f32 %v344, %v345
    %s347 = vtos %v346
    %v348 = vrcp.pop 16.0
    %s349 = vtos %v348
    %s350 = smul.f32 %s347, %s349
    %351 = vst.msk [vmem:[%s6] sm:$0xff] %vm298, %v318
    %352 = vst.msk [vmem:[%s6 + $0x8] sm:$0xff] %vm298, %v320
    %s353 = scalar_lea.smem [#allocation7], 0
    %354 = sst [smem:[%s353]] %s350
    %v355 = vld [vmem:[%s4] sm:$0xff]
    %v356 = vld [vmem:[%s4 + $0x8] sm:$0xff]
    %v357 = vpack.c.bf16 %v320, %v318
    %v358 = vpack.c.bf16 %v356, %v355
    %359 = vxpose.xlu0.c.b16.start [1/8] %v357, 128
    %360 = vxpose.xlu0.c.b16.cont [2/8] 0, 128
    %361 = vxpose.xlu0.c.b16.cont [3/8] 0, 128
    %362 = vxpose.xlu0.c.b16.cont [4/8] 0, 128
    %363 = vxpose.xlu0.c.b16.cont [5/8] 0, 128
    %364 = vxpose.xlu0.c.b16.cont [6/8] 0, 128
    %365 = vxpose.xlu0.c.b16.cont [7/8] 0, 128
    %366 = vxpose.xlu0.c.b16.end [8/8] 0, 128
    %v367 = vpop.trf.xlu0
    %v368 = vpop.trf.xlu0
    %v369 = vpop.trf.xlu0
    %v370 = vpop.trf.xlu0
    %v371 = vpop.trf.xlu0
    %v372 = vpop.trf.xlu0
    %v373 = vpop.trf.xlu0
    %v374 = vpop.trf.xlu0
    %v376 = vsel %vm123, %v367, 0
    %378 = vmatprep.subr.bf16.mxu0 0
    %379 = vmatpush1.bf16.msra.mxu0 0
    %380 = vmatprep.subr.bf16.mxu0 0
    %381 = vmatpush1.bf16.msra.mxu0 0
    %382 = vmatprep.subr.bf16.mxu0 0
    %383 = vmatpush1.bf16.msra.mxu0 0
    %384 = vmatprep.subr.bf16.mxu0 0
    %385 = vmatpush1.bf16.msra.mxu0 0
    %386 = vmatprep.subr.bf16.mxu0 0
    %387 = vmatpush1.bf16.msra.mxu0 0
    %388 = vmatprep.subr.bf16.mxu0 0
    %389 = vmatpush1.bf16.msra.mxu0 0
    %390 = vmatprep.subr.bf16.mxu0 0
    %391 = vmatpush1.bf16.msra.mxu0 0
    %392 = vmatprep.subr.bf16.mxu0 0
    %393 = vmatpush1.bf16.msra.mxu0 %v358
    %394 = vmatprep.subr.bf16.mxu0 0
    %395 = vmatpush2.bf16.msra.mxu0 0
    %396 = vmatprep.subr.bf16.mxu0 0
    %397 = vmatpush2.bf16.msra.mxu0 0
    %398 = vmatprep.subr.bf16.mxu0 0
    %399 = vmatpush2.bf16.msra.mxu0 0
    %400 = vmatprep.subr.bf16.mxu0 0
    %401 = vmatpush2.bf16.msra.mxu0 0
    %402 = vmatprep.subr.bf16.mxu0 0
    %403 = vmatpush2.bf16.msra.mxu0 0
    %404 = vmatprep.subr.bf16.mxu0 0
    %405 = vmatpush2.bf16.msra.mxu0 0
    %406 = vmatprep.subr.bf16.mxu0 0
    %407 = vmatpush2.bf16.msra.mxu0 0
    %408 = vmatprep.subr.bf16.mxu0 0
    %409 = vmatpush2.bf16.msra.mxu0 0
    %410 = vmatprep.mubr.bf16.mxu0 0
    %411 = vmatmul.mubr.bf16.gmra.mxu0 %v376
    %v412 = vpop.f32.mrf.mxu0
    %v413 = vadd.f32 0.0, %v412
    %v414 = vpop.f32.mrf.mxu0
    %v415 = vpop.f32.mrf.mxu0
    %v416 = vpop.f32.mrf.mxu0
    %417 = vdwg.mxu0
    %418 = vst.msk [vmem:[#allocation2] sm:$0xff] %vm46, %v413
    %v419 = vld [vmem:[%s5] sm:$0xff]
    %v420 = vld [vmem:[%s5 + $0x8] sm:$0xff]
    %v421 = vpack.c.bf16 %v420, %v419
    %422 = vmatprep.subr.bf16.mxu0 0
    %423 = vmatpush1.bf16.msra.mxu0 0
    %424 = vmatprep.subr.bf16.mxu0 0
    %425 = vmatpush1.bf16.msra.mxu0 0
    %426 = vmatprep.subr.bf16.mxu0 0
    %427 = vmatpush1.bf16.msra.mxu0 0
    %428 = vmatprep.subr.bf16.mxu0 0
    %429 = vmatpush1.bf16.msra.mxu0 0
    %430 = vmatprep.subr.bf16.mxu0 0
    %431 = vmatpush1.bf16.msra.mxu0 0
    %432 = vmatprep.subr.bf16.mxu0 0
    %433 = vmatpush1.bf16.msra.mxu0 0
    %434 = vmatprep.subr.bf16.mxu0 0
    %435 = vmatpush1.bf16.msra.mxu0 0
    %436 = vmatprep.subr.bf16.mxu0 0
    %437 = vmatpush1.bf16.msra.mxu0 %v421
    %438 = vmatprep.subr.bf16.mxu0 0
    %439 = vmatpush2.bf16.msra.mxu0 0
    %440 = vmatprep.subr.bf16.mxu0 0
    %441 = vmatpush2.bf16.msra.mxu0 0
    %442 = vmatprep.subr.bf16.mxu0 0
    %443 = vmatpush2.bf16.msra.mxu0 0
    %444 = vmatprep.subr.bf16.mxu0 0
    %445 = vmatpush2.bf16.msra.mxu0 0
    %446 = vmatprep.subr.bf16.mxu0 0
    %447 = vmatpush2.bf16.msra.mxu0 0
    %448 = vmatprep.subr.bf16.mxu0 0
    %449 = vmatpush2.bf16.msra.mxu0 0
    %450 = vmatprep.subr.bf16.mxu0 0
    %451 = vmatpush2.bf16.msra.mxu0 0
    %452 = vmatprep.subr.bf16.mxu0 0
    %453 = vmatpush2.bf16.msra.mxu0 0
    %454 = vmatprep.mubr.bf16.mxu0 0
    %455 = vmatmul.mubr.bf16.gmra.mxu0 %v376
    %v456 = vpop.f32.mrf.mxu0
    %v457 = vadd.f32 0.0, %v456
    %v458 = vpop.f32.mrf.mxu0
    %v459 = vpop.f32.mrf.mxu0
    %v460 = vpop.f32.mrf.mxu0
    %461 = vdwg.mxu0
    %v462 = vsel %vm298, %v457, -inf
    %463 = vmax.xlane.f32.xlu0 %v462
    %v464 = vpop.xlane.xlu0 %463
    %v465 = vsub.f32 %v457, %v464
    %v466 = vmul.f32 %v465, 1.442695
    %v467 = vpow.pop %v466
    %v468 = vsel %vm298, %v467, 0.0
    %469 = vadd.xlane.f32.xlu0 %v468
    %v470 = vpop.xlane.xlu0 %469
    %v471 = vrcp.pop %v470
    %v472 = vmul.f32 %v467, %v471
    %v473 = vlog2.pop %v470
    %v474 = vmul.f32 %v473, 0.6931472
    %v475 = vmul.f32 %v472, %v465
    %v476 = vsel %vm298, %v475, 0.0
    %477 = vadd.xlane.f32.xlu0 %v476
    %v478 = vpop.xlane.xlu0 %477
    %v479 = vsub.f32 %v474, %v478
    %v480 = vsel %vm335, %v479, 0.0
    %481 = vadd.xlane.f32.xlu0 %v480
    %v482 = vpop.xlane.xlu0 %481
    %v483 = vrot.slane %v482, 4
    %v484 = vadd.f32 %v482, %v483
    %v485 = vrot.slane %v484, 2
    %v486 = vadd.f32 %v484, %v485
    %v487 = vrot.slane %v486, 1
    %v488 = vadd.f32 %v486, %v487
    %s489 = vtos %v488
    %v490 = vrcp.pop 8.0
    %s491 = vtos %v490
    %s492 = smul.f32 %s489, %s491
    %493 = vst.msk [vmem:[%s9] sm:$0xff] %vm298, %v472
    %s494 = scalar_lea.smem [#allocation8], 0
    %495 = sst [smem:[%s494]] %s492
    %v496 = vld [vmem:[%s1] sm:$0xff]
    %v497 = vld [vmem:[%s1 + $0x8] sm:$0xff]
    %v498 = vpack.c.bf16 %v497, %v496
    %499 = vmatprep.subr.bf16.mxu0 0
    %500 = vmatpush1.bf16.msra.mxu0 0
    %501 = vmatprep.subr.bf16.mxu0 0
    %502 = vmatpush1.bf16.msra.mxu0 0
    %503 = vmatprep.subr.bf16.mxu0 0
    %504 = vmatpush1.bf16.msra.mxu0 0
    %505 = vmatprep.subr.bf16.mxu0 0
    %506 = vmatpush1.bf16.msra.mxu0 0
    %507 = vmatprep.subr.bf16.mxu0 0
    %508 = vmatpush1.bf16.msra.mxu0 0
    %509 = vmatprep.subr.bf16.mxu0 0
    %510 = vmatpush1.bf16.msra.mxu0 0
    %511 = vmatprep.subr.bf16.mxu0 0
    %512 = vmatpush1.bf16.msra.mxu0 0
    %513 = vmatprep.subr.bf16.mxu0 0
    %514 = vmatpush1.bf16.msra.mxu0 %v498
    %515 = vmatprep.subr.bf16.mxu0 0
    %516 = vmatpush2.bf16.msra.mxu0 0
    %517 = vmatprep.subr.bf16.mxu0 0
    %518 = vmatpush2.bf16.msra.mxu0 0
    %519 = vmatprep.subr.bf16.mxu0 0
    %520 = vmatpush2.bf16.msra.mxu0 0
    %521 = vmatprep.subr.bf16.mxu0 0
    %522 = vmatpush2.bf16.msra.mxu0 0
    %523 = vmatprep.subr.bf16.mxu0 0
    %524 = vmatpush2.bf16.msra.mxu0 0
    %525 = vmatprep.subr.bf16.mxu0 0
    %526 = vmatpush2.bf16.msra.mxu0 0
    %527 = vmatprep.subr.bf16.mxu0 0
    %528 = vmatpush2.bf16.msra.mxu0 0
    %529 = vmatprep.subr.bf16.mxu0 0
    %530 = vmatpush2.bf16.msra.mxu0 0
    %531 = vmatprep.mubr.bf16.mxu0 0
    %532 = vmatmul.mubr.bf16.gmra.mxu0 %v376
    %v533 = vpop.f32.mrf.mxu0
    %v534 = vadd.f32 0.0, %v533
    %v535 = vpop.f32.mrf.mxu0
    %v536 = vpop.f32.mrf.mxu0
    %v537 = vpop.f32.mrf.mxu0
    %538 = vdwg.mxu0
    %v539 = vpack.c.bf16 %v534, %v534
    %v541 = vsel %vm123, %v539, 0
    %543 = vmatprep.subr.bf16.mxu0 0
    %544 = vmatpush1.bf16.msra.mxu0 0
    %545 = vmatprep.subr.bf16.mxu0 0
    %546 = vmatpush1.bf16.msra.mxu0 0
    %547 = vmatprep.subr.bf16.mxu0 0
    %548 = vmatpush1.bf16.msra.mxu0 0
    %549 = vmatprep.subr.bf16.mxu0 0
    %550 = vmatpush1.bf16.msra.mxu0 0
    %551 = vmatprep.subr.bf16.mxu0 0
    %552 = vmatpush1.bf16.msra.mxu0 0
    %553 = vmatprep.subr.bf16.mxu0 0
    %554 = vmatpush1.bf16.msra.mxu0 0
    %555 = vmatprep.subr.bf16.mxu0 0
    %556 = vmatpush1.bf16.msra.mxu0 0
    %557 = vmatprep.subr.bf16.mxu0 0
    %558 = vmatpush1.bf16.msra.mxu0 %v357
    %559 = vmatprep.subr.bf16.mxu0 0
    %560 = vmatpush2.bf16.msra.mxu0 0
    %561 = vmatprep.subr.bf16.mxu0 0
    %562 = vmatpush2.bf16.msra.mxu0 0
    %563 = vmatprep.subr.bf16.mxu0 0
    %564 = vmatpush2.bf16.msra.mxu0 0
    %565 = vmatprep.subr.bf16.mxu0 0
    %566 = vmatpush2.bf16.msra.mxu0 0
    %567 = vmatprep.subr.bf16.mxu0 0
    %568 = vmatpush2.bf16.msra.mxu0 0
    %569 = vmatprep.subr.bf16.mxu0 0
    %570 = vmatpush2.bf16.msra.mxu0 0
    %571 = vmatprep.subr.bf16.mxu0 0
    %572 = vmatpush2.bf16.msra.mxu0 0
    %573 = vmatprep.subr.bf16.mxu0 0
    %574 = vmatpush2.bf16.msra.mxu0 0
    %575 = vmatprep.mubr.bf16.mxu0 0
    %576 = vmatmul.mubr.bf16.gmra.mxu0 %v541
    %v577 = vpop.f32.mrf.mxu0
    %v578 = vadd.f32 0.0, %v577
    %v579 = vpop.f32.mrf.mxu0
    %v580 = vpop.f32.mrf.mxu0
    %v581 = vpop.f32.mrf.mxu0
    %582 = vdwg.mxu0
    %583 = vst.msk [vmem:[#allocation5] sm:$0xff] %vm298, %v578
    %v584 = vld [vmem:[%s6] sm:$0xff]
    %v585 = vld [vmem:[%s6 + $0x8] sm:$0xff]
    %v586 = vpack.c.bf16 %v585, %v584
    %v587 = vld [vmem:[%s1] sm:$0xff]
    %v588 = vld [vmem:[%s1 + $0x8] sm:$0xff]
    %v590 = vsel %vm298, %v586, 0
    %592 = vmatprep.subr.bf16.mxu0 0
    %593 = vmatpush1.bf16.xpose.msra.mxu0 0
    %594 = vmatprep.subr.bf16.mxu0 0
    %595 = vmatpush1.bf16.xpose.msra.mxu0 0
    %596 = vmatprep.subr.bf16.mxu0 0
    %597 = vmatpush1.bf16.xpose.msra.mxu0 0
    %598 = vmatprep.subr.bf16.mxu0 0
    %599 = vmatpush1.bf16.xpose.msra.mxu0 0
    %600 = vmatprep.subr.bf16.mxu0 0
    %601 = vmatpush1.bf16.xpose.msra.mxu0 0
    %602 = vmatprep.subr.bf16.mxu0 0
    %603 = vmatpush1.bf16.xpose.msra.mxu0 0
    %604 = vmatprep.subr.bf16.mxu0 0
    %605 = vmatpush1.bf16.xpose.msra.mxu0 0
    %606 = vmatprep.subr.bf16.mxu0 0
    %607 = vmatpush1.bf16.xpose.msra.mxu0 %v590
    %608 = vmatprep.subr.bf16.mxu0 0
    %609 = vmatpush2.bf16.xpose.msra.mxu0 0
    %610 = vmatprep.subr.bf16.mxu0 0
    %611 = vmatpush2.bf16.xpose.msra.mxu0 0
    %612 = vmatprep.subr.bf16.mxu0 0
    %613 = vmatpush2.bf16.xpose.msra.mxu0 0
    %614 = vmatprep.subr.bf16.mxu0 0
    %615 = vmatpush2.bf16.xpose.msra.mxu0 0
    %616 = vmatprep.subr.bf16.mxu0 0
    %617 = vmatpush2.bf16.xpose.msra.mxu0 0
    %618 = vmatprep.subr.bf16.mxu0 0
    %619 = vmatpush2.bf16.xpose.msra.mxu0 0
    %620 = vmatprep.subr.bf16.mxu0 0
    %621 = vmatpush2.bf16.xpose.msra.mxu0 0
    %622 = vmatprep.subr.bf16.mxu0 0
    %623 = vmatpush2.bf16.xpose.msra.mxu0 0
    %624 = vmatprep.mubr.bf16.mxu0 0
    %625 = vmatmul.mubr.bf16.gmra.mxu0 %v590
    %v626 = vpop.f32.mrf.mxu0
    %v627 = vadd.f32 0.0, %v626
    %v628 = vpop.f32.mrf.mxu0
    %v629 = vpop.f32.mrf.mxu0
    %v630 = vadd.f32 0.0, %v629
    %v631 = vpop.f32.mrf.mxu0
    %632 = vdwg.mxu0
    %v633 = vmin.f32 %v627, 1.0
    %v634 = vmin.f32 %v630, 1.0
    %v635 = vadd.f32 %v633, 1e-07
    %v636 = vadd.f32 %v634, 1e-07
    %v637 = vlog2.pop %v635
    %v638 = vmul.f32 %v637, 0.6931472
    %v639 = vlog2.pop %v636
    %v640 = vmul.f32 %v639, 0.6931472
    %v641 = vsub.f32 1.0, %v633
    %v642 = vsub.f32 1.0, %v634
    %v643 = vadd.f32 %v641, 1e-07
    %v644 = vadd.f32 %v642, 1e-07
    %v645 = vlog2.pop %v643
    %v646 = vmul.f32 %v645, 0.6931472
    %v647 = vlog2.pop %v644
    %v648 = vmul.f32 %v647, 0.6931472
    %v649 = vmul.f32 %v587, %v638
    %v650 = vmul.f32 %v588, %v640
    %v651 = vsel %vm123, %v649, 0.0
    %v652 = vsel %vm123, %v650, 0.0
    %v653 = vadd.f32 %v651, %v652
    %654 = vadd.xlane.f32.xlu0 %v653
    %v655 = vpop.xlane.xlu0 %654
    %v656 = vrot.slane %v655, 4
    %v657 = vadd.f32 %v655, %v656
    %v658 = vrot.slane %v657, 2
    %v659 = vadd.f32 %v657, %v658
    %v660 = vrot.slane %v659, 1
    %v661 = vadd.f32 %v659, %v660
    %s662 = vtos %v661
    %s663 = ssub.f32 0.0, %s662
    %v664 = vsel %vm123, %v646, 0.0
    %v665 = vsel %vm123, %v648, 0.0
    %v666 = vadd.f32 %v664, %v665
    %667 = vadd.xlane.f32.xlu0 %v666
    %v668 = vpop.xlane.xlu0 %667
    %v669 = vrot.slane %v668, 4
    %v670 = vadd.f32 %v668, %v669
    %v671 = vrot.slane %v670, 2
    %v672 = vadd.f32 %v670, %v671
    %v673 = vrot.slane %v672, 1
    %v674 = vadd.f32 %v672, %v673
    %s675 = vtos %v674
    %s676 = ssub.f32 %s663, %s675
    %v677 = vmul.f32 %v587, %v646
    %v678 = vmul.f32 %v588, %v648
    %v679 = vsel %vm123, %v677, 0.0
    %v680 = vsel %vm123, %v678, 0.0
    %v681 = vadd.f32 %v679, %v680
    %682 = vadd.xlane.f32.xlu0 %v681
    %v683 = vpop.xlane.xlu0 %682
    %v684 = vrot.slane %v683, 4
    %v685 = vadd.f32 %v683, %v684
    %v686 = vrot.slane %v685, 2
    %v687 = vadd.f32 %v685, %v686
    %v688 = vrot.slane %v687, 1
    %v689 = vadd.f32 %v687, %v688
    %s690 = vtos %v689
    %s691 = sadd.f32 %s676, %s690
    %v692 = vrcp.pop 256.0
    %s693 = vtos %v692
    %s694 = smul.f32 %s691, %s693
    %s695 = scalar_lea.smem [#allocation10], 0
    %696 = sst [smem:[%s695]] %s694
    // Predicated region
    $region26: #{jhgda_forward.23} parent=1 // pred_check
      _
    $region27: #{jhgda_forward.23} parent=1 // pred_check_branch
      %698 = sbr.rel (0) target = $region29
    $region28: #{jhgda_forward.23} parent=1 // pred_region
      _
    $region29: #{jhgda_forward.23} parent=1 // pred_fallthru
      _
    // Predicated region
    $region30: #{jhgda_forward.23} parent=1 // pred_check
      _
    $region31: #{jhgda_forward.23} parent=1 // pred_check_branch
      %700 = sbr.rel (0) target = $region33
    $region32: #{jhgda_forward.23} parent=1 // pred_region
      %s702 = ssub.s32 128, 128
      %703 = vsyncadd [#allocation3], %s702
      %s705 = sshll.u32 [#allocation2], 4
      %s706 = int_to_ptr.vmem [resolvable:$true] %s705
      %708 = dma.vmem_to_hbm [thread:$0]  %s706, 128, %s7, [#allocation3]
    $region33: #{jhgda_forward.23} parent=1 // pred_fallthru
      _
    // Predicated region
    $region34: #{jhgda_forward.23} parent=1 // pred_check
      _
    $region35: #{jhgda_forward.23} parent=1 // pred_check_branch
      %710 = sbr.rel (0) target = $region37
    $region36: #{jhgda_forward.23} parent=1 // pred_region
      %s712 = ssub.s32 128, 128
      %713 = vsyncadd [#allocation6], %s712
      %s715 = sshll.u32 [#allocation5], 4
      %s716 = int_to_ptr.vmem [resolvable:$true] %s715
      %718 = dma.vmem_to_hbm [thread:$0]  %s716, 128, %s8, [#allocation6]
    $region37: #{jhgda_forward.23} parent=1 // pred_fallthru
      _
    // Predicated region
    $region38: #{jhgda_forward.23} parent=1 // pred_check
      _
    $region39: #{jhgda_forward.23} parent=1 // pred_check_branch
      %720 = sbr.rel (0) target = $region41
    $region40: #{jhgda_forward.23} parent=1 // pred_region
      _
    $region41: #{jhgda_forward.23} parent=1 // pred_fallthru
      _
    // Predicated region
    $region42: #{jhgda_forward.23} parent=1 // pred_check
      _
    $region43: #{jhgda_forward.23} parent=1 // pred_check_branch
      %722 = sbr.rel (0) target = $region45
    $region44: #{jhgda_forward.23} parent=1 // pred_region
      %s724 = ssub.s32 16, 16
      %725 = vsyncadd [#allocation4], %s724
      %728 = dma.smem_to_hbm [#allocation7], 16, %s10, [#allocation4]
    $region45: #{jhgda_forward.23} parent=1 // pred_fallthru
      _
    // Predicated region
    $region46: #{jhgda_forward.23} parent=1 // pred_check
      _
    $region47: #{jhgda_forward.23} parent=1 // pred_check_branch
      %730 = sbr.rel (0) target = $region49
    $region48: #{jhgda_forward.23} parent=1 // pred_region
      %s732 = ssub.s32 16, 16
      %733 = vsyncadd [#allocation9], %s732
      %736 = dma.smem_to_hbm [#allocation8], 16, %s11, [#allocation9]
    $region49: #{jhgda_forward.23} parent=1 // pred_fallthru
      _
    // Predicated region
    $region50: #{jhgda_forward.23} parent=1 // pred_check
      _
    $region51: #{jhgda_forward.23} parent=1 // pred_check_branch
      %738 = sbr.rel (0) target = $region53
    $region52: #{jhgda_forward.23} parent=1 // pred_region
      %s740 = ssub.s32 16, 16
      %741 = vsyncadd [#allocation9], %s740
      %744 = dma.smem_to_hbm [#allocation10], 16, %s12, [#allocation9]
    $region53: #{jhgda_forward.23} parent=1 // pred_fallthru
      _
    // Predicated region
    $region54: #{jhgda_forward.23} parent=1 // pred_check
      _
    $region55: #{jhgda_forward.23} parent=1 // pred_check_branch
      %746 = sbr.rel (0) target = $region57
    $region56: #{jhgda_forward.23} parent=1 // pred_region
      _
    $region57: #{jhgda_forward.23} parent=1 // pred_fallthru
      _
    // Predicated region
    $region58: #{jhgda_forward.23} parent=1 // pred_check
      _
    $region59: #{jhgda_forward.23} parent=1 // pred_check_branch
      %748 = sbr.rel (0) target = $region61
    $region60: #{jhgda_forward.23} parent=1 // pred_region
      %749 = dma.done [#allocation3], 128
    $region61: #{jhgda_forward.23} parent=1 // pred_fallthru
      _
    // Predicated region
    $region62: #{jhgda_forward.23} parent=1 // pred_check
      _
    $region63: #{jhgda_forward.23} parent=1 // pred_check_branch
      %751 = sbr.rel (0) target = $region65
    $region64: #{jhgda_forward.23} parent=1 // pred_region
      %752 = dma.done [#allocation6], 128
    $region65: #{jhgda_forward.23} parent=1 // pred_fallthru
      _
    // Predicated region
    $region66: #{jhgda_forward.23} parent=1 // pred_check
      _
    $region67: #{jhgda_forward.23} parent=1 // pred_check_branch
      %754 = sbr.rel (0) target = $region69
    $region68: #{jhgda_forward.23} parent=1 // pred_region
      _
    $region69: #{jhgda_forward.23} parent=1 // pred_fallthru
      _
    // Predicated region
    $region70: #{jhgda_forward.23} parent=1 // pred_check
      _
    $region71: #{jhgda_forward.23} parent=1 // pred_check_branch
      %756 = sbr.rel (0) target = $region73
    $region72: #{jhgda_forward.23} parent=1 // pred_region
      %757 = dma.done [#allocation4], 16
    $region73: #{jhgda_forward.23} parent=1 // pred_fallthru
      _
    // Predicated region
    $region74: #{jhgda_forward.23} parent=1 // pred_check
      _
    $region75: #{jhgda_forward.23} parent=1 // pred_check_branch
      %759 = sbr.rel (0) target = $region77
    $region76: #{jhgda_forward.23} parent=1 // pred_region
      %760 = dma.done [#allocation9], 16
    $region77: #{jhgda_forward.23} parent=1 // pred_fallthru
      _
    // Predicated region
    $region78: #{jhgda_forward.23} parent=1 // pred_check
      _
    $region79: #{jhgda_forward.23} parent=1 // pred_check_branch
      %762 = sbr.rel (0) target = $region81
    $region80: #{jhgda_forward.23} parent=1 // pred_region
      %763 = dma.done [#allocation9], 16
    $region81: #{jhgda_forward.23} parent=1 // pred_fallthru
      _
    %764 = sfence
    %765 = vsyncpa [#allocation3], 1
    %766 = vsyncpa [#allocation6], 1
    %767 = vsyncpa [#allocation4], 1
    %768 = vsyncpa [#allocation9], 1

</llo_original>
